<compile_context>
chip_gen: v7x
topology: tpu7x:2x2x1
jax: 0.10.0
libtpu: 0.0.40
codegen_flags: <defaults>
</compile_context>

<pallas_src>
import jax
import jax.numpy as jnp
from jax import lax
from jax.experimental import pallas as pl
from jax.experimental.pallas import tpu as pltpu


def _fuse_recurrent_matmuls():
    """Fuse fwd/bwd recurrent matmuls into one block-diagonal MXU op (v6e/v7x only)."""
    try:
        kind = jax.devices()[0].device_kind.lower()
    except Exception:
        return True
    # v5 chips have a 128-wide MXU: the [2H,8H] block-diagonal form gives no issue-count
    # win there and wastes half its columns, so keep two independent per-direction matmuls.
    return "v5" not in kind


# ----------------------------------------------------------------------------
# Single fused kernel: conv -> ReLU -> stacked biLSTM -> head MLP
# ----------------------------------------------------------------------------
def make_fused_kernel(B, E, KE_pad, T, H, n_layers, out_dim, fuse_hh):
    G = 4 * H

    def kernel(*refs):
        idx = 0
        x_ref = refs[idx]; idx += 1          # [T*B, KE_pad]  (time-major im2col, lane-padded)
        cw_ref = refs[idx]; idx += 1         # [KE_pad, E]
        cb_ref = refs[idx]; idx += 1         # [1, E]
        layer_refs = []
        for _ in range(n_layers):
            layer_refs.append(refs[idx:idx + 5])  # wih_f, wih_b, b_f, b_b, whh_blk
            idx += 5
        w1_ref, b1_ref, w2_ref, b2_ref = refs[idx:idx + 4]; idx += 4
        out_ref = refs[idx]

        # ---- Conv1d(E->E, kernel=K, stride=1, pad=0) + ReLU: one aligned im2col matmul ----
        seq = jnp.maximum(
            jnp.dot(x_ref[...], cw_ref[...], preferred_element_type=jnp.float32)
            + cb_ref[...], 0.0)                                         # [T*B, E], time-major
        # TODO(synk): dropout1 is identity (inference mode).

        # ---- Stacked bidirectional LSTM (PyTorch gate order i, f, g, o) ----
        lane = lax.broadcasted_iota(jnp.int32, (B, G), 1)
        is_g_gate = (lane >= 2 * H) & (lane < 3 * H)

        def cell(gates, c):
            # Full-width EUP sigmoid/tanh + one VPU select keeps the 128-lane vreg dense.
            sig = jax.nn.sigmoid(gates)                                 # [B, 4H]
            tan = jnp.tanh(gates)                                       # [B, 4H]
            act = jnp.where(is_g_gate, tan, sig)
            # TODO(synk): gate slices at lane offsets H/2H/3H need XLU rotates; reorder
            # W_ih/W_hh columns wrapper-side if a bundle dump shows them on the crit path.
            i_g = act[:, 0:H]
            f_g = act[:, H:2 * H]
            g_g = act[:, 2 * H:3 * H]
            o_g = act[:, 3 * H:4 * H]
            c_new = f_g * c + i_g * g_g
            h_new = o_g * jnp.tanh(c_new)
            return h_new, c_new

        h_f = h_b = None
        seq_f_flat = None                                               # [T*B, H] prev-layer fwd
        seq_b_flat = None                                               # [T*B, H] prev-layer bwd
        for layer in range(n_layers):
            wih_f_ref, wih_b_ref, bf_ref, bb_ref, whh_ref = layer_refs[layer]
            b_f = bf_ref[...]
            b_b = bb_ref[...]

            # Hoisted input projection over ALL timesteps, produced TIME-MAJOR [T, B, 4H].
            if layer == 0:
                gx_f = (jnp.dot(seq, wih_f_ref[...], preferred_element_type=jnp.float32)
                        + b_f).reshape(T, B, G)
                gx_b = (jnp.dot(seq, wih_b_ref[...], preferred_element_type=jnp.float32)
                        + b_b).reshape(T, B, G)
            else:
                # Split-halves projection: no [B, T, 2H] lane concat of fwd/bwd outputs;
                # the extra tiny matmul per direction rides on an otherwise idle MXU.
                wf_top = wih_f_ref[0:H, :]
                wf_bot = wih_f_ref[H:2 * H, :]
                wb_top = wih_b_ref[0:H, :]
                wb_bot = wih_b_ref[H:2 * H, :]
                gx_f = (jnp.dot(seq_f_flat, wf_top, preferred_element_type=jnp.float32)
                        + jnp.dot(seq_b_flat, wf_bot, preferred_element_type=jnp.float32)
                        + b_f).reshape(T, B, G)
                gx_b = (jnp.dot(seq_f_flat, wb_top, preferred_element_type=jnp.float32)
                        + jnp.dot(seq_b_flat, wb_bot, preferred_element_type=jnp.float32)
                        + b_b).reshape(T, B, G)

            if fuse_hh:
                whh_blk = whh_ref[...]                                  # [2H, 8H] block-diag
            else:
                whh_f = whh_ref[0:H, 0:G]                               # [H, 4H]
                whh_b = whh_ref[H:2 * H, G:2 * G]                       # [H, 4H]

            h_f = jnp.zeros((B, H), jnp.float32)
            c_f = jnp.zeros((B, H), jnp.float32)
            h_b = jnp.zeros((B, H), jnp.float32)
            c_b = jnp.zeros((B, H), jnp.float32)
            need_seq = layer + 1 < n_layers
            outs_f = [None] * T
            outs_b = [None] * T

            # Fully unrolled recurrence (T small & static); fwd consumes t while bwd
            # consumes T-1-t so the two independent chains interleave per bundle.
            # TODO(synk): on v7x the two directions could be split across the 2 TensorCores
            # via pl.core_map; batching across requests is the cheaper lever, so not done.
            for t in range(T):
                tb = T - 1 - t
                if fuse_hh:
                    rec = jnp.dot(jnp.concatenate([h_f, h_b], axis=-1), whh_blk,
                                  preferred_element_type=jnp.float32)   # [B, 8H], 1 MXU push
                    gates_f = gx_f[t] + rec[:, 0:G]
                    gates_b = gx_b[tb] + rec[:, G:2 * G]
                else:
                    gates_f = gx_f[t] + jnp.dot(h_f, whh_f,
                                                preferred_element_type=jnp.float32)
                    gates_b = gx_b[tb] + jnp.dot(h_b, whh_b,
                                                 preferred_element_type=jnp.float32)
                h_f, c_f = cell(gates_f, c_f)
                h_b, c_b = cell(gates_b, c_b)
                if need_seq:
                    outs_f[t] = h_f
                    outs_b[tb] = h_b

            if need_seq:
                # Leading-axis (time) stacking only — no lane concat; one sublane repack
                # per layer instead of per timestep.
                # TODO(synk): inter-layer LSTM dropout is identity (inference mode).
                seq_f_flat = jnp.stack(outs_f, axis=0).reshape(T * B, H)
                seq_b_flat = jnp.stack(outs_b, axis=0).reshape(T * B, H)

        # ---- Head: Linear(2H,32) -> (Dropout=id) -> ReLU -> [BN folded into w2/b2] -> Linear ----
        hidden = jnp.concatenate([h_f, h_b], axis=-1)                   # [B, 2H] == cat(h_n[-2], h_n[-1])
        # TODO(synk): dropout2 / head dropout are identity (inference mode).
        z = jnp.maximum(
            jnp.dot(hidden, w1_ref[...], preferred_element_type=jnp.float32) + b1_ref[...],
            0.0)
        out_ref[...] = (jnp.dot(z, w2_ref[...], preferred_element_type=jnp.float32)
                        + b2_ref[...]).astype(out_ref.dtype)

    return kernel


# ----------------------------------------------------------------------------
# Full forward pass (mirrors LSTMConv.forward in inference mode) — one pallas_call.
# ----------------------------------------------------------------------------
def lstm_conv_forward(x_bel, params):
    """x_bel: [B, E, L] (PyTorch NCL). Returns logits [B, output_dim]."""
    B, E, L = x_bel.shape
    K = params['kernel_size']
    H = params['hidden_dim']
    T = L - K + 1
    n_layers = len(params['layers'])
    out_dim = params['w2'].shape[1]
    KE = K * E
    KE_pad = params['conv_w'].shape[0]                  # K*E rounded up to a lane tile (128)
    fuse_hh = params['fuse_hh']

    # Wrapper-side layout plumbing (free relative to the kernel): NCL -> time-major im2col,
    # zero-padded to a lane-tile-aligned contraction dim.
    # TODO(synk): serving-path lever — pack more requests per call (B -> multiple of 8) to
    # fill sublanes; the per-call latency is essentially batch-independent at this size.
    x_lbe = jnp.transpose(x_bel, (2, 0, 1))                             # [L, B, E]
    xcol = jnp.concatenate([x_lbe[k:k + T] for k in range(K)], axis=-1)  # [T, B, K*E]
    xcol = xcol.reshape(T * B, KE)
    xcol = jnp.pad(xcol, ((0, 0), (0, KE_pad - KE)))                    # [T*B, KE_pad]

    args = [xcol, params['conv_w'], params['conv_b']]
    for lp in params['layers']:
        args.extend([lp['wih_f'], lp['wih_b'], lp['b_f'], lp['b_b'], lp['whh_blk']])
    args.extend([params['w1'], params['b1'], params['w2'], params['b2']])

    # Advisory cost hint so XLA schedules the fused custom call sensibly.
    flops = 2 * (T * B) * KE_pad * E
    in_dim = E
    for _ in range(n_layers):
        flops += 2 * (2 * (T * B) * in_dim * 4 * H)      # hoisted x-projections, 2 dirs
        flops += 2 * (T * B * 2 * H * 8 * H)             # recurrent matmuls (upper bound)
        in_dim = 2 * H
    flops += 2 * B * 2 * H * 32 + 2 * B * 32 * out_dim
    transcendentals = n_layers * 2 * T * B * (2 * 4 * H + 2 * H)
    bytes_accessed = sum(int(a.size) * 4 for a in args) + B * out_dim * 4

    kernel = make_fused_kernel(B, E, KE_pad, T, H, n_layers, out_dim, fuse_hh)
    vmem = pl.BlockSpec(memory_space=pltpu.MemorySpace.VMEM)            # explicit VMEM residency
    return pl.pallas_call(
        kernel,
        out_shape=jax.ShapeDtypeStruct((B, out_dim), jnp.float32),
        in_specs=[vmem] * len(args),
        out_specs=vmem,
        cost_estimate=pl.CostEstimate(flops=flops,
                                      transcendentals=transcendentals,
                                      bytes_accessed=bytes_accessed),
    )(*args)


# ----------------------------------------------------------------------------
# Deterministic synthetic parameters in PyTorch-native layout + conversion to kernel layout.
# ----------------------------------------------------------------------------
def make_torch_style_params(key, emb_dim, hidden_dim, n_layers, kernel_size, output_dim):
    keys = iter(jax.random.split(key, 128))

    def unif(shape, bound):
        return jax.random.uniform(next(keys), shape, jnp.float32, -bound, bound)

    conv_bound = 1.0 / float(jnp.sqrt(emb_dim * kernel_size))
    p = {
        'conv.weight': unif((emb_dim, emb_dim, kernel_size), conv_bound),  # [E_out, E_in, K]
        'conv.bias': unif((emb_dim,), conv_bound),
    }
    h_bound = 1.0 / float(jnp.sqrt(hidden_dim))
    for layer in range(n_layers):
        in_dim = emb_dim if layer == 0 else 2 * hidden_dim
        for suffix in ('', '_reverse'):
            p[f'lstm.weight_ih_l{layer}{suffix}'] = unif((4 * hidden_dim, in_dim), h_bound)
            p[f'lstm.weight_hh_l{layer}{suffix}'] = unif((4 * hidden_dim, hidden_dim), h_bound)
            p[f'lstm.bias_ih_l{layer}{suffix}'] = unif((4 * hidden_dim,), h_bound)
            p[f'lstm.bias_hh_l{layer}{suffix}'] = unif((4 * hidden_dim,), h_bound)
    l1_bound = 1.0 / float(jnp.sqrt(2.0 * hidden_dim))
    p['linear.0.weight'] = unif((32, 2 * hidden_dim), l1_bound)
    p['linear.0.bias'] = unif((32,), l1_bound)
    p['linear.3.weight'] = unif((32,), 1.0) + 1.0                        # BN gamma (nontrivial)
    p['linear.3.bias'] = unif((32,), 0.5)                                # BN beta
    p['linear.3.running_mean'] = unif((32,), 0.5)
    p['linear.3.running_var'] = unif((32,), 0.5) + 1.0                   # positive
    l2_bound = 1.0 / float(jnp.sqrt(32.0))
    p['output.weight'] = unif((output_dim, 32), l2_bound)
    p['output.bias'] = unif((output_dim,), l2_bound)
    return p


def prepare_params(tp, emb_dim, hidden_dim, n_layers, kernel_size, output_dim, bn_eps=1e-5):
    """Convert PyTorch-layout params to the kernel's layout (all done once, wrapper-side)."""
    E, H, K = emb_dim, hidden_dim, kernel_size
    KE = K * E
    KE_pad = ((KE + 127) // 128) * 128

    # Conv weight -> im2col layout [K*E_in, E_out], rows zero-padded to a lane tile.
    conv_w = jnp.transpose(tp['conv.weight'], (2, 1, 0)).reshape(KE, E)
    conv_w = jnp.pad(conv_w, ((0, KE_pad - KE), (0, 0)))
    conv_b = tp['conv.bias'].reshape(1, E)

    layers = []
    for layer in range(n_layers):
        lp = {}
        blk = jnp.zeros((2 * H, 8 * H), jnp.float32)                    # block-diag W_hh
        for d, suffix in enumerate(('', '_reverse')):
            tag = 'f' if d == 0 else 'b'
            wih = jnp.transpose(tp[f'lstm.weight_ih_l{layer}{suffix}'])  # [in_dim, 4H]
            whh = jnp.transpose(tp[f'lstm.weight_hh_l{layer}{suffix}'])  # [H, 4H]
            b = (tp[f'lstm.bias_ih_l{layer}{suffix}'] +
                 tp[f'lstm.bias_hh_l{layer}{suffix}']).reshape(1, 4 * H)
            lp[f'wih_{tag}'] = wih
            lp[f'b_{tag}'] = b
            blk = blk.at[d * H:(d + 1) * H, d * 4 * H:(d + 1) * 4 * H].set(whh)
        lp['whh_blk'] = blk
        layers.append(lp)

    w1 = jnp.transpose(tp['linear.0.weight'])                            # [2H, 32]
    b1 = tp['linear.0.bias'].reshape(1, 32)
    # Fold eval-mode BatchNorm into the output Linear (BN sits directly before it).
    gamma = tp['linear.3.weight']
    beta = tp['linear.3.bias']
    mean = tp['linear.3.running_mean']
    var = tp['linear.3.running_var']
    scale = gamma / jnp.sqrt(var + bn_eps)
    shift = beta - mean * scale
    w2 = jnp.transpose(tp['output.weight'])                              # [32, out_dim]
    w2p = scale[:, None] * w2
    b2p = (shift @ w2 + tp['output.bias']).reshape(1, output_dim)

    return {
        'kernel_size': K,
        'hidden_dim': H,
        'conv_w': conv_w, 'conv_b': conv_b,
        'layers': layers,
        'w1': w1, 'b1': b1, 'w2': w2p, 'b2': b2p,
        'fuse_hh': _fuse_recurrent_matmuls(),
    }


if __name__ == "__main__":
    # Small config: B=2, embeddings_dim=16, seq_len=16, hidden=32, 2 layers, kernel=9, out=5.
    B, E, L = 2, 16, 16
    HIDDEN, N_LAYERS, KERNEL, OUT_DIM = 32, 2, 9, 5

    key = jax.random.PRNGKey(0)
    k_x, k_p = jax.random.split(key)
    x = jax.random.normal(k_x, (B, E, L), jnp.float32)                   # [B, E, L] like PyTorch
    torch_params = make_torch_style_params(k_p, E, HIDDEN, N_LAYERS, KERNEL, OUT_DIM)
    params = prepare_params(torch_params, E, HIDDEN, N_LAYERS, KERNEL, OUT_DIM)

    logits = lstm_conv_forward(x, params)
    logits = jax.block_until_ready(logits)

    assert logits.shape == (B, OUT_DIM)
    assert bool(jnp.all(jnp.isfinite(logits)))
    print("KERNEL_OK")
</pallas_src>

<mosaic_0001>
module attributes {stable_mosaic.version = 11 : i64} {
  func.func @kernel(%arg0: memref<16x256xf32, #tpu.memory_space<vmem>>, %arg1: memref<256x16xf32, #tpu.memory_space<vmem>>, %arg2: memref<1x16xf32, #tpu.memory_space<vmem>>, %arg3: memref<16x128xf32, #tpu.memory_space<vmem>>, %arg4: memref<16x128xf32, #tpu.memory_space<vmem>>, %arg5: memref<1x128xf32, #tpu.memory_space<vmem>>, %arg6: memref<1x128xf32, #tpu.memory_space<vmem>>, %arg7: memref<64x256xf32, #tpu.memory_space<vmem>>, %arg8: memref<64x128xf32, #tpu.memory_space<vmem>>, %arg9: memref<64x128xf32, #tpu.memory_space<vmem>>, %arg10: memref<1x128xf32, #tpu.memory_space<vmem>>, %arg11: memref<1x128xf32, #tpu.memory_space<vmem>>, %arg12: memref<64x256xf32, #tpu.memory_space<vmem>>, %arg13: memref<64x32xf32, #tpu.memory_space<vmem>>, %arg14: memref<1x32xf32, #tpu.memory_space<vmem>>, %arg15: memref<32x5xf32, #tpu.memory_space<vmem>>, %arg16: memref<1x5xf32, #tpu.memory_space<vmem>>, %arg17: memref<2x5xf32, #tpu.memory_space<vmem>>) attributes {dimension_semantics = [], scalar_prefetch = 0 : i64, scratch_operands = 0 : i64, tpu.core_type = #tpu.core_type<tc>} {
    %c0 = arith.constant 0 : index
    %c0_0 = arith.constant 0 : index
    %0 = vector.load %arg0[%c0, %c0_0] : memref<16x256xf32, #tpu.memory_space<vmem>>, vector<16x256xf32>
    %c0_1 = arith.constant 0 : index
    %c0_2 = arith.constant 0 : index
    %1 = vector.load %arg1[%c0_1, %c0_2] : memref<256x16xf32, #tpu.memory_space<vmem>>, vector<256x16xf32>
    %cst = arith.constant dense<0.000000e+00> : vector<16x16xf32>
    %2 = tpu.matmul %0, %1, %cst {dimension_numbers = #tpu.dot_dimension_numbers<[1], [0], [0], [1], [0, 0, 1, 1], [], []>} : vector<16x256xf32>, vector<256x16xf32>, vector<16x16xf32> -> vector<16x16xf32>
    %c0_3 = arith.constant 0 : index
    %c0_4 = arith.constant 0 : index
    %3 = vector.load %arg2[%c0_3, %c0_4] : memref<1x16xf32, #tpu.memory_space<vmem>>, vector<1x16xf32>
    %4 = vector.broadcast %3 : vector<1x16xf32> to vector<16x16xf32>
    %5 = arith.addf %2, %4 : vector<16x16xf32>
    %cst_5 = arith.constant 0.000000e+00 : f32
    %6 = vector.broadcast %cst_5 : f32 to vector<16x16xf32>
    %7 = arith.maximumf %5, %6 : vector<16x16xf32>
    %8 = tpu.iota {dimensions = array<i32: 1>} : vector<2x128xi32>
    %c64_i32 = arith.constant 64 : i32
    %9 = vector.broadcast %c64_i32 : i32 to vector<2x128xi32>
    %10 = arith.cmpi sge, %8, %9 : vector<2x128xi32>
    %c96_i32 = arith.constant 96 : i32
    %11 = vector.broadcast %c96_i32 : i32 to vector<2x128xi32>
    %12 = arith.cmpi slt, %8, %11 : vector<2x128xi32>
    %13 = arith.andi %10, %12 : vector<2x128xi1>
    %c0_6 = arith.constant 0 : index
    %c0_7 = arith.constant 0 : index
    %14 = vector.load %arg5[%c0_6, %c0_7] : memref<1x128xf32, #tpu.memory_space<vmem>>, vector<1x128xf32>
    %c0_8 = arith.constant 0 : index
    %c0_9 = arith.constant 0 : index
    %15 = vector.load %arg6[%c0_8, %c0_9] : memref<1x128xf32, #tpu.memory_space<vmem>>, vector<1x128xf32>
    %c0_10 = arith.constant 0 : index
    %c0_11 = arith.constant 0 : index
    %16 = vector.load %arg3[%c0_10, %c0_11] : memref<16x128xf32, #tpu.memory_space<vmem>>, vector<16x128xf32>
    %cst_12 = arith.constant dense<0.000000e+00> : vector<16x128xf32>
    %17 = tpu.matmul %7, %16, %cst_12 {dimension_numbers = #tpu.dot_dimension_numbers<[1], [0], [0], [1], [0, 0, 1, 1], [], []>} : vector<16x16xf32>, vector<16x128xf32>, vector<16x128xf32> -> vector<16x128xf32>
    %18 = vector.broadcast %14 : vector<1x128xf32> to vector<16x128xf32>
    %19 = arith.addf %17, %18 : vector<16x128xf32>
    %20 = vector.shape_cast %19 : vector<16x128xf32> to vector<8x2x128xf32>
    %c0_13 = arith.constant 0 : index
    %c0_14 = arith.constant 0 : index
    %21 = vector.load %arg4[%c0_13, %c0_14] : memref<16x128xf32, #tpu.memory_space<vmem>>, vector<16x128xf32>
    %cst_15 = arith.constant dense<0.000000e+00> : vector<16x128xf32>
    %22 = tpu.matmul %7, %21, %cst_15 {dimension_numbers = #tpu.dot_dimension_numbers<[1], [0], [0], [1], [0, 0, 1, 1], [], []>} : vector<16x16xf32>, vector<16x128xf32>, vector<16x128xf32> -> vector<16x128xf32>
    %23 = vector.broadcast %15 : vector<1x128xf32> to vector<16x128xf32>
    %24 = arith.addf %22, %23 : vector<16x128xf32>
    %25 = vector.shape_cast %24 : vector<16x128xf32> to vector<8x2x128xf32>
    %c0_16 = arith.constant 0 : index
    %c0_17 = arith.constant 0 : index
    %26 = vector.load %arg7[%c0_16, %c0_17] : memref<64x256xf32, #tpu.memory_space<vmem>>, vector<64x256xf32>
    %cst_18 = arith.constant 0.000000e+00 : f32
    %27 = vector.broadcast %cst_18 : f32 to vector<2x32xf32>
    %cst_19 = arith.constant 0.000000e+00 : f32
    %28 = vector.broadcast %cst_19 : f32 to vector<2x32xf32>
    %cst_20 = arith.constant 0.000000e+00 : f32
    %29 = vector.broadcast %cst_20 : f32 to vector<2x32xf32>
    %cst_21 = arith.constant 0.000000e+00 : f32
    %30 = vector.broadcast %cst_21 : f32 to vector<2x32xf32>
    %31 = tpu.concatenate %27, %29 in 1 : vector<2x32xf32>, vector<2x32xf32> -> vector<2x64xf32>
    %cst_22 = arith.constant dense<0.000000e+00> : vector<2x256xf32>
    %32 = tpu.matmul %31, %26, %cst_22 {dimension_numbers = #tpu.dot_dimension_numbers<[1], [0], [0], [1], [0, 0, 1, 1], [], []>} : vector<2x64xf32>, vector<64x256xf32>, vector<2x256xf32> -> vector<2x256xf32>
    %33 = vector.extract_strided_slice %20 {offsets = [0, 0, 0], sizes = [1, 2, 128], strides = [1, 1, 1]} : vector<8x2x128xf32> to vector<1x2x128xf32>
    %34 = vector.shape_cast %33 : vector<1x2x128xf32> to vector<2x128xf32>
    %35 = vector.extract_strided_slice %32 {offsets = [0, 0], sizes = [2, 128], strides = [1, 1]} : vector<2x256xf32> to vector<2x128xf32>
    %36 = arith.addf %34, %35 : vector<2x128xf32>
    %37 = vector.extract_strided_slice %25 {offsets = [7, 0, 0], sizes = [1, 2, 128], strides = [1, 1, 1]} : vector<8x2x128xf32> to vector<1x2x128xf32>
    %38 = vector.shape_cast %37 : vector<1x2x128xf32> to vector<2x128xf32>
    %39 = vector.extract_strided_slice %32 {offsets = [0, 128], sizes = [2, 128], strides = [1, 1]} : vector<2x256xf32> to vector<2x128xf32>
    %40 = arith.addf %38, %39 : vector<2x128xf32>
    %41 = arith.negf %36 : vector<2x128xf32>
    %42 = math.exp %41 : vector<2x128xf32>
    %cst_23 = arith.constant 1.000000e+00 : f32
    %43 = vector.broadcast %cst_23 : f32 to vector<2x128xf32>
    %44 = arith.addf %43, %42 : vector<2x128xf32>
    %45 = arith.divf %43, %44 : vector<2x128xf32>
    %46 = math.tanh %36 : vector<2x128xf32>
    %47 = arith.select %13, %46, %45 : vector<2x128xi1>, vector<2x128xf32>
    %48 = vector.extract_strided_slice %47 {offsets = [0, 0], sizes = [2, 32], strides = [1, 1]} : vector<2x128xf32> to vector<2x32xf32>
    %49 = vector.extract_strided_slice %47 {offsets = [0, 32], sizes = [2, 32], strides = [1, 1]} : vector<2x128xf32> to vector<2x32xf32>
    %50 = vector.extract_strided_slice %47 {offsets = [0, 64], sizes = [2, 32], strides = [1, 1]} : vector<2x128xf32> to vector<2x32xf32>
    %51 = vector.extract_strided_slice %47 {offsets = [0, 96], sizes = [2, 32], strides = [1, 1]} : vector<2x128xf32> to vector<2x32xf32>
    %52 = arith.mulf %49, %28 : vector<2x32xf32>
    %53 = arith.mulf %48, %50 : vector<2x32xf32>
    %54 = arith.addf %52, %53 : vector<2x32xf32>
    %55 = math.tanh %54 : vector<2x32xf32>
    %56 = arith.mulf %51, %55 : vector<2x32xf32>
    %57 = arith.negf %40 : vector<2x128xf32>
    %58 = math.exp %57 : vector<2x128xf32>
    %cst_24 = arith.constant 1.000000e+00 : f32
    %59 = vector.broadcast %cst_24 : f32 to vector<2x128xf32>
    %60 = arith.addf %59, %58 : vector<2x128xf32>
    %61 = arith.divf %59, %60 : vector<2x128xf32>
    %62 = math.tanh %40 : vector<2x128xf32>
    %63 = arith.select %13, %62, %61 : vector<2x128xi1>, vector<2x128xf32>
    %64 = vector.extract_strided_slice %63 {offsets = [0, 0], sizes = [2, 32], strides = [1, 1]} : vector<2x128xf32> to vector<2x32xf32>
    %65 = vector.extract_strided_slice %63 {offsets = [0, 32], sizes = [2, 32], strides = [1, 1]} : vector<2x128xf32> to vector<2x32xf32>
    %66 = vector.extract_strided_slice %63 {offsets = [0, 64], sizes = [2, 32], strides = [1, 1]} : vector<2x128xf32> to vector<2x32xf32>
    %67 = vector.extract_strided_slice %63 {offsets = [0, 96], sizes = [2, 32], strides = [1, 1]} : vector<2x128xf32> to vector<2x32xf32>
    %68 = arith.mulf %65, %30 : vector<2x32xf32>
    %69 = arith.mulf %64, %66 : vector<2x32xf32>
    %70 = arith.addf %68, %69 : vector<2x32xf32>
    %71 = math.tanh %70 : vector<2x32xf32>
    %72 = arith.mulf %67, %71 : vector<2x32xf32>
    %73 = tpu.concatenate %56, %72 in 1 : vector<2x32xf32>, vector<2x32xf32> -> vector<2x64xf32>
    %cst_25 = arith.constant dense<0.000000e+00> : vector<2x256xf32>
    %74 = tpu.matmul %73, %26, %cst_25 {dimension_numbers = #tpu.dot_dimension_numbers<[1], [0], [0], [1], [0, 0, 1, 1], [], []>} : vector<2x64xf32>, vector<64x256xf32>, vector<2x256xf32> -> vector<2x256xf32>
    %75 = vector.extract_strided_slice %20 {offsets = [1, 0, 0], sizes = [1, 2, 128], strides = [1, 1, 1]} : vector<8x2x128xf32> to vector<1x2x128xf32>
    %76 = vector.shape_cast %75 : vector<1x2x128xf32> to vector<2x128xf32>
    %77 = vector.extract_strided_slice %74 {offsets = [0, 0], sizes = [2, 128], strides = [1, 1]} : vector<2x256xf32> to vector<2x128xf32>
    %78 = arith.addf %76, %77 : vector<2x128xf32>
    %79 = vector.extract_strided_slice %25 {offsets = [6, 0, 0], sizes = [1, 2, 128], strides = [1, 1, 1]} : vector<8x2x128xf32> to vector<1x2x128xf32>
    %80 = vector.shape_cast %79 : vector<1x2x128xf32> to vector<2x128xf32>
    %81 = vector.extract_strided_slice %74 {offsets = [0, 128], sizes = [2, 128], strides = [1, 1]} : vector<2x256xf32> to vector<2x128xf32>
    %82 = arith.addf %80, %81 : vector<2x128xf32>
    %83 = arith.negf %78 : vector<2x128xf32>
    %84 = math.exp %83 : vector<2x128xf32>
    %cst_26 = arith.constant 1.000000e+00 : f32
    %85 = vector.broadcast %cst_26 : f32 to vector<2x128xf32>
    %86 = arith.addf %85, %84 : vector<2x128xf32>
    %87 = arith.divf %85, %86 : vector<2x128xf32>
    %88 = math.tanh %78 : vector<2x128xf32>
    %89 = arith.select %13, %88, %87 : vector<2x128xi1>, vector<2x128xf32>
    %90 = vector.extract_strided_slice %89 {offsets = [0, 0], sizes = [2, 32], strides = [1, 1]} : vector<2x128xf32> to vector<2x32xf32>
    %91 = vector.extract_strided_slice %89 {offsets = [0, 32], sizes = [2, 32], strides = [1, 1]} : vector<2x128xf32> to vector<2x32xf32>
    %92 = vector.extract_strided_slice %89 {offsets = [0, 64], sizes = [2, 32], strides = [1, 1]} : vector<2x128xf32> to vector<2x32xf32>
    %93 = vector.extract_strided_slice %89 {offsets = [0, 96], sizes = [2, 32], strides = [1, 1]} : vector<2x128xf32> to vector<2x32xf32>
    %94 = arith.mulf %91, %54 : vector<2x32xf32>
    %95 = arith.mulf %90, %92 : vector<2x32xf32>
    %96 = arith.addf %94, %95 : vector<2x32xf32>
    %97 = math.tanh %96 : vector<2x32xf32>
    %98 = arith.mulf %93, %97 : vector<2x32xf32>
    %99 = arith.negf %82 : vector<2x128xf32>
    %100 = math.exp %99 : vector<2x128xf32>
    %cst_27 = arith.constant 1.000000e+00 : f32
    %101 = vector.broadcast %cst_27 : f32 to vector<2x128xf32>
    %102 = arith.addf %101, %100 : vector<2x128xf32>
    %103 = arith.divf %101, %102 : vector<2x128xf32>
    %104 = math.tanh %82 : vector<2x128xf32>
    %105 = arith.select %13, %104, %103 : vector<2x128xi1>, vector<2x128xf32>
    %106 = vector.extract_strided_slice %105 {offsets = [0, 0], sizes = [2, 32], strides = [1, 1]} : vector<2x128xf32> to vector<2x32xf32>
    %107 = vector.extract_strided_slice %105 {offsets = [0, 32], sizes = [2, 32], strides = [1, 1]} : vector<2x128xf32> to vector<2x32xf32>
    %108 = vector.extract_strided_slice %105 {offsets = [0, 64], sizes = [2, 32], strides = [1, 1]} : vector<2x128xf32> to vector<2x32xf32>
    %109 = vector.extract_strided_slice %105 {offsets = [0, 96], sizes = [2, 32], strides = [1, 1]} : vector<2x128xf32> to vector<2x32xf32>
    %110 = arith.mulf %107, %70 : vector<2x32xf32>
    %111 = arith.mulf %106, %108 : vector<2x32xf32>
    %112 = arith.addf %110, %111 : vector<2x32xf32>
    %113 = math.tanh %112 : vector<2x32xf32>
    %114 = arith.mulf %109, %113 : vector<2x32xf32>
    %115 = tpu.concatenate %98, %114 in 1 : vector<2x32xf32>, vector<2x32xf32> -> vector<2x64xf32>
    %cst_28 = arith.constant dense<0.000000e+00> : vector<2x256xf32>
    %116 = tpu.matmul %115, %26, %cst_28 {dimension_numbers = #tpu.dot_dimension_numbers<[1], [0], [0], [1], [0, 0, 1, 1], [], []>} : vector<2x64xf32>, vector<64x256xf32>, vector<2x256xf32> -> vector<2x256xf32>
    %117 = vector.extract_strided_slice %20 {offsets = [2, 0, 0], sizes = [1, 2, 128], strides = [1, 1, 1]} : vector<8x2x128xf32> to vector<1x2x128xf32>
    %118 = vector.shape_cast %117 : vector<1x2x128xf32> to vector<2x128xf32>
    %119 = vector.extract_strided_slice %116 {offsets = [0, 0], sizes = [2, 128], strides = [1, 1]} : vector<2x256xf32> to vector<2x128xf32>
    %120 = arith.addf %118, %119 : vector<2x128xf32>
    %121 = vector.extract_strided_slice %25 {offsets = [5, 0, 0], sizes = [1, 2, 128], strides = [1, 1, 1]} : vector<8x2x128xf32> to vector<1x2x128xf32>
    %122 = vector.shape_cast %121 : vector<1x2x128xf32> to vector<2x128xf32>
    %123 = vector.extract_strided_slice %116 {offsets = [0, 128], sizes = [2, 128], strides = [1, 1]} : vector<2x256xf32> to vector<2x128xf32>
    %124 = arith.addf %122, %123 : vector<2x128xf32>
    %125 = arith.negf %120 : vector<2x128xf32>
    %126 = math.exp %125 : vector<2x128xf32>
    %cst_29 = arith.constant 1.000000e+00 : f32
    %127 = vector.broadcast %cst_29 : f32 to vector<2x128xf32>
    %128 = arith.addf %127, %126 : vector<2x128xf32>
    %129 = arith.divf %127, %128 : vector<2x128xf32>
    %130 = math.tanh %120 : vector<2x128xf32>
    %131 = arith.select %13, %130, %129 : vector<2x128xi1>, vector<2x128xf32>
    %132 = vector.extract_strided_slice %131 {offsets = [0, 0], sizes = [2, 32], strides = [1, 1]} : vector<2x128xf32> to vector<2x32xf32>
    %133 = vector.extract_strided_slice %131 {offsets = [0, 32], sizes = [2, 32], strides = [1, 1]} : vector<2x128xf32> to vector<2x32xf32>
    %134 = vector.extract_strided_slice %131 {offsets = [0, 64], sizes = [2, 32], strides = [1, 1]} : vector<2x128xf32> to vector<2x32xf32>
    %135 = vector.extract_strided_slice %131 {offsets = [0, 96], sizes = [2, 32], strides = [1, 1]} : vector<2x128xf32> to vector<2x32xf32>
    %136 = arith.mulf %133, %96 : vector<2x32xf32>
    %137 = arith.mulf %132, %134 : vector<2x32xf32>
    %138 = arith.addf %136, %137 : vector<2x32xf32>
    %139 = math.tanh %138 : vector<2x32xf32>
    %140 = arith.mulf %135, %139 : vector<2x32xf32>
    %141 = arith.negf %124 : vector<2x128xf32>
    %142 = math.exp %141 : vector<2x128xf32>
    %cst_30 = arith.constant 1.000000e+00 : f32
    %143 = vector.broadcast %cst_30 : f32 to vector<2x128xf32>
    %144 = arith.addf %143, %142 : vector<2x128xf32>
    %145 = arith.divf %143, %144 : vector<2x128xf32>
    %146 = math.tanh %124 : vector<2x128xf32>
    %147 = arith.select %13, %146, %145 : vector<2x128xi1>, vector<2x128xf32>
    %148 = vector.extract_strided_slice %147 {offsets = [0, 0], sizes = [2, 32], strides = [1, 1]} : vector<2x128xf32> to vector<2x32xf32>
    %149 = vector.extract_strided_slice %147 {offsets = [0, 32], sizes = [2, 32], strides = [1, 1]} : vector<2x128xf32> to vector<2x32xf32>
    %150 = vector.extract_strided_slice %147 {offsets = [0, 64], sizes = [2, 32], strides = [1, 1]} : vector<2x128xf32> to vector<2x32xf32>
    %151 = vector.extract_strided_slice %147 {offsets = [0, 96], sizes = [2, 32], strides = [1, 1]} : vector<2x128xf32> to vector<2x32xf32>
    %152 = arith.mulf %149, %112 : vector<2x32xf32>
    %153 = arith.mulf %148, %150 : vector<2x32xf32>
    %154 = arith.addf %152, %153 : vector<2x32xf32>
    %155 = math.tanh %154 : vector<2x32xf32>
    %156 = arith.mulf %151, %155 : vector<2x32xf32>
    %157 = tpu.concatenate %140, %156 in 1 : vector<2x32xf32>, vector<2x32xf32> -> vector<2x64xf32>
    %cst_31 = arith.constant dense<0.000000e+00> : vector<2x256xf32>
    %158 = tpu.matmul %157, %26, %cst_31 {dimension_numbers = #tpu.dot_dimension_numbers<[1], [0], [0], [1], [0, 0, 1, 1], [], []>} : vector<2x64xf32>, vector<64x256xf32>, vector<2x256xf32> -> vector<2x256xf32>
    %159 = vector.extract_strided_slice %20 {offsets = [3, 0, 0], sizes = [1, 2, 128], strides = [1, 1, 1]} : vector<8x2x128xf32> to vector<1x2x128xf32>
    %160 = vector.shape_cast %159 : vector<1x2x128xf32> to vector<2x128xf32>
    %161 = vector.extract_strided_slice %158 {offsets = [0, 0], sizes = [2, 128], strides = [1, 1]} : vector<2x256xf32> to vector<2x128xf32>
    %162 = arith.addf %160, %161 : vector<2x128xf32>
    %163 = vector.extract_strided_slice %25 {offsets = [4, 0, 0], sizes = [1, 2, 128], strides = [1, 1, 1]} : vector<8x2x128xf32> to vector<1x2x128xf32>
    %164 = vector.shape_cast %163 : vector<1x2x128xf32> to vector<2x128xf32>
    %165 = vector.extract_strided_slice %158 {offsets = [0, 128], sizes = [2, 128], strides = [1, 1]} : vector<2x256xf32> to vector<2x128xf32>
    %166 = arith.addf %164, %165 : vector<2x128xf32>
    %167 = arith.negf %162 : vector<2x128xf32>
    %168 = math.exp %167 : vector<2x128xf32>
    %cst_32 = arith.constant 1.000000e+00 : f32
    %169 = vector.broadcast %cst_32 : f32 to vector<2x128xf32>
    %170 = arith.addf %169, %168 : vector<2x128xf32>
    %171 = arith.divf %169, %170 : vector<2x128xf32>
    %172 = math.tanh %162 : vector<2x128xf32>
    %173 = arith.select %13, %172, %171 : vector<2x128xi1>, vector<2x128xf32>
    %174 = vector.extract_strided_slice %173 {offsets = [0, 0], sizes = [2, 32], strides = [1, 1]} : vector<2x128xf32> to vector<2x32xf32>
    %175 = vector.extract_strided_slice %173 {offsets = [0, 32], sizes = [2, 32], strides = [1, 1]} : vector<2x128xf32> to vector<2x32xf32>
    %176 = vector.extract_strided_slice %173 {offsets = [0, 64], sizes = [2, 32], strides = [1, 1]} : vector<2x128xf32> to vector<2x32xf32>
    %177 = vector.extract_strided_slice %173 {offsets = [0, 96], sizes = [2, 32], strides = [1, 1]} : vector<2x128xf32> to vector<2x32xf32>
    %178 = arith.mulf %175, %138 : vector<2x32xf32>
    %179 = arith.mulf %174, %176 : vector<2x32xf32>
    %180 = arith.addf %178, %179 : vector<2x32xf32>
    %181 = math.tanh %180 : vector<2x32xf32>
    %182 = arith.mulf %177, %181 : vector<2x32xf32>
    %183 = arith.negf %166 : vector<2x128xf32>
    %184 = math.exp %183 : vector<2x128xf32>
    %cst_33 = arith.constant 1.000000e+00 : f32
    %185 = vector.broadcast %cst_33 : f32 to vector<2x128xf32>
    %186 = arith.addf %185, %184 : vector<2x128xf32>
    %187 = arith.divf %185, %186 : vector<2x128xf32>
    %188 = math.tanh %166 : vector<2x128xf32>
    %189 = arith.select %13, %188, %187 : vector<2x128xi1>, vector<2x128xf32>
    %190 = vector.extract_strided_slice %189 {offsets = [0, 0], sizes = [2, 32], strides = [1, 1]} : vector<2x128xf32> to vector<2x32xf32>
    %191 = vector.extract_strided_slice %189 {offsets = [0, 32], sizes = [2, 32], strides = [1, 1]} : vector<2x128xf32> to vector<2x32xf32>
    %192 = vector.extract_strided_slice %189 {offsets = [0, 64], sizes = [2, 32], strides = [1, 1]} : vector<2x128xf32> to vector<2x32xf32>
    %193 = vector.extract_strided_slice %189 {offsets = [0, 96], sizes = [2, 32], strides = [1, 1]} : vector<2x128xf32> to vector<2x32xf32>
    %194 = arith.mulf %191, %154 : vector<2x32xf32>
    %195 = arith.mulf %190, %192 : vector<2x32xf32>
    %196 = arith.addf %194, %195 : vector<2x32xf32>
    %197 = math.tanh %196 : vector<2x32xf32>
    %198 = arith.mulf %193, %197 : vector<2x32xf32>
    %199 = tpu.concatenate %182, %198 in 1 : vector<2x32xf32>, vector<2x32xf32> -> vector<2x64xf32>
    %cst_34 = arith.constant dense<0.000000e+00> : vector<2x256xf32>
    %200 = tpu.matmul %199, %26, %cst_34 {dimension_numbers = #tpu.dot_dimension_numbers<[1], [0], [0], [1], [0, 0, 1, 1], [], []>} : vector<2x64xf32>, vector<64x256xf32>, vector<2x256xf32> -> vector<2x256xf32>
    %201 = vector.extract_strided_slice %20 {offsets = [4, 0, 0], sizes = [1, 2, 128], strides = [1, 1, 1]} : vector<8x2x128xf32> to vector<1x2x128xf32>
    %202 = vector.shape_cast %201 : vector<1x2x128xf32> to vector<2x128xf32>
    %203 = vector.extract_strided_slice %200 {offsets = [0, 0], sizes = [2, 128], strides = [1, 1]} : vector<2x256xf32> to vector<2x128xf32>
    %204 = arith.addf %202, %203 : vector<2x128xf32>
    %205 = vector.extract_strided_slice %25 {offsets = [3, 0, 0], sizes = [1, 2, 128], strides = [1, 1, 1]} : vector<8x2x128xf32> to vector<1x2x128xf32>
    %206 = vector.shape_cast %205 : vector<1x2x128xf32> to vector<2x128xf32>
    %207 = vector.extract_strided_slice %200 {offsets = [0, 128], sizes = [2, 128], strides = [1, 1]} : vector<2x256xf32> to vector<2x128xf32>
    %208 = arith.addf %206, %207 : vector<2x128xf32>
    %209 = arith.negf %204 : vector<2x128xf32>
    %210 = math.exp %209 : vector<2x128xf32>
    %cst_35 = arith.constant 1.000000e+00 : f32
    %211 = vector.broadcast %cst_35 : f32 to vector<2x128xf32>
    %212 = arith.addf %211, %210 : vector<2x128xf32>
    %213 = arith.divf %211, %212 : vector<2x128xf32>
    %214 = math.tanh %204 : vector<2x128xf32>
    %215 = arith.select %13, %214, %213 : vector<2x128xi1>, vector<2x128xf32>
    %216 = vector.extract_strided_slice %215 {offsets = [0, 0], sizes = [2, 32], strides = [1, 1]} : vector<2x128xf32> to vector<2x32xf32>
    %217 = vector.extract_strided_slice %215 {offsets = [0, 32], sizes = [2, 32], strides = [1, 1]} : vector<2x128xf32> to vector<2x32xf32>
    %218 = vector.extract_strided_slice %215 {offsets = [0, 64], sizes = [2, 32], strides = [1, 1]} : vector<2x128xf32> to vector<2x32xf32>
    %219 = vector.extract_strided_slice %215 {offsets = [0, 96], sizes = [2, 32], strides = [1, 1]} : vector<2x128xf32> to vector<2x32xf32>
    %220 = arith.mulf %217, %180 : vector<2x32xf32>
    %221 = arith.mulf %216, %218 : vector<2x32xf32>
    %222 = arith.addf %220, %221 : vector<2x32xf32>
    %223 = math.tanh %222 : vector<2x32xf32>
    %224 = arith.mulf %219, %223 : vector<2x32xf32>
    %225 = arith.negf %208 : vector<2x128xf32>
    %226 = math.exp %225 : vector<2x128xf32>
    %cst_36 = arith.constant 1.000000e+00 : f32
    %227 = vector.broadcast %cst_36 : f32 to vector<2x128xf32>
    %228 = arith.addf %227, %226 : vector<2x128xf32>
    %229 = arith.divf %227, %228 : vector<2x128xf32>
    %230 = math.tanh %208 : vector<2x128xf32>
    %231 = arith.select %13, %230, %229 : vector<2x128xi1>, vector<2x128xf32>
    %232 = vector.extract_strided_slice %231 {offsets = [0, 0], sizes = [2, 32], strides = [1, 1]} : vector<2x128xf32> to vector<2x32xf32>
    %233 = vector.extract_strided_slice %231 {offsets = [0, 32], sizes = [2, 32], strides = [1, 1]} : vector<2x128xf32> to vector<2x32xf32>
    %234 = vector.extract_strided_slice %231 {offsets = [0, 64], sizes = [2, 32], strides = [1, 1]} : vector<2x128xf32> to vector<2x32xf32>
    %235 = vector.extract_strided_slice %231 {offsets = [0, 96], sizes = [2, 32], strides = [1, 1]} : vector<2x128xf32> to vector<2x32xf32>
    %236 = arith.mulf %233, %196 : vector<2x32xf32>
    %237 = arith.mulf %232, %234 : vector<2x32xf32>
    %238 = arith.addf %236, %237 : vector<2x32xf32>
    %239 = math.tanh %238 : vector<2x32xf32>
    %240 = arith.mulf %235, %239 : vector<2x32xf32>
    %241 = tpu.concatenate %224, %240 in 1 : vector<2x32xf32>, vector<2x32xf32> -> vector<2x64xf32>
    %cst_37 = arith.constant dense<0.000000e+00> : vector<2x256xf32>
    %242 = tpu.matmul %241, %26, %cst_37 {dimension_numbers = #tpu.dot_dimension_numbers<[1], [0], [0], [1], [0, 0, 1, 1], [], []>} : vector<2x64xf32>, vector<64x256xf32>, vector<2x256xf32> -> vector<2x256xf32>
    %243 = vector.extract_strided_slice %20 {offsets = [5, 0, 0], sizes = [1, 2, 128], strides = [1, 1, 1]} : vector<8x2x128xf32> to vector<1x2x128xf32>
    %244 = vector.shape_cast %243 : vector<1x2x128xf32> to vector<2x128xf32>
    %245 = vector.extract_strided_slice %242 {offsets = [0, 0], sizes = [2, 128], strides = [1, 1]} : vector<2x256xf32> to vector<2x128xf32>
    %246 = arith.addf %244, %245 : vector<2x128xf32>
    %247 = vector.extract_strided_slice %25 {offsets = [2, 0, 0], sizes = [1, 2, 128], strides = [1, 1, 1]} : vector<8x2x128xf32> to vector<1x2x128xf32>
    %248 = vector.shape_cast %247 : vector<1x2x128xf32> to vector<2x128xf32>
    %249 = vector.extract_strided_slice %242 {offsets = [0, 128], sizes = [2, 128], strides = [1, 1]} : vector<2x256xf32> to vector<2x128xf32>
    %250 = arith.addf %248, %249 : vector<2x128xf32>
    %251 = arith.negf %246 : vector<2x128xf32>
    %252 = math.exp %251 : vector<2x128xf32>
    %cst_38 = arith.constant 1.000000e+00 : f32
    %253 = vector.broadcast %cst_38 : f32 to vector<2x128xf32>
    %254 = arith.addf %253, %252 : vector<2x128xf32>
    %255 = arith.divf %253, %254 : vector<2x128xf32>
    %256 = math.tanh %246 : vector<2x128xf32>
    %257 = arith.select %13, %256, %255 : vector<2x128xi1>, vector<2x128xf32>
    %258 = vector.extract_strided_slice %257 {offsets = [0, 0], sizes = [2, 32], strides = [1, 1]} : vector<2x128xf32> to vector<2x32xf32>
    %259 = vector.extract_strided_slice %257 {offsets = [0, 32], sizes = [2, 32], strides = [1, 1]} : vector<2x128xf32> to vector<2x32xf32>
    %260 = vector.extract_strided_slice %257 {offsets = [0, 64], sizes = [2, 32], strides = [1, 1]} : vector<2x128xf32> to vector<2x32xf32>
    %261 = vector.extract_strided_slice %257 {offsets = [0, 96], sizes = [2, 32], strides = [1, 1]} : vector<2x128xf32> to vector<2x32xf32>
    %262 = arith.mulf %259, %222 : vector<2x32xf32>
    %263 = arith.mulf %258, %260 : vector<2x32xf32>
    %264 = arith.addf %262, %263 : vector<2x32xf32>
    %265 = math.tanh %264 : vector<2x32xf32>
    %266 = arith.mulf %261, %265 : vector<2x32xf32>
    %267 = arith.negf %250 : vector<2x128xf32>
    %268 = math.exp %267 : vector<2x128xf32>
    %cst_39 = arith.constant 1.000000e+00 : f32
    %269 = vector.broadcast %cst_39 : f32 to vector<2x128xf32>
    %270 = arith.addf %269, %268 : vector<2x128xf32>
    %271 = arith.divf %269, %270 : vector<2x128xf32>
    %272 = math.tanh %250 : vector<2x128xf32>
    %273 = arith.select %13, %272, %271 : vector<2x128xi1>, vector<2x128xf32>
    %274 = vector.extract_strided_slice %273 {offsets = [0, 0], sizes = [2, 32], strides = [1, 1]} : vector<2x128xf32> to vector<2x32xf32>
    %275 = vector.extract_strided_slice %273 {offsets = [0, 32], sizes = [2, 32], strides = [1, 1]} : vector<2x128xf32> to vector<2x32xf32>
    %276 = vector.extract_strided_slice %273 {offsets = [0, 64], sizes = [2, 32], strides = [1, 1]} : vector<2x128xf32> to vector<2x32xf32>
    %277 = vector.extract_strided_slice %273 {offsets = [0, 96], sizes = [2, 32], strides = [1, 1]} : vector<2x128xf32> to vector<2x32xf32>
    %278 = arith.mulf %275, %238 : vector<2x32xf32>
    %279 = arith.mulf %274, %276 : vector<2x32xf32>
    %280 = arith.addf %278, %279 : vector<2x32xf32>
    %281 = math.tanh %280 : vector<2x32xf32>
    %282 = arith.mulf %277, %281 : vector<2x32xf32>
    %283 = tpu.concatenate %266, %282 in 1 : vector<2x32xf32>, vector<2x32xf32> -> vector<2x64xf32>
    %cst_40 = arith.constant dense<0.000000e+00> : vector<2x256xf32>
    %284 = tpu.matmul %283, %26, %cst_40 {dimension_numbers = #tpu.dot_dimension_numbers<[1], [0], [0], [1], [0, 0, 1, 1], [], []>} : vector<2x64xf32>, vector<64x256xf32>, vector<2x256xf32> -> vector<2x256xf32>
    %285 = vector.extract_strided_slice %20 {offsets = [6, 0, 0], sizes = [1, 2, 128], strides = [1, 1, 1]} : vector<8x2x128xf32> to vector<1x2x128xf32>
    %286 = vector.shape_cast %285 : vector<1x2x128xf32> to vector<2x128xf32>
    %287 = vector.extract_strided_slice %284 {offsets = [0, 0], sizes = [2, 128], strides = [1, 1]} : vector<2x256xf32> to vector<2x128xf32>
    %288 = arith.addf %286, %287 : vector<2x128xf32>
    %289 = vector.extract_strided_slice %25 {offsets = [1, 0, 0], sizes = [1, 2, 128], strides = [1, 1, 1]} : vector<8x2x128xf32> to vector<1x2x128xf32>
    %290 = vector.shape_cast %289 : vector<1x2x128xf32> to vector<2x128xf32>
    %291 = vector.extract_strided_slice %284 {offsets = [0, 128], sizes = [2, 128], strides = [1, 1]} : vector<2x256xf32> to vector<2x128xf32>
    %292 = arith.addf %290, %291 : vector<2x128xf32>
    %293 = arith.negf %288 : vector<2x128xf32>
    %294 = math.exp %293 : vector<2x128xf32>
    %cst_41 = arith.constant 1.000000e+00 : f32
    %295 = vector.broadcast %cst_41 : f32 to vector<2x128xf32>
    %296 = arith.addf %295, %294 : vector<2x128xf32>
    %297 = arith.divf %295, %296 : vector<2x128xf32>
    %298 = math.tanh %288 : vector<2x128xf32>
    %299 = arith.select %13, %298, %297 : vector<2x128xi1>, vector<2x128xf32>
    %300 = vector.extract_strided_slice %299 {offsets = [0, 0], sizes = [2, 32], strides = [1, 1]} : vector<2x128xf32> to vector<2x32xf32>
    %301 = vector.extract_strided_slice %299 {offsets = [0, 32], sizes = [2, 32], strides = [1, 1]} : vector<2x128xf32> to vector<2x32xf32>
    %302 = vector.extract_strided_slice %299 {offsets = [0, 64], sizes = [2, 32], strides = [1, 1]} : vector<2x128xf32> to vector<2x32xf32>
    %303 = vector.extract_strided_slice %299 {offsets = [0, 96], sizes = [2, 32], strides = [1, 1]} : vector<2x128xf32> to vector<2x32xf32>
    %304 = arith.mulf %301, %264 : vector<2x32xf32>
    %305 = arith.mulf %300, %302 : vector<2x32xf32>
    %306 = arith.addf %304, %305 : vector<2x32xf32>
    %307 = math.tanh %306 : vector<2x32xf32>
    %308 = arith.mulf %303, %307 : vector<2x32xf32>
    %309 = arith.negf %292 : vector<2x128xf32>
    %310 = math.exp %309 : vector<2x128xf32>
    %cst_42 = arith.constant 1.000000e+00 : f32
    %311 = vector.broadcast %cst_42 : f32 to vector<2x128xf32>
    %312 = arith.addf %311, %310 : vector<2x128xf32>
    %313 = arith.divf %311, %312 : vector<2x128xf32>
    %314 = math.tanh %292 : vector<2x128xf32>
    %315 = arith.select %13, %314, %313 : vector<2x128xi1>, vector<2x128xf32>
    %316 = vector.extract_strided_slice %315 {offsets = [0, 0], sizes = [2, 32], strides = [1, 1]} : vector<2x128xf32> to vector<2x32xf32>
    %317 = vector.extract_strided_slice %315 {offsets = [0, 32], sizes = [2, 32], strides = [1, 1]} : vector<2x128xf32> to vector<2x32xf32>
    %318 = vector.extract_strided_slice %315 {offsets = [0, 64], sizes = [2, 32], strides = [1, 1]} : vector<2x128xf32> to vector<2x32xf32>
    %319 = vector.extract_strided_slice %315 {offsets = [0, 96], sizes = [2, 32], strides = [1, 1]} : vector<2x128xf32> to vector<2x32xf32>
    %320 = arith.mulf %317, %280 : vector<2x32xf32>
    %321 = arith.mulf %316, %318 : vector<2x32xf32>
    %322 = arith.addf %320, %321 : vector<2x32xf32>
    %323 = math.tanh %322 : vector<2x32xf32>
    %324 = arith.mulf %319, %323 : vector<2x32xf32>
    %325 = tpu.concatenate %308, %324 in 1 : vector<2x32xf32>, vector<2x32xf32> -> vector<2x64xf32>
    %cst_43 = arith.constant dense<0.000000e+00> : vector<2x256xf32>
    %326 = tpu.matmul %325, %26, %cst_43 {dimension_numbers = #tpu.dot_dimension_numbers<[1], [0], [0], [1], [0, 0, 1, 1], [], []>} : vector<2x64xf32>, vector<64x256xf32>, vector<2x256xf32> -> vector<2x256xf32>
    %327 = vector.extract_strided_slice %20 {offsets = [7, 0, 0], sizes = [1, 2, 128], strides = [1, 1, 1]} : vector<8x2x128xf32> to vector<1x2x128xf32>
    %328 = vector.shape_cast %327 : vector<1x2x128xf32> to vector<2x128xf32>
    %329 = vector.extract_strided_slice %326 {offsets = [0, 0], sizes = [2, 128], strides = [1, 1]} : vector<2x256xf32> to vector<2x128xf32>
    %330 = arith.addf %328, %329 : vector<2x128xf32>
    %331 = vector.extract_strided_slice %25 {offsets = [0, 0, 0], sizes = [1, 2, 128], strides = [1, 1, 1]} : vector<8x2x128xf32> to vector<1x2x128xf32>
    %332 = vector.shape_cast %331 : vector<1x2x128xf32> to vector<2x128xf32>
    %333 = vector.extract_strided_slice %326 {offsets = [0, 128], sizes = [2, 128], strides = [1, 1]} : vector<2x256xf32> to vector<2x128xf32>
    %334 = arith.addf %332, %333 : vector<2x128xf32>
    %335 = arith.negf %330 : vector<2x128xf32>
    %336 = math.exp %335 : vector<2x128xf32>
    %cst_44 = arith.constant 1.000000e+00 : f32
    %337 = vector.broadcast %cst_44 : f32 to vector<2x128xf32>
    %338 = arith.addf %337, %336 : vector<2x128xf32>
    %339 = arith.divf %337, %338 : vector<2x128xf32>
    %340 = math.tanh %330 : vector<2x128xf32>
    %341 = arith.select %13, %340, %339 : vector<2x128xi1>, vector<2x128xf32>
    %342 = vector.extract_strided_slice %341 {offsets = [0, 0], sizes = [2, 32], strides = [1, 1]} : vector<2x128xf32> to vector<2x32xf32>
    %343 = vector.extract_strided_slice %341 {offsets = [0, 32], sizes = [2, 32], strides = [1, 1]} : vector<2x128xf32> to vector<2x32xf32>
    %344 = vector.extract_strided_slice %341 {offsets = [0, 64], sizes = [2, 32], strides = [1, 1]} : vector<2x128xf32> to vector<2x32xf32>
    %345 = vector.extract_strided_slice %341 {offsets = [0, 96], sizes = [2, 32], strides = [1, 1]} : vector<2x128xf32> to vector<2x32xf32>
    %346 = arith.mulf %343, %306 : vector<2x32xf32>
    %347 = arith.mulf %342, %344 : vector<2x32xf32>
    %348 = arith.addf %346, %347 : vector<2x32xf32>
    %349 = math.tanh %348 : vector<2x32xf32>
    %350 = arith.mulf %345, %349 : vector<2x32xf32>
    %351 = arith.negf %334 : vector<2x128xf32>
    %352 = math.exp %351 : vector<2x128xf32>
    %cst_45 = arith.constant 1.000000e+00 : f32
    %353 = vector.broadcast %cst_45 : f32 to vector<2x128xf32>
    %354 = arith.addf %353, %352 : vector<2x128xf32>
    %355 = arith.divf %353, %354 : vector<2x128xf32>
    %356 = math.tanh %334 : vector<2x128xf32>
    %357 = arith.select %13, %356, %355 : vector<2x128xi1>, vector<2x128xf32>
    %358 = vector.extract_strided_slice %357 {offsets = [0, 0], sizes = [2, 32], strides = [1, 1]} : vector<2x128xf32> to vector<2x32xf32>
    %359 = vector.extract_strided_slice %357 {offsets = [0, 32], sizes = [2, 32], strides = [1, 1]} : vector<2x128xf32> to vector<2x32xf32>
    %360 = vector.extract_strided_slice %357 {offsets = [0, 64], sizes = [2, 32], strides = [1, 1]} : vector<2x128xf32> to vector<2x32xf32>
    %361 = vector.extract_strided_slice %357 {offsets = [0, 96], sizes = [2, 32], strides = [1, 1]} : vector<2x128xf32> to vector<2x32xf32>
    %362 = arith.mulf %359, %322 : vector<2x32xf32>
    %363 = arith.mulf %358, %360 : vector<2x32xf32>
    %364 = arith.addf %362, %363 : vector<2x32xf32>
    %365 = math.tanh %364 : vector<2x32xf32>
    %366 = arith.mulf %361, %365 : vector<2x32xf32>
    %367 = vector.shape_cast %56 : vector<2x32xf32> to vector<1x2x32xf32>
    %368 = vector.shape_cast %98 : vector<2x32xf32> to vector<1x2x32xf32>
    %369 = vector.shape_cast %140 : vector<2x32xf32> to vector<1x2x32xf32>
    %370 = vector.shape_cast %182 : vector<2x32xf32> to vector<1x2x32xf32>
    %371 = vector.shape_cast %224 : vector<2x32xf32> to vector<1x2x32xf32>
    %372 = vector.shape_cast %266 : vector<2x32xf32> to vector<1x2x32xf32>
    %373 = vector.shape_cast %308 : vector<2x32xf32> to vector<1x2x32xf32>
    %374 = vector.shape_cast %350 : vector<2x32xf32> to vector<1x2x32xf32>
    %375 = tpu.concatenate %367, %368, %369, %370, %371, %372, %373, %374 in 0 : vector<1x2x32xf32>, vector<1x2x32xf32>, vector<1x2x32xf32>, vector<1x2x32xf32>, vector<1x2x32xf32>, vector<1x2x32xf32>, vector<1x2x32xf32>, vector<1x2x32xf32> -> vector<8x2x32xf32>
    %376 = vector.shape_cast %375 : vector<8x2x32xf32> to vector<16x32xf32>
    %377 = vector.shape_cast %366 : vector<2x32xf32> to vector<1x2x32xf32>
    %378 = vector.shape_cast %324 : vector<2x32xf32> to vector<1x2x32xf32>
    %379 = vector.shape_cast %282 : vector<2x32xf32> to vector<1x2x32xf32>
    %380 = vector.shape_cast %240 : vector<2x32xf32> to vector<1x2x32xf32>
    %381 = vector.shape_cast %198 : vector<2x32xf32> to vector<1x2x32xf32>
    %382 = vector.shape_cast %156 : vector<2x32xf32> to vector<1x2x32xf32>
    %383 = vector.shape_cast %114 : vector<2x32xf32> to vector<1x2x32xf32>
    %384 = vector.shape_cast %72 : vector<2x32xf32> to vector<1x2x32xf32>
    %385 = tpu.concatenate %377, %378, %379, %380, %381, %382, %383, %384 in 0 : vector<1x2x32xf32>, vector<1x2x32xf32>, vector<1x2x32xf32>, vector<1x2x32xf32>, vector<1x2x32xf32>, vector<1x2x32xf32>, vector<1x2x32xf32>, vector<1x2x32xf32> -> vector<8x2x32xf32>
    %386 = vector.shape_cast %385 : vector<8x2x32xf32> to vector<16x32xf32>
    %c0_46 = arith.constant 0 : index
    %c0_47 = arith.constant 0 : index
    %387 = vector.load %arg10[%c0_46, %c0_47] : memref<1x128xf32, #tpu.memory_space<vmem>>, vector<1x128xf32>
    %c0_48 = arith.constant 0 : index
    %c0_49 = arith.constant 0 : index
    %388 = vector.load %arg11[%c0_48, %c0_49] : memref<1x128xf32, #tpu.memory_space<vmem>>, vector<1x128xf32>
    %c0_50 = arith.constant 0 : index
    %c0_51 = arith.constant 0 : index
    %389 = vector.load %arg8[%c0_50, %c0_51] : memref<64x128xf32, #tpu.memory_space<vmem>>, vector<32x128xf32>
    %c32 = arith.constant 32 : index
    %c0_52 = arith.constant 0 : index
    %390 = vector.load %arg8[%c32, %c0_52] : memref<64x128xf32, #tpu.memory_space<vmem>>, vector<32x128xf32>
    %c0_53 = arith.constant 0 : index
    %c0_54 = arith.constant 0 : index
    %391 = vector.load %arg9[%c0_53, %c0_54] : memref<64x128xf32, #tpu.memory_space<vmem>>, vector<32x128xf32>
    %c32_55 = arith.constant 32 : index
    %c0_56 = arith.constant 0 : index
    %392 = vector.load %arg9[%c32_55, %c0_56] : memref<64x128xf32, #tpu.memory_space<vmem>>, vector<32x128xf32>
    %cst_57 = arith.constant dense<0.000000e+00> : vector<16x128xf32>
    %393 = tpu.matmul %376, %389, %cst_57 {dimension_numbers = #tpu.dot_dimension_numbers<[1], [0], [0], [1], [0, 0, 1, 1], [], []>} : vector<16x32xf32>, vector<32x128xf32>, vector<16x128xf32> -> vector<16x128xf32>
    %cst_58 = arith.constant dense<0.000000e+00> : vector<16x128xf32>
    %394 = tpu.matmul %386, %390, %cst_58 {dimension_numbers = #tpu.dot_dimension_numbers<[1], [0], [0], [1], [0, 0, 1, 1], [], []>} : vector<16x32xf32>, vector<32x128xf32>, vector<16x128xf32> -> vector<16x128xf32>
    %395 = arith.addf %393, %394 : vector<16x128xf32>
    %396 = vector.broadcast %387 : vector<1x128xf32> to vector<16x128xf32>
    %397 = arith.addf %395, %396 : vector<16x128xf32>
    %398 = vector.shape_cast %397 : vector<16x128xf32> to vector<8x2x128xf32>
    %cst_59 = arith.constant dense<0.000000e+00> : vector<16x128xf32>
    %399 = tpu.matmul %376, %391, %cst_59 {dimension_numbers = #tpu.dot_dimension_numbers<[1], [0], [0], [1], [0, 0, 1, 1], [], []>} : vector<16x32xf32>, vector<32x128xf32>, vector<16x128xf32> -> vector<16x128xf32>
    %cst_60 = arith.constant dense<0.000000e+00> : vector<16x128xf32>
    %400 = tpu.matmul %386, %392, %cst_60 {dimension_numbers = #tpu.dot_dimension_numbers<[1], [0], [0], [1], [0, 0, 1, 1], [], []>} : vector<16x32xf32>, vector<32x128xf32>, vector<16x128xf32> -> vector<16x128xf32>
    %401 = arith.addf %399, %400 : vector<16x128xf32>
    %402 = vector.broadcast %388 : vector<1x128xf32> to vector<16x128xf32>
    %403 = arith.addf %401, %402 : vector<16x128xf32>
    %404 = vector.shape_cast %403 : vector<16x128xf32> to vector<8x2x128xf32>
    %c0_61 = arith.constant 0 : index
    %c0_62 = arith.constant 0 : index
    %405 = vector.load %arg12[%c0_61, %c0_62] : memref<64x256xf32, #tpu.memory_space<vmem>>, vector<64x256xf32>
    %cst_63 = arith.constant 0.000000e+00 : f32
    %406 = vector.broadcast %cst_63 : f32 to vector<2x32xf32>
    %cst_64 = arith.constant 0.000000e+00 : f32
    %407 = vector.broadcast %cst_64 : f32 to vector<2x32xf32>
    %cst_65 = arith.constant 0.000000e+00 : f32
    %408 = vector.broadcast %cst_65 : f32 to vector<2x32xf32>
    %cst_66 = arith.constant 0.000000e+00 : f32
    %409 = vector.broadcast %cst_66 : f32 to vector<2x32xf32>
    %410 = tpu.concatenate %406, %408 in 1 : vector<2x32xf32>, vector<2x32xf32> -> vector<2x64xf32>
    %cst_67 = arith.constant dense<0.000000e+00> : vector<2x256xf32>
    %411 = tpu.matmul %410, %405, %cst_67 {dimension_numbers = #tpu.dot_dimension_numbers<[1], [0], [0], [1], [0, 0, 1, 1], [], []>} : vector<2x64xf32>, vector<64x256xf32>, vector<2x256xf32> -> vector<2x256xf32>
    %412 = vector.extract_strided_slice %398 {offsets = [0, 0, 0], sizes = [1, 2, 128], strides = [1, 1, 1]} : vector<8x2x128xf32> to vector<1x2x128xf32>
    %413 = vector.shape_cast %412 : vector<1x2x128xf32> to vector<2x128xf32>
    %414 = vector.extract_strided_slice %411 {offsets = [0, 0], sizes = [2, 128], strides = [1, 1]} : vector<2x256xf32> to vector<2x128xf32>
    %415 = arith.addf %413, %414 : vector<2x128xf32>
    %416 = vector.extract_strided_slice %404 {offsets = [7, 0, 0], sizes = [1, 2, 128], strides = [1, 1, 1]} : vector<8x2x128xf32> to vector<1x2x128xf32>
    %417 = vector.shape_cast %416 : vector<1x2x128xf32> to vector<2x128xf32>
    %418 = vector.extract_strided_slice %411 {offsets = [0, 128], sizes = [2, 128], strides = [1, 1]} : vector<2x256xf32> to vector<2x128xf32>
    %419 = arith.addf %417, %418 : vector<2x128xf32>
    %420 = arith.negf %415 : vector<2x128xf32>
    %421 = math.exp %420 : vector<2x128xf32>
    %cst_68 = arith.constant 1.000000e+00 : f32
    %422 = vector.broadcast %cst_68 : f32 to vector<2x128xf32>
    %423 = arith.addf %422, %421 : vector<2x128xf32>
    %424 = arith.divf %422, %423 : vector<2x128xf32>
    %425 = math.tanh %415 : vector<2x128xf32>
    %426 = arith.select %13, %425, %424 : vector<2x128xi1>, vector<2x128xf32>
    %427 = vector.extract_strided_slice %426 {offsets = [0, 0], sizes = [2, 32], strides = [1, 1]} : vector<2x128xf32> to vector<2x32xf32>
    %428 = vector.extract_strided_slice %426 {offsets = [0, 32], sizes = [2, 32], strides = [1, 1]} : vector<2x128xf32> to vector<2x32xf32>
    %429 = vector.extract_strided_slice %426 {offsets = [0, 64], sizes = [2, 32], strides = [1, 1]} : vector<2x128xf32> to vector<2x32xf32>
    %430 = vector.extract_strided_slice %426 {offsets = [0, 96], sizes = [2, 32], strides = [1, 1]} : vector<2x128xf32> to vector<2x32xf32>
    %431 = arith.mulf %428, %407 : vector<2x32xf32>
    %432 = arith.mulf %427, %429 : vector<2x32xf32>
    %433 = arith.addf %431, %432 : vector<2x32xf32>
    %434 = math.tanh %433 : vector<2x32xf32>
    %435 = arith.mulf %430, %434 : vector<2x32xf32>
    %436 = arith.negf %419 : vector<2x128xf32>
    %437 = math.exp %436 : vector<2x128xf32>
    %cst_69 = arith.constant 1.000000e+00 : f32
    %438 = vector.broadcast %cst_69 : f32 to vector<2x128xf32>
    %439 = arith.addf %438, %437 : vector<2x128xf32>
    %440 = arith.divf %438, %439 : vector<2x128xf32>
    %441 = math.tanh %419 : vector<2x128xf32>
    %442 = arith.select %13, %441, %440 : vector<2x128xi1>, vector<2x128xf32>
    %443 = vector.extract_strided_slice %442 {offsets = [0, 0], sizes = [2, 32], strides = [1, 1]} : vector<2x128xf32> to vector<2x32xf32>
    %444 = vector.extract_strided_slice %442 {offsets = [0, 32], sizes = [2, 32], strides = [1, 1]} : vector<2x128xf32> to vector<2x32xf32>
    %445 = vector.extract_strided_slice %442 {offsets = [0, 64], sizes = [2, 32], strides = [1, 1]} : vector<2x128xf32> to vector<2x32xf32>
    %446 = vector.extract_strided_slice %442 {offsets = [0, 96], sizes = [2, 32], strides = [1, 1]} : vector<2x128xf32> to vector<2x32xf32>
    %447 = arith.mulf %444, %409 : vector<2x32xf32>
    %448 = arith.mulf %443, %445 : vector<2x32xf32>
    %449 = arith.addf %447, %448 : vector<2x32xf32>
    %450 = math.tanh %449 : vector<2x32xf32>
    %451 = arith.mulf %446, %450 : vector<2x32xf32>
    %452 = tpu.concatenate %435, %451 in 1 : vector<2x32xf32>, vector<2x32xf32> -> vector<2x64xf32>
    %cst_70 = arith.constant dense<0.000000e+00> : vector<2x256xf32>
    %453 = tpu.matmul %452, %405, %cst_70 {dimension_numbers = #tpu.dot_dimension_numbers<[1], [0], [0], [1], [0, 0, 1, 1], [], []>} : vector<2x64xf32>, vector<64x256xf32>, vector<2x256xf32> -> vector<2x256xf32>
    %454 = vector.extract_strided_slice %398 {offsets = [1, 0, 0], sizes = [1, 2, 128], strides = [1, 1, 1]} : vector<8x2x128xf32> to vector<1x2x128xf32>
    %455 = vector.shape_cast %454 : vector<1x2x128xf32> to vector<2x128xf32>
    %456 = vector.extract_strided_slice %453 {offsets = [0, 0], sizes = [2, 128], strides = [1, 1]} : vector<2x256xf32> to vector<2x128xf32>
    %457 = arith.addf %455, %456 : vector<2x128xf32>
    %458 = vector.extract_strided_slice %404 {offsets = [6, 0, 0], sizes = [1, 2, 128], strides = [1, 1, 1]} : vector<8x2x128xf32> to vector<1x2x128xf32>
    %459 = vector.shape_cast %458 : vector<1x2x128xf32> to vector<2x128xf32>
    %460 = vector.extract_strided_slice %453 {offsets = [0, 128], sizes = [2, 128], strides = [1, 1]} : vector<2x256xf32> to vector<2x128xf32>
    %461 = arith.addf %459, %460 : vector<2x128xf32>
    %462 = arith.negf %457 : vector<2x128xf32>
    %463 = math.exp %462 : vector<2x128xf32>
    %cst_71 = arith.constant 1.000000e+00 : f32
    %464 = vector.broadcast %cst_71 : f32 to vector<2x128xf32>
    %465 = arith.addf %464, %463 : vector<2x128xf32>
    %466 = arith.divf %464, %465 : vector<2x128xf32>
    %467 = math.tanh %457 : vector<2x128xf32>
    %468 = arith.select %13, %467, %466 : vector<2x128xi1>, vector<2x128xf32>
    %469 = vector.extract_strided_slice %468 {offsets = [0, 0], sizes = [2, 32], strides = [1, 1]} : vector<2x128xf32> to vector<2x32xf32>
    %470 = vector.extract_strided_slice %468 {offsets = [0, 32], sizes = [2, 32], strides = [1, 1]} : vector<2x128xf32> to vector<2x32xf32>
    %471 = vector.extract_strided_slice %468 {offsets = [0, 64], sizes = [2, 32], strides = [1, 1]} : vector<2x128xf32> to vector<2x32xf32>
    %472 = vector.extract_strided_slice %468 {offsets = [0, 96], sizes = [2, 32], strides = [1, 1]} : vector<2x128xf32> to vector<2x32xf32>
    %473 = arith.mulf %470, %433 : vector<2x32xf32>
    %474 = arith.mulf %469, %471 : vector<2x32xf32>
    %475 = arith.addf %473, %474 : vector<2x32xf32>
    %476 = math.tanh %475 : vector<2x32xf32>
    %477 = arith.mulf %472, %476 : vector<2x32xf32>
    %478 = arith.negf %461 : vector<2x128xf32>
    %479 = math.exp %478 : vector<2x128xf32>
    %cst_72 = arith.constant 1.000000e+00 : f32
    %480 = vector.broadcast %cst_72 : f32 to vector<2x128xf32>
    %481 = arith.addf %480, %479 : vector<2x128xf32>
    %482 = arith.divf %480, %481 : vector<2x128xf32>
    %483 = math.tanh %461 : vector<2x128xf32>
    %484 = arith.select %13, %483, %482 : vector<2x128xi1>, vector<2x128xf32>
    %485 = vector.extract_strided_slice %484 {offsets = [0, 0], sizes = [2, 32], strides = [1, 1]} : vector<2x128xf32> to vector<2x32xf32>
    %486 = vector.extract_strided_slice %484 {offsets = [0, 32], sizes = [2, 32], strides = [1, 1]} : vector<2x128xf32> to vector<2x32xf32>
    %487 = vector.extract_strided_slice %484 {offsets = [0, 64], sizes = [2, 32], strides = [1, 1]} : vector<2x128xf32> to vector<2x32xf32>
    %488 = vector.extract_strided_slice %484 {offsets = [0, 96], sizes = [2, 32], strides = [1, 1]} : vector<2x128xf32> to vector<2x32xf32>
    %489 = arith.mulf %486, %449 : vector<2x32xf32>
    %490 = arith.mulf %485, %487 : vector<2x32xf32>
    %491 = arith.addf %489, %490 : vector<2x32xf32>
    %492 = math.tanh %491 : vector<2x32xf32>
    %493 = arith.mulf %488, %492 : vector<2x32xf32>
    %494 = tpu.concatenate %477, %493 in 1 : vector<2x32xf32>, vector<2x32xf32> -> vector<2x64xf32>
    %cst_73 = arith.constant dense<0.000000e+00> : vector<2x256xf32>
    %495 = tpu.matmul %494, %405, %cst_73 {dimension_numbers = #tpu.dot_dimension_numbers<[1], [0], [0], [1], [0, 0, 1, 1], [], []>} : vector<2x64xf32>, vector<64x256xf32>, vector<2x256xf32> -> vector<2x256xf32>
    %496 = vector.extract_strided_slice %398 {offsets = [2, 0, 0], sizes = [1, 2, 128], strides = [1, 1, 1]} : vector<8x2x128xf32> to vector<1x2x128xf32>
    %497 = vector.shape_cast %496 : vector<1x2x128xf32> to vector<2x128xf32>
    %498 = vector.extract_strided_slice %495 {offsets = [0, 0], sizes = [2, 128], strides = [1, 1]} : vector<2x256xf32> to vector<2x128xf32>
    %499 = arith.addf %497, %498 : vector<2x128xf32>
    %500 = vector.extract_strided_slice %404 {offsets = [5, 0, 0], sizes = [1, 2, 128], strides = [1, 1, 1]} : vector<8x2x128xf32> to vector<1x2x128xf32>
    %501 = vector.shape_cast %500 : vector<1x2x128xf32> to vector<2x128xf32>
    %502 = vector.extract_strided_slice %495 {offsets = [0, 128], sizes = [2, 128], strides = [1, 1]} : vector<2x256xf32> to vector<2x128xf32>
    %503 = arith.addf %501, %502 : vector<2x128xf32>
    %504 = arith.negf %499 : vector<2x128xf32>
    %505 = math.exp %504 : vector<2x128xf32>
    %cst_74 = arith.constant 1.000000e+00 : f32
    %506 = vector.broadcast %cst_74 : f32 to vector<2x128xf32>
    %507 = arith.addf %506, %505 : vector<2x128xf32>
    %508 = arith.divf %506, %507 : vector<2x128xf32>
    %509 = math.tanh %499 : vector<2x128xf32>
    %510 = arith.select %13, %509, %508 : vector<2x128xi1>, vector<2x128xf32>
    %511 = vector.extract_strided_slice %510 {offsets = [0, 0], sizes = [2, 32], strides = [1, 1]} : vector<2x128xf32> to vector<2x32xf32>
    %512 = vector.extract_strided_slice %510 {offsets = [0, 32], sizes = [2, 32], strides = [1, 1]} : vector<2x128xf32> to vector<2x32xf32>
    %513 = vector.extract_strided_slice %510 {offsets = [0, 64], sizes = [2, 32], strides = [1, 1]} : vector<2x128xf32> to vector<2x32xf32>
    %514 = vector.extract_strided_slice %510 {offsets = [0, 96], sizes = [2, 32], strides = [1, 1]} : vector<2x128xf32> to vector<2x32xf32>
    %515 = arith.mulf %512, %475 : vector<2x32xf32>
    %516 = arith.mulf %511, %513 : vector<2x32xf32>
    %517 = arith.addf %515, %516 : vector<2x32xf32>
    %518 = math.tanh %517 : vector<2x32xf32>
    %519 = arith.mulf %514, %518 : vector<2x32xf32>
    %520 = arith.negf %503 : vector<2x128xf32>
    %521 = math.exp %520 : vector<2x128xf32>
    %cst_75 = arith.constant 1.000000e+00 : f32
    %522 = vector.broadcast %cst_75 : f32 to vector<2x128xf32>
    %523 = arith.addf %522, %521 : vector<2x128xf32>
    %524 = arith.divf %522, %523 : vector<2x128xf32>
    %525 = math.tanh %503 : vector<2x128xf32>
    %526 = arith.select %13, %525, %524 : vector<2x128xi1>, vector<2x128xf32>
    %527 = vector.extract_strided_slice %526 {offsets = [0, 0], sizes = [2, 32], strides = [1, 1]} : vector<2x128xf32> to vector<2x32xf32>
    %528 = vector.extract_strided_slice %526 {offsets = [0, 32], sizes = [2, 32], strides = [1, 1]} : vector<2x128xf32> to vector<2x32xf32>
    %529 = vector.extract_strided_slice %526 {offsets = [0, 64], sizes = [2, 32], strides = [1, 1]} : vector<2x128xf32> to vector<2x32xf32>
    %530 = vector.extract_strided_slice %526 {offsets = [0, 96], sizes = [2, 32], strides = [1, 1]} : vector<2x128xf32> to vector<2x32xf32>
    %531 = arith.mulf %528, %491 : vector<2x32xf32>
    %532 = arith.mulf %527, %529 : vector<2x32xf32>
    %533 = arith.addf %531, %532 : vector<2x32xf32>
    %534 = math.tanh %533 : vector<2x32xf32>
    %535 = arith.mulf %530, %534 : vector<2x32xf32>
    %536 = tpu.concatenate %519, %535 in 1 : vector<2x32xf32>, vector<2x32xf32> -> vector<2x64xf32>
    %cst_76 = arith.constant dense<0.000000e+00> : vector<2x256xf32>
    %537 = tpu.matmul %536, %405, %cst_76 {dimension_numbers = #tpu.dot_dimension_numbers<[1], [0], [0], [1], [0, 0, 1, 1], [], []>} : vector<2x64xf32>, vector<64x256xf32>, vector<2x256xf32> -> vector<2x256xf32>
    %538 = vector.extract_strided_slice %398 {offsets = [3, 0, 0], sizes = [1, 2, 128], strides = [1, 1, 1]} : vector<8x2x128xf32> to vector<1x2x128xf32>
    %539 = vector.shape_cast %538 : vector<1x2x128xf32> to vector<2x128xf32>
    %540 = vector.extract_strided_slice %537 {offsets = [0, 0], sizes = [2, 128], strides = [1, 1]} : vector<2x256xf32> to vector<2x128xf32>
    %541 = arith.addf %539, %540 : vector<2x128xf32>
    %542 = vector.extract_strided_slice %404 {offsets = [4, 0, 0], sizes = [1, 2, 128], strides = [1, 1, 1]} : vector<8x2x128xf32> to vector<1x2x128xf32>
    %543 = vector.shape_cast %542 : vector<1x2x128xf32> to vector<2x128xf32>
    %544 = vector.extract_strided_slice %537 {offsets = [0, 128], sizes = [2, 128], strides = [1, 1]} : vector<2x256xf32> to vector<2x128xf32>
    %545 = arith.addf %543, %544 : vector<2x128xf32>
    %546 = arith.negf %541 : vector<2x128xf32>
    %547 = math.exp %546 : vector<2x128xf32>
    %cst_77 = arith.constant 1.000000e+00 : f32
    %548 = vector.broadcast %cst_77 : f32 to vector<2x128xf32>
    %549 = arith.addf %548, %547 : vector<2x128xf32>
    %550 = arith.divf %548, %549 : vector<2x128xf32>
    %551 = math.tanh %541 : vector<2x128xf32>
    %552 = arith.select %13, %551, %550 : vector<2x128xi1>, vector<2x128xf32>
    %553 = vector.extract_strided_slice %552 {offsets = [0, 0], sizes = [2, 32], strides = [1, 1]} : vector<2x128xf32> to vector<2x32xf32>
    %554 = vector.extract_strided_slice %552 {offsets = [0, 32], sizes = [2, 32], strides = [1, 1]} : vector<2x128xf32> to vector<2x32xf32>
    %555 = vector.extract_strided_slice %552 {offsets = [0, 64], sizes = [2, 32], strides = [1, 1]} : vector<2x128xf32> to vector<2x32xf32>
    %556 = vector.extract_strided_slice %552 {offsets = [0, 96], sizes = [2, 32], strides = [1, 1]} : vector<2x128xf32> to vector<2x32xf32>
    %557 = arith.mulf %554, %517 : vector<2x32xf32>
    %558 = arith.mulf %553, %555 : vector<2x32xf32>
    %559 = arith.addf %557, %558 : vector<2x32xf32>
    %560 = math.tanh %559 : vector<2x32xf32>
    %561 = arith.mulf %556, %560 : vector<2x32xf32>
    %562 = arith.negf %545 : vector<2x128xf32>
    %563 = math.exp %562 : vector<2x128xf32>
    %cst_78 = arith.constant 1.000000e+00 : f32
    %564 = vector.broadcast %cst_78 : f32 to vector<2x128xf32>
    %565 = arith.addf %564, %563 : vector<2x128xf32>
    %566 = arith.divf %564, %565 : vector<2x128xf32>
    %567 = math.tanh %545 : vector<2x128xf32>
    %568 = arith.select %13, %567, %566 : vector<2x128xi1>, vector<2x128xf32>
    %569 = vector.extract_strided_slice %568 {offsets = [0, 0], sizes = [2, 32], strides = [1, 1]} : vector<2x128xf32> to vector<2x32xf32>
    %570 = vector.extract_strided_slice %568 {offsets = [0, 32], sizes = [2, 32], strides = [1, 1]} : vector<2x128xf32> to vector<2x32xf32>
    %571 = vector.extract_strided_slice %568 {offsets = [0, 64], sizes = [2, 32], strides = [1, 1]} : vector<2x128xf32> to vector<2x32xf32>
    %572 = vector.extract_strided_slice %568 {offsets = [0, 96], sizes = [2, 32], strides = [1, 1]} : vector<2x128xf32> to vector<2x32xf32>
    %573 = arith.mulf %570, %533 : vector<2x32xf32>
    %574 = arith.mulf %569, %571 : vector<2x32xf32>
    %575 = arith.addf %573, %574 : vector<2x32xf32>
    %576 = math.tanh %575 : vector<2x32xf32>
    %577 = arith.mulf %572, %576 : vector<2x32xf32>
    %578 = tpu.concatenate %561, %577 in 1 : vector<2x32xf32>, vector<2x32xf32> -> vector<2x64xf32>
    %cst_79 = arith.constant dense<0.000000e+00> : vector<2x256xf32>
    %579 = tpu.matmul %578, %405, %cst_79 {dimension_numbers = #tpu.dot_dimension_numbers<[1], [0], [0], [1], [0, 0, 1, 1], [], []>} : vector<2x64xf32>, vector<64x256xf32>, vector<2x256xf32> -> vector<2x256xf32>
    %580 = vector.extract_strided_slice %398 {offsets = [4, 0, 0], sizes = [1, 2, 128], strides = [1, 1, 1]} : vector<8x2x128xf32> to vector<1x2x128xf32>
    %581 = vector.shape_cast %580 : vector<1x2x128xf32> to vector<2x128xf32>
    %582 = vector.extract_strided_slice %579 {offsets = [0, 0], sizes = [2, 128], strides = [1, 1]} : vector<2x256xf32> to vector<2x128xf32>
    %583 = arith.addf %581, %582 : vector<2x128xf32>
    %584 = vector.extract_strided_slice %404 {offsets = [3, 0, 0], sizes = [1, 2, 128], strides = [1, 1, 1]} : vector<8x2x128xf32> to vector<1x2x128xf32>
    %585 = vector.shape_cast %584 : vector<1x2x128xf32> to vector<2x128xf32>
    %586 = vector.extract_strided_slice %579 {offsets = [0, 128], sizes = [2, 128], strides = [1, 1]} : vector<2x256xf32> to vector<2x128xf32>
    %587 = arith.addf %585, %586 : vector<2x128xf32>
    %588 = arith.negf %583 : vector<2x128xf32>
    %589 = math.exp %588 : vector<2x128xf32>
    %cst_80 = arith.constant 1.000000e+00 : f32
    %590 = vector.broadcast %cst_80 : f32 to vector<2x128xf32>
    %591 = arith.addf %590, %589 : vector<2x128xf32>
    %592 = arith.divf %590, %591 : vector<2x128xf32>
    %593 = math.tanh %583 : vector<2x128xf32>
    %594 = arith.select %13, %593, %592 : vector<2x128xi1>, vector<2x128xf32>
    %595 = vector.extract_strided_slice %594 {offsets = [0, 0], sizes = [2, 32], strides = [1, 1]} : vector<2x128xf32> to vector<2x32xf32>
    %596 = vector.extract_strided_slice %594 {offsets = [0, 32], sizes = [2, 32], strides = [1, 1]} : vector<2x128xf32> to vector<2x32xf32>
    %597 = vector.extract_strided_slice %594 {offsets = [0, 64], sizes = [2, 32], strides = [1, 1]} : vector<2x128xf32> to vector<2x32xf32>
    %598 = vector.extract_strided_slice %594 {offsets = [0, 96], sizes = [2, 32], strides = [1, 1]} : vector<2x128xf32> to vector<2x32xf32>
    %599 = arith.mulf %596, %559 : vector<2x32xf32>
    %600 = arith.mulf %595, %597 : vector<2x32xf32>
    %601 = arith.addf %599, %600 : vector<2x32xf32>
    %602 = math.tanh %601 : vector<2x32xf32>
    %603 = arith.mulf %598, %602 : vector<2x32xf32>
    %604 = arith.negf %587 : vector<2x128xf32>
    %605 = math.exp %604 : vector<2x128xf32>
    %cst_81 = arith.constant 1.000000e+00 : f32
    %606 = vector.broadcast %cst_81 : f32 to vector<2x128xf32>
    %607 = arith.addf %606, %605 : vector<2x128xf32>
    %608 = arith.divf %606, %607 : vector<2x128xf32>
    %609 = math.tanh %587 : vector<2x128xf32>
    %610 = arith.select %13, %609, %608 : vector<2x128xi1>, vector<2x128xf32>
    %611 = vector.extract_strided_slice %610 {offsets = [0, 0], sizes = [2, 32], strides = [1, 1]} : vector<2x128xf32> to vector<2x32xf32>
    %612 = vector.extract_strided_slice %610 {offsets = [0, 32], sizes = [2, 32], strides = [1, 1]} : vector<2x128xf32> to vector<2x32xf32>
    %613 = vector.extract_strided_slice %610 {offsets = [0, 64], sizes = [2, 32], strides = [1, 1]} : vector<2x128xf32> to vector<2x32xf32>
    %614 = vector.extract_strided_slice %610 {offsets = [0, 96], sizes = [2, 32], strides = [1, 1]} : vector<2x128xf32> to vector<2x32xf32>
    %615 = arith.mulf %612, %575 : vector<2x32xf32>
    %616 = arith.mulf %611, %613 : vector<2x32xf32>
    %617 = arith.addf %615, %616 : vector<2x32xf32>
    %618 = math.tanh %617 : vector<2x32xf32>
    %619 = arith.mulf %614, %618 : vector<2x32xf32>
    %620 = tpu.concatenate %603, %619 in 1 : vector<2x32xf32>, vector<2x32xf32> -> vector<2x64xf32>
    %cst_82 = arith.constant dense<0.000000e+00> : vector<2x256xf32>
    %621 = tpu.matmul %620, %405, %cst_82 {dimension_numbers = #tpu.dot_dimension_numbers<[1], [0], [0], [1], [0, 0, 1, 1], [], []>} : vector<2x64xf32>, vector<64x256xf32>, vector<2x256xf32> -> vector<2x256xf32>
    %622 = vector.extract_strided_slice %398 {offsets = [5, 0, 0], sizes = [1, 2, 128], strides = [1, 1, 1]} : vector<8x2x128xf32> to vector<1x2x128xf32>
    %623 = vector.shape_cast %622 : vector<1x2x128xf32> to vector<2x128xf32>
    %624 = vector.extract_strided_slice %621 {offsets = [0, 0], sizes = [2, 128], strides = [1, 1]} : vector<2x256xf32> to vector<2x128xf32>
    %625 = arith.addf %623, %624 : vector<2x128xf32>
    %626 = vector.extract_strided_slice %404 {offsets = [2, 0, 0], sizes = [1, 2, 128], strides = [1, 1, 1]} : vector<8x2x128xf32> to vector<1x2x128xf32>
    %627 = vector.shape_cast %626 : vector<1x2x128xf32> to vector<2x128xf32>
    %628 = vector.extract_strided_slice %621 {offsets = [0, 128], sizes = [2, 128], strides = [1, 1]} : vector<2x256xf32> to vector<2x128xf32>
    %629 = arith.addf %627, %628 : vector<2x128xf32>
    %630 = arith.negf %625 : vector<2x128xf32>
    %631 = math.exp %630 : vector<2x128xf32>
    %cst_83 = arith.constant 1.000000e+00 : f32
    %632 = vector.broadcast %cst_83 : f32 to vector<2x128xf32>
    %633 = arith.addf %632, %631 : vector<2x128xf32>
    %634 = arith.divf %632, %633 : vector<2x128xf32>
    %635 = math.tanh %625 : vector<2x128xf32>
    %636 = arith.select %13, %635, %634 : vector<2x128xi1>, vector<2x128xf32>
    %637 = vector.extract_strided_slice %636 {offsets = [0, 0], sizes = [2, 32], strides = [1, 1]} : vector<2x128xf32> to vector<2x32xf32>
    %638 = vector.extract_strided_slice %636 {offsets = [0, 32], sizes = [2, 32], strides = [1, 1]} : vector<2x128xf32> to vector<2x32xf32>
    %639 = vector.extract_strided_slice %636 {offsets = [0, 64], sizes = [2, 32], strides = [1, 1]} : vector<2x128xf32> to vector<2x32xf32>
    %640 = vector.extract_strided_slice %636 {offsets = [0, 96], sizes = [2, 32], strides = [1, 1]} : vector<2x128xf32> to vector<2x32xf32>
    %641 = arith.mulf %638, %601 : vector<2x32xf32>
    %642 = arith.mulf %637, %639 : vector<2x32xf32>
    %643 = arith.addf %641, %642 : vector<2x32xf32>
    %644 = math.tanh %643 : vector<2x32xf32>
    %645 = arith.mulf %640, %644 : vector<2x32xf32>
    %646 = arith.negf %629 : vector<2x128xf32>
    %647 = math.exp %646 : vector<2x128xf32>
    %cst_84 = arith.constant 1.000000e+00 : f32
    %648 = vector.broadcast %cst_84 : f32 to vector<2x128xf32>
    %649 = arith.addf %648, %647 : vector<2x128xf32>
    %650 = arith.divf %648, %649 : vector<2x128xf32>
    %651 = math.tanh %629 : vector<2x128xf32>
    %652 = arith.select %13, %651, %650 : vector<2x128xi1>, vector<2x128xf32>
    %653 = vector.extract_strided_slice %652 {offsets = [0, 0], sizes = [2, 32], strides = [1, 1]} : vector<2x128xf32> to vector<2x32xf32>
    %654 = vector.extract_strided_slice %652 {offsets = [0, 32], sizes = [2, 32], strides = [1, 1]} : vector<2x128xf32> to vector<2x32xf32>
    %655 = vector.extract_strided_slice %652 {offsets = [0, 64], sizes = [2, 32], strides = [1, 1]} : vector<2x128xf32> to vector<2x32xf32>
    %656 = vector.extract_strided_slice %652 {offsets = [0, 96], sizes = [2, 32], strides = [1, 1]} : vector<2x128xf32> to vector<2x32xf32>
    %657 = arith.mulf %654, %617 : vector<2x32xf32>
    %658 = arith.mulf %653, %655 : vector<2x32xf32>
    %659 = arith.addf %657, %658 : vector<2x32xf32>
    %660 = math.tanh %659 : vector<2x32xf32>
    %661 = arith.mulf %656, %660 : vector<2x32xf32>
    %662 = tpu.concatenate %645, %661 in 1 : vector<2x32xf32>, vector<2x32xf32> -> vector<2x64xf32>
    %cst_85 = arith.constant dense<0.000000e+00> : vector<2x256xf32>
    %663 = tpu.matmul %662, %405, %cst_85 {dimension_numbers = #tpu.dot_dimension_numbers<[1], [0], [0], [1], [0, 0, 1, 1], [], []>} : vector<2x64xf32>, vector<64x256xf32>, vector<2x256xf32> -> vector<2x256xf32>
    %664 = vector.extract_strided_slice %398 {offsets = [6, 0, 0], sizes = [1, 2, 128], strides = [1, 1, 1]} : vector<8x2x128xf32> to vector<1x2x128xf32>
    %665 = vector.shape_cast %664 : vector<1x2x128xf32> to vector<2x128xf32>
    %666 = vector.extract_strided_slice %663 {offsets = [0, 0], sizes = [2, 128], strides = [1, 1]} : vector<2x256xf32> to vector<2x128xf32>
    %667 = arith.addf %665, %666 : vector<2x128xf32>
    %668 = vector.extract_strided_slice %404 {offsets = [1, 0, 0], sizes = [1, 2, 128], strides = [1, 1, 1]} : vector<8x2x128xf32> to vector<1x2x128xf32>
    %669 = vector.shape_cast %668 : vector<1x2x128xf32> to vector<2x128xf32>
    %670 = vector.extract_strided_slice %663 {offsets = [0, 128], sizes = [2, 128], strides = [1, 1]} : vector<2x256xf32> to vector<2x128xf32>
    %671 = arith.addf %669, %670 : vector<2x128xf32>
    %672 = arith.negf %667 : vector<2x128xf32>
    %673 = math.exp %672 : vector<2x128xf32>
    %cst_86 = arith.constant 1.000000e+00 : f32
    %674 = vector.broadcast %cst_86 : f32 to vector<2x128xf32>
    %675 = arith.addf %674, %673 : vector<2x128xf32>
    %676 = arith.divf %674, %675 : vector<2x128xf32>
    %677 = math.tanh %667 : vector<2x128xf32>
    %678 = arith.select %13, %677, %676 : vector<2x128xi1>, vector<2x128xf32>
    %679 = vector.extract_strided_slice %678 {offsets = [0, 0], sizes = [2, 32], strides = [1, 1]} : vector<2x128xf32> to vector<2x32xf32>
    %680 = vector.extract_strided_slice %678 {offsets = [0, 32], sizes = [2, 32], strides = [1, 1]} : vector<2x128xf32> to vector<2x32xf32>
    %681 = vector.extract_strided_slice %678 {offsets = [0, 64], sizes = [2, 32], strides = [1, 1]} : vector<2x128xf32> to vector<2x32xf32>
    %682 = vector.extract_strided_slice %678 {offsets = [0, 96], sizes = [2, 32], strides = [1, 1]} : vector<2x128xf32> to vector<2x32xf32>
    %683 = arith.mulf %680, %643 : vector<2x32xf32>
    %684 = arith.mulf %679, %681 : vector<2x32xf32>
    %685 = arith.addf %683, %684 : vector<2x32xf32>
    %686 = math.tanh %685 : vector<2x32xf32>
    %687 = arith.mulf %682, %686 : vector<2x32xf32>
    %688 = arith.negf %671 : vector<2x128xf32>
    %689 = math.exp %688 : vector<2x128xf32>
    %cst_87 = arith.constant 1.000000e+00 : f32
    %690 = vector.broadcast %cst_87 : f32 to vector<2x128xf32>
    %691 = arith.addf %690, %689 : vector<2x128xf32>
    %692 = arith.divf %690, %691 : vector<2x128xf32>
    %693 = math.tanh %671 : vector<2x128xf32>
    %694 = arith.select %13, %693, %692 : vector<2x128xi1>, vector<2x128xf32>
    %695 = vector.extract_strided_slice %694 {offsets = [0, 0], sizes = [2, 32], strides = [1, 1]} : vector<2x128xf32> to vector<2x32xf32>
    %696 = vector.extract_strided_slice %694 {offsets = [0, 32], sizes = [2, 32], strides = [1, 1]} : vector<2x128xf32> to vector<2x32xf32>
    %697 = vector.extract_strided_slice %694 {offsets = [0, 64], sizes = [2, 32], strides = [1, 1]} : vector<2x128xf32> to vector<2x32xf32>
    %698 = vector.extract_strided_slice %694 {offsets = [0, 96], sizes = [2, 32], strides = [1, 1]} : vector<2x128xf32> to vector<2x32xf32>
    %699 = arith.mulf %696, %659 : vector<2x32xf32>
    %700 = arith.mulf %695, %697 : vector<2x32xf32>
    %701 = arith.addf %699, %700 : vector<2x32xf32>
    %702 = math.tanh %701 : vector<2x32xf32>
    %703 = arith.mulf %698, %702 : vector<2x32xf32>
    %704 = tpu.concatenate %687, %703 in 1 : vector<2x32xf32>, vector<2x32xf32> -> vector<2x64xf32>
    %cst_88 = arith.constant dense<0.000000e+00> : vector<2x256xf32>
    %705 = tpu.matmul %704, %405, %cst_88 {dimension_numbers = #tpu.dot_dimension_numbers<[1], [0], [0], [1], [0, 0, 1, 1], [], []>} : vector<2x64xf32>, vector<64x256xf32>, vector<2x256xf32> -> vector<2x256xf32>
    %706 = vector.extract_strided_slice %398 {offsets = [7, 0, 0], sizes = [1, 2, 128], strides = [1, 1, 1]} : vector<8x2x128xf32> to vector<1x2x128xf32>
    %707 = vector.shape_cast %706 : vector<1x2x128xf32> to vector<2x128xf32>
    %708 = vector.extract_strided_slice %705 {offsets = [0, 0], sizes = [2, 128], strides = [1, 1]} : vector<2x256xf32> to vector<2x128xf32>
    %709 = arith.addf %707, %708 : vector<2x128xf32>
    %710 = vector.extract_strided_slice %404 {offsets = [0, 0, 0], sizes = [1, 2, 128], strides = [1, 1, 1]} : vector<8x2x128xf32> to vector<1x2x128xf32>
    %711 = vector.shape_cast %710 : vector<1x2x128xf32> to vector<2x128xf32>
    %712 = vector.extract_strided_slice %705 {offsets = [0, 128], sizes = [2, 128], strides = [1, 1]} : vector<2x256xf32> to vector<2x128xf32>
    %713 = arith.addf %711, %712 : vector<2x128xf32>
    %714 = arith.negf %709 : vector<2x128xf32>
    %715 = math.exp %714 : vector<2x128xf32>
    %cst_89 = arith.constant 1.000000e+00 : f32
    %716 = vector.broadcast %cst_89 : f32 to vector<2x128xf32>
    %717 = arith.addf %716, %715 : vector<2x128xf32>
    %718 = arith.divf %716, %717 : vector<2x128xf32>
    %719 = math.tanh %709 : vector<2x128xf32>
    %720 = arith.select %13, %719, %718 : vector<2x128xi1>, vector<2x128xf32>
    %721 = vector.extract_strided_slice %720 {offsets = [0, 0], sizes = [2, 32], strides = [1, 1]} : vector<2x128xf32> to vector<2x32xf32>
    %722 = vector.extract_strided_slice %720 {offsets = [0, 32], sizes = [2, 32], strides = [1, 1]} : vector<2x128xf32> to vector<2x32xf32>
    %723 = vector.extract_strided_slice %720 {offsets = [0, 64], sizes = [2, 32], strides = [1, 1]} : vector<2x128xf32> to vector<2x32xf32>
    %724 = vector.extract_strided_slice %720 {offsets = [0, 96], sizes = [2, 32], strides = [1, 1]} : vector<2x128xf32> to vector<2x32xf32>
    %725 = arith.mulf %722, %685 : vector<2x32xf32>
    %726 = arith.mulf %721, %723 : vector<2x32xf32>
    %727 = arith.addf %725, %726 : vector<2x32xf32>
    %728 = math.tanh %727 : vector<2x32xf32>
    %729 = arith.mulf %724, %728 : vector<2x32xf32>
    %730 = arith.negf %713 : vector<2x128xf32>
    %731 = math.exp %730 : vector<2x128xf32>
    %cst_90 = arith.constant 1.000000e+00 : f32
    %732 = vector.broadcast %cst_90 : f32 to vector<2x128xf32>
    %733 = arith.addf %732, %731 : vector<2x128xf32>
    %734 = arith.divf %732, %733 : vector<2x128xf32>
    %735 = math.tanh %713 : vector<2x128xf32>
    %736 = arith.select %13, %735, %734 : vector<2x128xi1>, vector<2x128xf32>
    %737 = vector.extract_strided_slice %736 {offsets = [0, 0], sizes = [2, 32], strides = [1, 1]} : vector<2x128xf32> to vector<2x32xf32>
    %738 = vector.extract_strided_slice %736 {offsets = [0, 32], sizes = [2, 32], strides = [1, 1]} : vector<2x128xf32> to vector<2x32xf32>
    %739 = vector.extract_strided_slice %736 {offsets = [0, 64], sizes = [2, 32], strides = [1, 1]} : vector<2x128xf32> to vector<2x32xf32>
    %740 = vector.extract_strided_slice %736 {offsets = [0, 96], sizes = [2, 32], strides = [1, 1]} : vector<2x128xf32> to vector<2x32xf32>
    %741 = arith.mulf %738, %701 : vector<2x32xf32>
    %742 = arith.mulf %737, %739 : vector<2x32xf32>
    %743 = arith.addf %741, %742 : vector<2x32xf32>
    %744 = math.tanh %743 : vector<2x32xf32>
    %745 = arith.mulf %740, %744 : vector<2x32xf32>
    %746 = tpu.concatenate %729, %745 in 1 : vector<2x32xf32>, vector<2x32xf32> -> vector<2x64xf32>
    %c0_91 = arith.constant 0 : index
    %c0_92 = arith.constant 0 : index
    %747 = vector.load %arg13[%c0_91, %c0_92] : memref<64x32xf32, #tpu.memory_space<vmem>>, vector<64x32xf32>
    %cst_93 = arith.constant dense<0.000000e+00> : vector<2x32xf32>
    %748 = tpu.matmul %746, %747, %cst_93 {dimension_numbers = #tpu.dot_dimension_numbers<[1], [0], [0], [1], [0, 0, 1, 1], [], []>} : vector<2x64xf32>, vector<64x32xf32>, vector<2x32xf32> -> vector<2x32xf32>
    %c0_94 = arith.constant 0 : index
    %c0_95 = arith.constant 0 : index
    %749 = vector.load %arg14[%c0_94, %c0_95] : memref<1x32xf32, #tpu.memory_space<vmem>>, vector<1x32xf32>
    %750 = vector.broadcast %749 : vector<1x32xf32> to vector<2x32xf32>
    %751 = arith.addf %748, %750 : vector<2x32xf32>
    %cst_96 = arith.constant 0.000000e+00 : f32
    %752 = vector.broadcast %cst_96 : f32 to vector<2x32xf32>
    %753 = arith.maximumf %751, %752 : vector<2x32xf32>
    %c0_97 = arith.constant 0 : index
    %c0_98 = arith.constant 0 : index
    %754 = vector.load %arg15[%c0_97, %c0_98] : memref<32x5xf32, #tpu.memory_space<vmem>>, vector<32x5xf32>
    %cst_99 = arith.constant dense<0.000000e+00> : vector<2x5xf32>
    %755 = tpu.matmul %753, %754, %cst_99 {dimension_numbers = #tpu.dot_dimension_numbers<[1], [0], [0], [1], [0, 0, 1, 1], [], []>} : vector<2x32xf32>, vector<32x5xf32>, vector<2x5xf32> -> vector<2x5xf32>
    %c0_100 = arith.constant 0 : index
    %c0_101 = arith.constant 0 : index
    %756 = vector.load %arg16[%c0_100, %c0_101] : memref<1x5xf32, #tpu.memory_space<vmem>>, vector<1x5xf32>
    %757 = vector.broadcast %756 : vector<1x5xf32> to vector<2x5xf32>
    %758 = arith.addf %755, %757 : vector<2x5xf32>
    %c0_102 = arith.constant 0 : index
    %c0_103 = arith.constant 0 : index
    %759 = vector.load %arg17[%c0_102, %c0_103] : memref<2x5xf32, #tpu.memory_space<vmem>>, vector<2x5xf32>
    tpu.vector_store %arg17[%c0_102, %c0_103], %758 {strides = array<i32>} : memref<2x5xf32, #tpu.memory_space<vmem>>, vector<2x5xf32>,
    return
  }
}

</mosaic_0001>

<llo_original>
// kernel: tpu_custom_call.1
$region0: #{tpu_custom_call.1}
  #allocation0 [shape = 'u32[]', space=smem, size = 0x4, offset = 0x4, fixed_abs, tag = 'smem constant byte address 0x4 - core index']
  #allocation1 [shape = 'u32[144,128]{1,0:T(1,128)}', space=vmem, size = 0x12000, scoped, tag = 'internal scratch']
  %s0 = inlined_call_operand.hbm [shape: f32[16,256], index: 0, kind: input, shape index: {}]
  %s1 = inlined_call_operand.vmem [shape: f32[256,16], index: 1, kind: input, shape index: {}]
  %s2 = inlined_call_operand.vmem [shape: f32[1,16], index: 2, kind: input, shape index: {}]
  %s3 = inlined_call_operand.vmem [shape: f32[16,128], index: 3, kind: input, shape index: {}]
  %s4 = inlined_call_operand.hbm [shape: f32[16,128], index: 4, kind: input, shape index: {}]
  %s5 = inlined_call_operand.vmem [shape: f32[1,128], index: 5, kind: input, shape index: {}]
  %s6 = inlined_call_operand.vmem [shape: f32[1,128], index: 6, kind: input, shape index: {}]
  %s7 = inlined_call_operand.vmem [shape: f32[64,256], index: 7, kind: input, shape index: {}]
  %s8 = inlined_call_operand.vmem [shape: f32[64,128], index: 8, kind: input, shape index: {}]
  %s9 = inlined_call_operand.vmem [shape: f32[64,128], index: 9, kind: input, shape index: {}]
  %s10 = inlined_call_operand.vmem [shape: f32[1,128], index: 10, kind: input, shape index: {}]
  %s11 = inlined_call_operand.vmem [shape: f32[1,128], index: 11, kind: input, shape index: {}]
  %s12 = inlined_call_operand.vmem [shape: f32[64,256], index: 12, kind: input, shape index: {}]
  %s13 = inlined_call_operand.vmem [shape: f32[64,32], index: 13, kind: input, shape index: {}]
  %s14 = inlined_call_operand.vmem [shape: f32[1,32], index: 14, kind: input, shape index: {}]
  %s15 = inlined_call_operand.vmem [shape: f32[32,5], index: 15, kind: input, shape index: {}]
  %s16 = inlined_call_operand.vmem [shape: f32[1,5], index: 16, kind: input, shape index: {}]
  %s17 = inlined_call_operand.hbm [shape: f32[2,5], index: 17, kind: output, shape index: {}]
  %s18 = sld [smem:[#allocation0]]
  $region86: #{tpu_custom_call.1} parent=0
    _
  %s20 = ssub.s32 1, %s18
  %s21 = scalar_select 0, %s20, %s18
  $region1: #{tpu_custom_call.1} parent=0
    #allocation2 [shape = 'u8[16384]{0}', space=vmem, size = 0x4000, scoped, tag = 'input window, operand 0, single buffered']
    #allocation3 [shape = 's32[1]{0}', space=sflag, size = 0x4, scoped, tag = 'scoped memory for tpu_custom_call.1']
    #allocation4 [shape = 's32[1]{0}', space=sflag, size = 0x4, scoped, tag = 'scoped memory for tpu_custom_call.1']
    #allocation5 [shape = 'u8[8192]{0}', space=vmem, size = 0x2000, scoped, tag = 'input window, operand 4, single buffered']
    #allocation6 [shape = 's32[1]{0}', space=sflag, size = 0x4, scoped, tag = 'scoped memory for tpu_custom_call.1']
    #allocation7 [shape = 'u8[1024]{0}', space=vmem, size = 0x400, scoped, tag = 'output window, operand 0, single buffered']
    %22 = vsyncpa [#allocation3], 0
    %23 = vsyncpa [#allocation6], 0
    %24 = vsyncpa [#allocation4], 0
    // Predicated region
    $region2: #{tpu_custom_call.1} parent=1 // pred_check
      _
    $region3: #{tpu_custom_call.1} parent=1 // pred_check_branch
      %26 = sbr.rel (0) target = $region5
    $region4: #{tpu_custom_call.1} parent=1 // pred_region
      %s28 = ssub.s32 512, 512
      %29 = vsyncadd [#allocation3], %s28
      %s30 = sshll.u32 [#allocation2], 4
      %s31 = int_to_ptr.vmem [resolvable:$true] %s30
      %36 = dma.hbm_to_vmem [thread:$0]  %s0, 512, %s31, [#allocation3], 256, 256, 16
    $region5: #{tpu_custom_call.1} parent=1 // pred_fallthru
      _
    // Predicated region
    $region6: #{tpu_custom_call.1} parent=1 // pred_check
      _
    $region7: #{tpu_custom_call.1} parent=1 // pred_check_branch
      %38 = sbr.rel (0) target = $region9
    $region8: #{tpu_custom_call.1} parent=1 // pred_region
      _
    $region9: #{tpu_custom_call.1} parent=1 // pred_fallthru
      _
    // Predicated region
    $region10: #{tpu_custom_call.1} parent=1 // pred_check
      _
    $region11: #{tpu_custom_call.1} parent=1 // pred_check_branch
      %40 = sbr.rel (0) target = $region13
    $region12: #{tpu_custom_call.1} parent=1 // pred_region
      _
    $region13: #{tpu_custom_call.1} parent=1 // pred_fallthru
      _
    // Predicated region
    $region14: #{tpu_custom_call.1} parent=1 // pred_check
      _
    $region15: #{tpu_custom_call.1} parent=1 // pred_check_branch
      %42 = sbr.rel (0) target = $region17
    $region16: #{tpu_custom_call.1} parent=1 // pred_region
      _
    $region17: #{tpu_custom_call.1} parent=1 // pred_fallthru
      _
    // Predicated region
    $region18: #{tpu_custom_call.1} parent=1 // pred_check
      _
    $region19: #{tpu_custom_call.1} parent=1 // pred_check_branch
      %44 = sbr.rel (0) target = $region21
    $region20: #{tpu_custom_call.1} parent=1 // pred_region
      %s46 = ssub.s32 256, 256
      %47 = vsyncadd [#allocation6], %s46
      %s48 = sshll.u32 [#allocation5], 4
      %s49 = int_to_ptr.vmem [resolvable:$true] %s48
      %54 = dma.hbm_to_vmem [thread:$0]  %s4, 256, %s49, [#allocation6], 128, 128, 8
    $region21: #{tpu_custom_call.1} parent=1 // pred_fallthru
      _
    // Predicated region
    $region22: #{tpu_custom_call.1} parent=1 // pred_check
      _
    $region23: #{tpu_custom_call.1} parent=1 // pred_check_branch
      %56 = sbr.rel (0) target = $region25
    $region24: #{tpu_custom_call.1} parent=1 // pred_region
      _
    $region25: #{tpu_custom_call.1} parent=1 // pred_fallthru
      _
    // Predicated region
    $region26: #{tpu_custom_call.1} parent=1 // pred_check
      _
    $region27: #{tpu_custom_call.1} parent=1 // pred_check_branch
      %58 = sbr.rel (0) target = $region29
    $region28: #{tpu_custom_call.1} parent=1 // pred_region
      _
    $region29: #{tpu_custom_call.1} parent=1 // pred_fallthru
      _
    // Predicated region
    $region30: #{tpu_custom_call.1} parent=1 // pred_check
      _
    $region31: #{tpu_custom_call.1} parent=1 // pred_check_branch
      %60 = sbr.rel (0) target = $region33
    $region32: #{tpu_custom_call.1} parent=1 // pred_region
      _
    $region33: #{tpu_custom_call.1} parent=1 // pred_fallthru
      _
    // Predicated region
    $region34: #{tpu_custom_call.1} parent=1 // pred_check
      _
    $region35: #{tpu_custom_call.1} parent=1 // pred_check_branch
      %62 = sbr.rel (0) target = $region37
    $region36: #{tpu_custom_call.1} parent=1 // pred_region
      _
    $region37: #{tpu_custom_call.1} parent=1 // pred_fallthru
      _
    // Predicated region
    $region38: #{tpu_custom_call.1} parent=1 // pred_check
      _
    $region39: #{tpu_custom_call.1} parent=1 // pred_check_branch
      %64 = sbr.rel (0) target = $region41
    $region40: #{tpu_custom_call.1} parent=1 // pred_region
      _
    $region41: #{tpu_custom_call.1} parent=1 // pred_fallthru
      _
    // Predicated region
    $region42: #{tpu_custom_call.1} parent=1 // pred_check
      _
    $region43: #{tpu_custom_call.1} parent=1 // pred_check_branch
      %66 = sbr.rel (0) target = $region45
    $region44: #{tpu_custom_call.1} parent=1 // pred_region
      _
    $region45: #{tpu_custom_call.1} parent=1 // pred_fallthru
      _
    // Predicated region
    $region46: #{tpu_custom_call.1} parent=1 // pred_check
      _
    $region47: #{tpu_custom_call.1} parent=1 // pred_check_branch
      %68 = sbr.rel (0) target = $region49
    $region48: #{tpu_custom_call.1} parent=1 // pred_region
      _
    $region49: #{tpu_custom_call.1} parent=1 // pred_fallthru
      _
    // Predicated region
    $region50: #{tpu_custom_call.1} parent=1 // pred_check
      _
    $region51: #{tpu_custom_call.1} parent=1 // pred_check_branch
      %70 = sbr.rel (0) target = $region53
    $region52: #{tpu_custom_call.1} parent=1 // pred_region
      _
    $region53: #{tpu_custom_call.1} parent=1 // pred_fallthru
      _
    // Predicated region
    $region54: #{tpu_custom_call.1} parent=1 // pred_check
      _
    $region55: #{tpu_custom_call.1} parent=1 // pred_check_branch
      %72 = sbr.rel (0) target = $region57
    $region56: #{tpu_custom_call.1} parent=1 // pred_region
      _
    $region57: #{tpu_custom_call.1} parent=1 // pred_fallthru
      _
    // Predicated region
    $region58: #{tpu_custom_call.1} parent=1 // pred_check
      _
    $region59: #{tpu_custom_call.1} parent=1 // pred_check_branch
      %74 = sbr.rel (0) target = $region61
    $region60: #{tpu_custom_call.1} parent=1 // pred_region
      _
    $region61: #{tpu_custom_call.1} parent=1 // pred_fallthru
      _
    // Predicated region
    $region62: #{tpu_custom_call.1} parent=1 // pred_check
      _
    $region63: #{tpu_custom_call.1} parent=1 // pred_check_branch
      %76 = sbr.rel (0) target = $region65
    $region64: #{tpu_custom_call.1} parent=1 // pred_region
      _
    $region65: #{tpu_custom_call.1} parent=1 // pred_fallthru
      _
    // Predicated region
    $region66: #{tpu_custom_call.1} parent=1 // pred_check
      _
    $region67: #{tpu_custom_call.1} parent=1 // pred_check_branch
      %78 = sbr.rel (0) target = $region69
    $region68: #{tpu_custom_call.1} parent=1 // pred_region
      _
    $region69: #{tpu_custom_call.1} parent=1 // pred_fallthru
      _
    // Predicated region
    $region70: #{tpu_custom_call.1} parent=1 // pred_check
      _
    $region71: #{tpu_custom_call.1} parent=1 // pred_check_branch
      %80 = sbr.rel (0) target = $region73
    $region72: #{tpu_custom_call.1} parent=1 // pred_region
      %81 = dma.done [#allocation3], 512
    $region73: #{tpu_custom_call.1} parent=1 // pred_fallthru
      _
    // Predicated region
    $region74: #{tpu_custom_call.1} parent=1 // pred_check
      _
    $region75: #{tpu_custom_call.1} parent=1 // pred_check_branch
      %83 = sbr.rel (0) target = $region77
    $region76: #{tpu_custom_call.1} parent=1 // pred_region
      %84 = dma.done [#allocation6], 256
    $region77: #{tpu_custom_call.1} parent=1 // pred_fallthru
      _
    %v85 = vld [vmem:[#allocation2] sm:$0xff]
    %v86 = vld [vmem:[#allocation2 + $0x8] sm:$0xff]
    %v87 = vld [vmem:[#allocation2 + $0x10] sm:$0xff]
    %v88 = vld [vmem:[#allocation2 + $0x18] sm:$0xff]
    %v89 = vld [vmem:[%s1] sm:$0xff]
    %v90 = vld [vmem:[%s1 + $0x8] sm:$0xff]
    %v91 = vld [vmem:[%s1 + $0x10] sm:$0xff]
    %v92 = vld [vmem:[%s1 + $0x18] sm:$0xff]
    %v93 = vld [vmem:[%s1 + $0x20] sm:$0xff]
    %v94 = vld [vmem:[%s1 + $0x28] sm:$0xff]
    %v95 = vld [vmem:[%s1 + $0x30] sm:$0xff]
    %v96 = vld [vmem:[%s1 + $0x38] sm:$0xff]
    %v97 = vld [vmem:[%s1 + $0x40] sm:$0xff]
    %v98 = vld [vmem:[%s1 + $0x48] sm:$0xff]
    %v99 = vld [vmem:[%s1 + $0x50] sm:$0xff]
    %v100 = vld [vmem:[%s1 + $0x58] sm:$0xff]
    %v101 = vld [vmem:[%s1 + $0x60] sm:$0xff]
    %v102 = vld [vmem:[%s1 + $0x68] sm:$0xff]
    %v103 = vld [vmem:[%s1 + $0x70] sm:$0xff]
    %v104 = vld [vmem:[%s1 + $0x78] sm:$0xff]
    %v105 = vld [vmem:[%s1 + $0x80] sm:$0xff]
    %v106 = vld [vmem:[%s1 + $0x88] sm:$0xff]
    %v107 = vld [vmem:[%s1 + $0x90] sm:$0xff]
    %v108 = vld [vmem:[%s1 + $0x98] sm:$0xff]
    %v109 = vld [vmem:[%s1 + $0xa0] sm:$0xff]
    %v110 = vld [vmem:[%s1 + $0xa8] sm:$0xff]
    %v111 = vld [vmem:[%s1 + $0xb0] sm:$0xff]
    %v112 = vld [vmem:[%s1 + $0xb8] sm:$0xff]
    %v113 = vld [vmem:[%s1 + $0xc0] sm:$0xff]
    %v114 = vld [vmem:[%s1 + $0xc8] sm:$0xff]
    %v115 = vld [vmem:[%s1 + $0xd0] sm:$0xff]
    %v116 = vld [vmem:[%s1 + $0xd8] sm:$0xff]
    %v117 = vld [vmem:[%s1 + $0xe0] sm:$0xff]
    %v118 = vld [vmem:[%s1 + $0xe8] sm:$0xff]
    %v119 = vld [vmem:[%s1 + $0xf0] sm:$0xff]
    %v120 = vld [vmem:[%s1 + $0xf8] sm:$0xff]
    %v121 = vld [vmem:[%s2] sm:$0x1]
    %v123 = vlaneseq
    %v124 = vshrl.u32 %v123, 7
    %v125 = vsub.s32 0, %v124
    %v126 = vrot.slane %v121, %v125
    %128 = vmatprep.subr.mxu0 0.0
    %129 = vmatpush1.msra.mxu0 %v89
    %130 = vmatprep.subr.mxu0 0.0
    %131 = vmatpush1.msra.mxu0 %v90
    %132 = vmatprep.subr.mxu0 0.0
    %133 = vmatpush1.msra.mxu0 %v91
    %134 = vmatprep.subr.mxu0 0.0
    %135 = vmatpush1.msra.mxu0 %v92
    %136 = vmatprep.subr.mxu0 0.0
    %137 = vmatpush1.msra.mxu0 %v93
    %138 = vmatprep.subr.mxu0 0.0
    %139 = vmatpush1.msra.mxu0 %v94
    %140 = vmatprep.subr.mxu0 0.0
    %141 = vmatpush1.msra.mxu0 %v95
    %142 = vmatprep.subr.mxu0 0.0
    %143 = vmatpush1.msra.mxu0 %v96
    %144 = vmatprep.subr.mxu0 0.0
    %145 = vmatpush1.msra.mxu0 %v97
    %146 = vmatprep.subr.mxu0 0.0
    %147 = vmatpush1.msra.mxu0 %v98
    %148 = vmatprep.subr.mxu0 0.0
    %149 = vmatpush1.msra.mxu0 %v99
    %150 = vmatprep.subr.mxu0 0.0
    %151 = vmatpush1.msra.mxu0 %v100
    %152 = vmatprep.subr.mxu0 0.0
    %153 = vmatpush1.msra.mxu0 %v101
    %154 = vmatprep.subr.mxu0 0.0
    %155 = vmatpush1.msra.mxu0 %v102
    %156 = vmatprep.subr.mxu0 0.0
    %157 = vmatpush1.msra.mxu0 %v103
    %158 = vmatprep.subr.mxu0 0.0
    %159 = vmatpush1.msra.mxu0 %v104
    %160 = vmatprep.subr.mxu0 0.0
    %161 = vmatpush1.msra.mxu0 %v105
    %162 = vmatprep.subr.mxu0 0.0
    %163 = vmatpush1.msra.mxu0 %v106
    %164 = vmatprep.subr.mxu0 0.0
    %165 = vmatpush1.msra.mxu0 %v107
    %166 = vmatprep.subr.mxu0 0.0
    %167 = vmatpush1.msra.mxu0 %v108
    %168 = vmatprep.subr.mxu0 0.0
    %169 = vmatpush1.msra.mxu0 %v109
    %170 = vmatprep.subr.mxu0 0.0
    %171 = vmatpush1.msra.mxu0 %v110
    %172 = vmatprep.subr.mxu0 0.0
    %173 = vmatpush1.msra.mxu0 %v111
    %174 = vmatprep.subr.mxu0 0.0
    %175 = vmatpush1.msra.mxu0 %v112
    %176 = vmatprep.subr.mxu0 0.0
    %177 = vmatpush1.msra.mxu0 %v113
    %178 = vmatprep.subr.mxu0 0.0
    %179 = vmatpush1.msra.mxu0 %v114
    %180 = vmatprep.subr.mxu0 0.0
    %181 = vmatpush1.msra.mxu0 %v115
    %182 = vmatprep.subr.mxu0 0.0
    %183 = vmatpush1.msra.mxu0 %v116
    %184 = vmatprep.subr.mxu0 0.0
    %185 = vmatpush1.msra.mxu0 %v117
    %186 = vmatprep.subr.mxu0 0.0
    %187 = vmatpush1.msra.mxu0 %v118
    %188 = vmatprep.subr.mxu0 0.0
    %189 = vmatpush1.msra.mxu0 %v119
    %190 = vmatprep.subr.mxu0 0.0
    %191 = vmatpush1.msra.mxu0 %v120
    %192 = vmatprep.mubr.f32.mxu0 %v86
    %193 = vmatmul.mubr.f32.gmra.mrb[0].mxu0 %v85
    %v194 = vpop.f32.mrb[0].mxu0
    %v195 = vadd.f32 %v126, %v194
    %v196 = vpop.f32.mrb[0].mxu0
    %197 = vmatprep.mubr.f32.mxu0 %v88
    %198 = vmatmul.mubr.f32.gmra.mrb[0].mxu0 %v87
    %v199 = vpop.f32.mrb[0].mxu0
    %v200 = vadd.f32 %v126, %v199
    %v201 = vpop.f32.mrb[0].mxu0
    %202 = vdwg.mxu0
    %v203 = vmax.f32 %v195, 0.0
    %v204 = vmax.f32 %v200, 0.0
    %v205 = vlaneseq
    %v206 = vand.u32 %v205, 127
    %vm207 = vcmp.ge.s32.totalorder %v206, 64
    %vm208 = vcmp.lt.s32.totalorder %v206, 96
    %vm209 = vmand %vm207, %vm208
    %v210 = vld [vmem:[%s5] sm:$0x1]
    %v211 = vld [vmem:[%s6] sm:$0x1]
    %v212 = vld [vmem:[%s3] sm:$0xff]
    %v213 = vld [vmem:[%s3 + $0x8] sm:$0xff]
    %v215 = vlaneseq
    %v216 = vshrl.u32 %v215, 7
    %v217 = vsub.s32 0, %v216
    %v218 = vrot.slane %v210, %v217
    %vm220 = vcmask 130048
    %v222 = vsel %vm220, %v203, 0
    %v225 = vsel %vm220, %v204, 0
    %227 = vmatprep.subr.mxu0 0.0
    %228 = vmatpush1.msra.mxu0 %v212
    %229 = vmatprep.subr.mxu0 0.0
    %230 = vmatpush1.msra.mxu0 %v213
    %231 = vmatprep.subr.mxu0 0.0
    %232 = vmatpush1.msra.mxu0 0.0
    %233 = vmatprep.subr.mxu0 0.0
    %234 = vmatpush1.msra.mxu0 0.0
    %235 = vmatprep.subr.mxu0 0.0
    %236 = vmatpush1.msra.mxu0 0.0
    %237 = vmatprep.subr.mxu0 0.0
    %238 = vmatpush1.msra.mxu0 0.0
    %239 = vmatprep.subr.mxu0 0.0
    %240 = vmatpush1.msra.mxu0 0.0
    %241 = vmatprep.subr.mxu0 0.0
    %242 = vmatpush1.msra.mxu0 0.0
    %243 = vmatprep.subr.mxu0 0.0
    %244 = vmatpush1.msra.mxu0 0.0
    %245 = vmatprep.subr.mxu0 0.0
    %246 = vmatpush1.msra.mxu0 0.0
    %247 = vmatprep.subr.mxu0 0.0
    %248 = vmatpush1.msra.mxu0 0.0
    %249 = vmatprep.subr.mxu0 0.0
    %250 = vmatpush1.msra.mxu0 0.0
    %251 = vmatprep.subr.mxu0 0.0
    %252 = vmatpush1.msra.mxu0 0.0
    %253 = vmatprep.subr.mxu0 0.0
    %254 = vmatpush1.msra.mxu0 0.0
    %255 = vmatprep.subr.mxu0 0.0
    %256 = vmatpush1.msra.mxu0 0.0
    %257 = vmatprep.subr.mxu0 0.0
    %258 = vmatpush1.msra.mxu0 0.0
    %259 = vmatprep.subr.mxu0 0.0
    %260 = vmatpush1.msra.mxu0 0.0
    %261 = vmatprep.subr.mxu0 0.0
    %262 = vmatpush1.msra.mxu0 0.0
    %263 = vmatprep.subr.mxu0 0.0
    %264 = vmatpush1.msra.mxu0 0.0
    %265 = vmatprep.subr.mxu0 0.0
    %266 = vmatpush1.msra.mxu0 0.0
    %267 = vmatprep.subr.mxu0 0.0
    %268 = vmatpush1.msra.mxu0 0.0
    %269 = vmatprep.subr.mxu0 0.0
    %270 = vmatpush1.msra.mxu0 0.0
    %271 = vmatprep.subr.mxu0 0.0
    %272 = vmatpush1.msra.mxu0 0.0
    %273 = vmatprep.subr.mxu0 0.0
    %274 = vmatpush1.msra.mxu0 0.0
    %275 = vmatprep.subr.mxu0 0.0
    %276 = vmatpush1.msra.mxu0 0.0
    %277 = vmatprep.subr.mxu0 0.0
    %278 = vmatpush1.msra.mxu0 0.0
    %279 = vmatprep.subr.mxu0 0.0
    %280 = vmatpush1.msra.mxu0 0.0
    %281 = vmatprep.subr.mxu0 0.0
    %282 = vmatpush1.msra.mxu0 0.0
    %283 = vmatprep.subr.mxu0 0.0
    %284 = vmatpush1.msra.mxu0 0.0
    %285 = vmatprep.subr.mxu0 0.0
    %286 = vmatpush1.msra.mxu0 0.0
    %287 = vmatprep.subr.mxu0 0.0
    %288 = vmatpush1.msra.mxu0 0.0
    %289 = vmatprep.subr.mxu0 0.0
    %290 = vmatpush1.msra.mxu0 0.0
    %291 = vmatprep.mubr.f32.mxu0 0.0
    %292 = vmatmul.mubr.f32.gmra.mrb[0].mxu0 %v222
    %v293 = vpop.f32.mrb[0].mxu0
    %v294 = vadd.f32 %v218, %v293
    %v295 = vpop.f32.mrb[0].mxu0
    %296 = vmatprep.mubr.f32.mxu0 0.0
    %297 = vmatmul.mubr.f32.gmra.mrb[0].mxu0 %v225
    %v298 = vpop.f32.mrb[0].mxu0
    %v299 = vadd.f32 %v218, %v298
    %v300 = vpop.f32.mrb[0].mxu0
    %301 = vdwg.mxu0
    %v304 = vcombine.high %v294, %v294
    %v306 = vunpack.c.l.s4 1983009808
    %v307 = vunpack.c.0.s8 %v306
    %v308 = vlaneseq
    %v309 = vshrl.u32 %v308, 7
    %v310 = vsub.s32 %v307, %v309
    %v311 = vrot.slane %v294, %v310
    %v313 = vunpack.c.l.s4 1983009808
    %v314 = vunpack.c.0.s8 %v313
    %v315 = vlaneseq
    %v316 = vshrl.u32 %v315, 7
    %v317 = vsub.s32 %v314, %v316
    %v318 = vrot.slane %v304, %v317
    %v319 = vcombine.high %v311, %v311
    %v320 = vcombine.high %v318, %v318
    %v321 = vcombine.high %v299, %v299
    %v323 = vunpack.c.l.s4 1983009808
    %v324 = vunpack.c.0.s8 %v323
    %v325 = vlaneseq
    %v326 = vshrl.u32 %v325, 7
    %v327 = vsub.s32 %v324, %v326
    %v328 = vrot.slane %v299, %v327
    %v330 = vunpack.c.l.s4 1983009808
    %v331 = vunpack.c.0.s8 %v330
    %v332 = vlaneseq
    %v333 = vshrl.u32 %v332, 7
    %v334 = vsub.s32 %v331, %v333
    %v335 = vrot.slane %v321, %v334
    %v336 = vcombine.high %v328, %v328
    %v337 = vcombine.high %v335, %v335
    %v346 = vld [vmem:[#allocation5] sm:$0xff]
    %v347 = vld [vmem:[#allocation5 + $0x8] sm:$0xff]
    %v349 = vlaneseq
    %v350 = vshrl.u32 %v349, 7
    %v351 = vsub.s32 0, %v350
    %v352 = vrot.slane %v211, %v351
    %354 = vmatprep.subr.mxu0 0.0
    %355 = vmatpush1.msra.mxu0 %v346
    %356 = vmatprep.subr.mxu0 0.0
    %357 = vmatpush1.msra.mxu0 %v347
    %358 = vmatprep.subr.mxu0 0.0
    %359 = vmatpush1.msra.mxu0 0.0
    %360 = vmatprep.subr.mxu0 0.0
    %361 = vmatpush1.msra.mxu0 0.0
    %362 = vmatprep.subr.mxu0 0.0
    %363 = vmatpush1.msra.mxu0 0.0
    %364 = vmatprep.subr.mxu0 0.0
    %365 = vmatpush1.msra.mxu0 0.0
    %366 = vmatprep.subr.mxu0 0.0
    %367 = vmatpush1.msra.mxu0 0.0
    %368 = vmatprep.subr.mxu0 0.0
    %369 = vmatpush1.msra.mxu0 0.0
    %370 = vmatprep.subr.mxu0 0.0
    %371 = vmatpush1.msra.mxu0 0.0
    %372 = vmatprep.subr.mxu0 0.0
    %373 = vmatpush1.msra.mxu0 0.0
    %374 = vmatprep.subr.mxu0 0.0
    %375 = vmatpush1.msra.mxu0 0.0
    %376 = vmatprep.subr.mxu0 0.0
    %377 = vmatpush1.msra.mxu0 0.0
    %378 = vmatprep.subr.mxu0 0.0
    %379 = vmatpush1.msra.mxu0 0.0
    %380 = vmatprep.subr.mxu0 0.0
    %381 = vmatpush1.msra.mxu0 0.0
    %382 = vmatprep.subr.mxu0 0.0
    %383 = vmatpush1.msra.mxu0 0.0
    %384 = vmatprep.subr.mxu0 0.0
    %385 = vmatpush1.msra.mxu0 0.0
    %386 = vmatprep.subr.mxu0 0.0
    %387 = vmatpush1.msra.mxu0 0.0
    %388 = vmatprep.subr.mxu0 0.0
    %389 = vmatpush1.msra.mxu0 0.0
    %390 = vmatprep.subr.mxu0 0.0
    %391 = vmatpush1.msra.mxu0 0.0
    %392 = vmatprep.subr.mxu0 0.0
    %393 = vmatpush1.msra.mxu0 0.0
    %394 = vmatprep.subr.mxu0 0.0
    %395 = vmatpush1.msra.mxu0 0.0
    %396 = vmatprep.subr.mxu0 0.0
    %397 = vmatpush1.msra.mxu0 0.0
    %398 = vmatprep.subr.mxu0 0.0
    %399 = vmatpush1.msra.mxu0 0.0
    %400 = vmatprep.subr.mxu0 0.0
    %401 = vmatpush1.msra.mxu0 0.0
    %402 = vmatprep.subr.mxu0 0.0
    %403 = vmatpush1.msra.mxu0 0.0
    %404 = vmatprep.subr.mxu0 0.0
    %405 = vmatpush1.msra.mxu0 0.0
    %406 = vmatprep.subr.mxu0 0.0
    %407 = vmatpush1.msra.mxu0 0.0
    %408 = vmatprep.subr.mxu0 0.0
    %409 = vmatpush1.msra.mxu0 0.0
    %410 = vmatprep.subr.mxu0 0.0
    %411 = vmatpush1.msra.mxu0 0.0
    %412 = vmatprep.subr.mxu0 0.0
    %413 = vmatpush1.msra.mxu0 0.0
    %414 = vmatprep.subr.mxu0 0.0
    %415 = vmatpush1.msra.mxu0 0.0
    %416 = vmatprep.subr.mxu0 0.0
    %417 = vmatpush1.msra.mxu0 0.0
    %418 = vmatprep.mubr.f32.mxu0 0.0
    %419 = vmatmul.mubr.f32.gmra.mrb[0].mxu0 %v222
    %v420 = vpop.f32.mrb[0].mxu0
    %v421 = vadd.f32 %v352, %v420
    %v422 = vpop.f32.mrb[0].mxu0
    %423 = vmatprep.mubr.f32.mxu0 0.0
    %424 = vmatmul.mubr.f32.gmra.mrb[0].mxu0 %v225
    %v425 = vpop.f32.mrb[0].mxu0
    %v426 = vadd.f32 %v352, %v425
    %v427 = vpop.f32.mrb[0].mxu0
    %428 = vdwg.mxu0
    %v431 = vcombine.high %v421, %v421
    %v433 = vunpack.c.l.s4 1983009808
    %v434 = vunpack.c.0.s8 %v433
    %v435 = vlaneseq
    %v436 = vshrl.u32 %v435, 7
    %v437 = vsub.s32 %v434, %v436
    %v438 = vrot.slane %v421, %v437
    %v440 = vunpack.c.l.s4 1983009808
    %v441 = vunpack.c.0.s8 %v440
    %v442 = vlaneseq
    %v443 = vshrl.u32 %v442, 7
    %v444 = vsub.s32 %v441, %v443
    %v445 = vrot.slane %v431, %v444
    %v446 = vcombine.high %v438, %v438
    %v447 = vcombine.high %v445, %v445
    %v448 = vcombine.high %v426, %v426
    %v450 = vunpack.c.l.s4 1983009808
    %v451 = vunpack.c.0.s8 %v450
    %v452 = vlaneseq
    %v453 = vshrl.u32 %v452, 7
    %v454 = vsub.s32 %v451, %v453
    %v455 = vrot.slane %v426, %v454
    %v457 = vunpack.c.l.s4 1983009808
    %v458 = vunpack.c.0.s8 %v457
    %v459 = vlaneseq
    %v460 = vshrl.u32 %v459, 7
    %v461 = vsub.s32 %v458, %v460
    %v462 = vrot.slane %v448, %v461
    %v463 = vcombine.high %v455, %v455
    %v464 = vcombine.high %v462, %v462
    %v473 = vld [vmem:[%s7] sm:$0xff]
    %v474 = vld [vmem:[%s7 + $0x8] sm:$0xff]
    %v475 = vld [vmem:[%s7 + $0x10] sm:$0xff]
    %v476 = vld [vmem:[%s7 + $0x18] sm:$0xff]
    %v477 = vld [vmem:[%s7 + $0x20] sm:$0xff]
    %v478 = vld [vmem:[%s7 + $0x28] sm:$0xff]
    %v479 = vld [vmem:[%s7 + $0x30] sm:$0xff]
    %v480 = vld [vmem:[%s7 + $0x38] sm:$0xff]
    %v481 = vld [vmem:[%s7 + $0x40] sm:$0xff]
    %v482 = vld [vmem:[%s7 + $0x48] sm:$0xff]
    %v483 = vld [vmem:[%s7 + $0x50] sm:$0xff]
    %v484 = vld [vmem:[%s7 + $0x58] sm:$0xff]
    %v485 = vld [vmem:[%s7 + $0x60] sm:$0xff]
    %v486 = vld [vmem:[%s7 + $0x68] sm:$0xff]
    %v487 = vld [vmem:[%s7 + $0x70] sm:$0xff]
    %v488 = vld [vmem:[%s7 + $0x78] sm:$0xff]
    %vm489 = vcmask 523264
    %v491 = vsel %vm489, 0.0, 0
    %493 = vmatprep.subr.mxu0 %v474
    %494 = vmatpush1.msra.mxu0 %v473
    %495 = vmatprep.subr.mxu0 %v476
    %496 = vmatpush1.msra.mxu0 %v475
    %497 = vmatprep.subr.mxu0 %v478
    %498 = vmatpush1.msra.mxu0 %v477
    %499 = vmatprep.subr.mxu0 %v480
    %500 = vmatpush1.msra.mxu0 %v479
    %501 = vmatprep.subr.mxu0 %v482
    %502 = vmatpush1.msra.mxu0 %v481
    %503 = vmatprep.subr.mxu0 %v484
    %504 = vmatpush1.msra.mxu0 %v483
    %505 = vmatprep.subr.mxu0 %v486
    %506 = vmatpush1.msra.mxu0 %v485
    %507 = vmatprep.subr.mxu0 %v488
    %508 = vmatpush1.msra.mxu0 %v487
    %509 = vmatprep.subr.mxu0 0.0
    %510 = vmatpush1.msra.mxu0 0.0
    %511 = vmatprep.subr.mxu0 0.0
    %512 = vmatpush1.msra.mxu0 0.0
    %513 = vmatprep.subr.mxu0 0.0
    %514 = vmatpush1.msra.mxu0 0.0
    %515 = vmatprep.subr.mxu0 0.0
    %516 = vmatpush1.msra.mxu0 0.0
    %517 = vmatprep.subr.mxu0 0.0
    %518 = vmatpush1.msra.mxu0 0.0
    %519 = vmatprep.subr.mxu0 0.0
    %520 = vmatpush1.msra.mxu0 0.0
    %521 = vmatprep.subr.mxu0 0.0
    %522 = vmatpush1.msra.mxu0 0.0
    %523 = vmatprep.subr.mxu0 0.0
    %524 = vmatpush1.msra.mxu0 0.0
    %525 = vmatprep.subr.mxu0 0.0
    %526 = vmatpush1.msra.mxu0 0.0
    %527 = vmatprep.subr.mxu0 0.0
    %528 = vmatpush1.msra.mxu0 0.0
    %529 = vmatprep.subr.mxu0 0.0
    %530 = vmatpush1.msra.mxu0 0.0
    %531 = vmatprep.subr.mxu0 0.0
    %532 = vmatpush1.msra.mxu0 0.0
    %533 = vmatprep.subr.mxu0 0.0
    %534 = vmatpush1.msra.mxu0 0.0
    %535 = vmatprep.subr.mxu0 0.0
    %536 = vmatpush1.msra.mxu0 0.0
    %537 = vmatprep.subr.mxu0 0.0
    %538 = vmatpush1.msra.mxu0 0.0
    %539 = vmatprep.subr.mxu0 0.0
    %540 = vmatpush1.msra.mxu0 0.0
    %541 = vmatprep.subr.mxu0 0.0
    %542 = vmatpush1.msra.mxu0 0.0
    %543 = vmatprep.subr.mxu0 0.0
    %544 = vmatpush1.msra.mxu0 0.0
    %545 = vmatprep.subr.mxu0 0.0
    %546 = vmatpush1.msra.mxu0 0.0
    %547 = vmatprep.subr.mxu0 0.0
    %548 = vmatpush1.msra.mxu0 0.0
    %549 = vmatprep.subr.mxu0 0.0
    %550 = vmatpush1.msra.mxu0 0.0
    %551 = vmatprep.subr.mxu0 0.0
    %552 = vmatpush1.msra.mxu0 0.0
    %553 = vmatprep.subr.mxu0 0.0
    %554 = vmatpush1.msra.mxu0 0.0
    %555 = vmatprep.subr.mxu0 0.0
    %556 = vmatpush1.msra.mxu0 0.0
    %557 = vmatprep.mubr.f32.mxu0 0.0
    %558 = vmatmul.mubr.f32.gmra.mrb[0].mxu0 %v491
    %v559 = vpop.f32.mrb[0].mxu0
    %v560 = vadd.f32 0.0, %v559
    %v561 = vpop.f32.mrb[0].mxu0
    %v562 = vadd.f32 0.0, %v561
    %563 = vdwg.mxu0
    %v564 = vadd.f32 %v311, %v560
    %v565 = vadd.f32 %v464, %v562
    %v566 = vxor.u32 %v564, 2147483648
    %v567 = vmul.f32 %v566, 1.442695
    %v568 = vpow.pop %v567
    %v569 = vadd.f32 %v568, 1.0
    %v570 = vrcp.pop %v569
    %v571 = vmul.f32 1.0, %v570
    %v572 = vtanh.pop %v564
    %v573 = vsel %vm209, %v572, %v571
    %v574 = vmul.f32 %v573, 0.0
    %576 = vrot.lane.b32.xlu0 %v573, 64
    %v577 = vpop.permute.xlu0 %576
    %v579 = vmul.f32 %v573, %v577
    %581 = vrot.lane.b32.xlu0 %v579, 32
    %v582 = vpop.permute.xlu0 %581
    %v584 = vadd.f32 %v574, %v582
    %v585 = vtanh.pop %v584
    %587 = vrot.lane.b32.xlu0 %v585, 64
    %v588 = vpop.permute.xlu0 %587
    %v590 = vmul.f32 %v573, %v588
    %v591 = vxor.u32 %v565, 2147483648
    %v592 = vmul.f32 %v591, 1.442695
    %v593 = vpow.pop %v592
    %v594 = vadd.f32 %v593, 1.0
    %v595 = vrcp.pop %v594
    %v596 = vmul.f32 1.0, %v595
    %v597 = vtanh.pop %v565
    %v598 = vsel %vm209, %v597, %v596
    %v599 = vmul.f32 %v598, 0.0
    %601 = vrot.lane.b32.xlu0 %v598, 64
    %v602 = vpop.permute.xlu0 %601
    %v604 = vmul.f32 %v598, %v602
    %606 = vrot.lane.b32.xlu0 %v604, 32
    %v607 = vpop.permute.xlu0 %606
    %v609 = vadd.f32 %v599, %v607
    %v610 = vtanh.pop %v609
    %612 = vrot.lane.b32.xlu0 %v610, 64
    %v613 = vpop.permute.xlu0 %612
    %v615 = vmul.f32 %v598, %v613
    %617 = vrot.lane.b32.xlu0 %v590, 32
    %v618 = vpop.permute.xlu0 %617
    %621 = vrot.lane.b32.xlu0 %v615, 64
    %v622 = vpop.permute.xlu0 %621
    %vm624 = vcmask 261120
    %v625 = vsel %vm624, %v618, %v622
    %v627 = vsel %vm489, %v625, 0
    %629 = vmatprep.subr.mxu0 %v474
    %630 = vmatpush1.msra.mxu0 %v473
    %631 = vmatprep.subr.mxu0 %v476
    %632 = vmatpush1.msra.mxu0 %v475
    %633 = vmatprep.subr.mxu0 %v478
    %634 = vmatpush1.msra.mxu0 %v477
    %635 = vmatprep.subr.mxu0 %v480
    %636 = vmatpush1.msra.mxu0 %v479
    %637 = vmatprep.subr.mxu0 %v482
    %638 = vmatpush1.msra.mxu0 %v481
    %639 = vmatprep.subr.mxu0 %v484
    %640 = vmatpush1.msra.mxu0 %v483
    %641 = vmatprep.subr.mxu0 %v486
    %642 = vmatpush1.msra.mxu0 %v485
    %643 = vmatprep.subr.mxu0 %v488
    %644 = vmatpush1.msra.mxu0 %v487
    %645 = vmatprep.subr.mxu0 0.0
    %646 = vmatpush1.msra.mxu0 0.0
    %647 = vmatprep.subr.mxu0 0.0
    %648 = vmatpush1.msra.mxu0 0.0
    %649 = vmatprep.subr.mxu0 0.0
    %650 = vmatpush1.msra.mxu0 0.0
    %651 = vmatprep.subr.mxu0 0.0
    %652 = vmatpush1.msra.mxu0 0.0
    %653 = vmatprep.subr.mxu0 0.0
    %654 = vmatpush1.msra.mxu0 0.0
    %655 = vmatprep.subr.mxu0 0.0
    %656 = vmatpush1.msra.mxu0 0.0
    %657 = vmatprep.subr.mxu0 0.0
    %658 = vmatpush1.msra.mxu0 0.0
    %659 = vmatprep.subr.mxu0 0.0
    %660 = vmatpush1.msra.mxu0 0.0
    %661 = vmatprep.subr.mxu0 0.0
    %662 = vmatpush1.msra.mxu0 0.0
    %663 = vmatprep.subr.mxu0 0.0
    %664 = vmatpush1.msra.mxu0 0.0
    %665 = vmatprep.subr.mxu0 0.0
    %666 = vmatpush1.msra.mxu0 0.0
    %667 = vmatprep.subr.mxu0 0.0
    %668 = vmatpush1.msra.mxu0 0.0
    %669 = vmatprep.subr.mxu0 0.0
    %670 = vmatpush1.msra.mxu0 0.0
    %671 = vmatprep.subr.mxu0 0.0
    %672 = vmatpush1.msra.mxu0 0.0
    %673 = vmatprep.subr.mxu0 0.0
    %674 = vmatpush1.msra.mxu0 0.0
    %675 = vmatprep.subr.mxu0 0.0
    %676 = vmatpush1.msra.mxu0 0.0
    %677 = vmatprep.subr.mxu0 0.0
    %678 = vmatpush1.msra.mxu0 0.0
    %679 = vmatprep.subr.mxu0 0.0
    %680 = vmatpush1.msra.mxu0 0.0
    %681 = vmatprep.subr.mxu0 0.0
    %682 = vmatpush1.msra.mxu0 0.0
    %683 = vmatprep.subr.mxu0 0.0
    %684 = vmatpush1.msra.mxu0 0.0
    %685 = vmatprep.subr.mxu0 0.0
    %686 = vmatpush1.msra.mxu0 0.0
    %687 = vmatprep.subr.mxu0 0.0
    %688 = vmatpush1.msra.mxu0 0.0
    %689 = vmatprep.subr.mxu0 0.0
    %690 = vmatpush1.msra.mxu0 0.0
    %691 = vmatprep.subr.mxu0 0.0
    %692 = vmatpush1.msra.mxu0 0.0
    %693 = vmatprep.mubr.f32.mxu0 0.0
    %694 = vmatmul.mubr.f32.gmra.mrb[0].mxu0 %v627
    %v695 = vpop.f32.mrb[0].mxu0
    %v696 = vadd.f32 0.0, %v695
    %v697 = vpop.f32.mrb[0].mxu0
    %v698 = vadd.f32 0.0, %v697
    %699 = vdwg.mxu0
    %v700 = vadd.f32 %v319, %v696
    %v701 = vadd.f32 %v462, %v698
    %v702 = vxor.u32 %v700, 2147483648
    %v703 = vmul.f32 %v702, 1.442695
    %v704 = vpow.pop %v703
    %v705 = vadd.f32 %v704, 1.0
    %v706 = vrcp.pop %v705
    %v707 = vmul.f32 1.0, %v706
    %v708 = vtanh.pop %v700
    %v709 = vsel %vm209, %v708, %v707
    %v710 = vmul.f32 %v709, %v584
    %712 = vrot.lane.b32.xlu0 %v709, 64
    %v713 = vpop.permute.xlu0 %712
    %v715 = vmul.f32 %v709, %v713
    %717 = vrot.lane.b32.xlu0 %v715, 32
    %v718 = vpop.permute.xlu0 %717
    %v720 = vadd.f32 %v710, %v718
    %v721 = vtanh.pop %v720
    %723 = vrot.lane.b32.xlu0 %v721, 64
    %v724 = vpop.permute.xlu0 %723
    %v726 = vmul.f32 %v709, %v724
    %v727 = vxor.u32 %v701, 2147483648
    %v728 = vmul.f32 %v727, 1.442695
    %v729 = vpow.pop %v728
    %v730 = vadd.f32 %v729, 1.0
    %v731 = vrcp.pop %v730
    %v732 = vmul.f32 1.0, %v731
    %v733 = vtanh.pop %v701
    %v734 = vsel %vm209, %v733, %v732
    %v735 = vmul.f32 %v734, %v609
    %737 = vrot.lane.b32.xlu0 %v734, 64
    %v738 = vpop.permute.xlu0 %737
    %v740 = vmul.f32 %v734, %v738
    %742 = vrot.lane.b32.xlu0 %v740, 32
    %v743 = vpop.permute.xlu0 %742
    %v745 = vadd.f32 %v735, %v743
    %v746 = vtanh.pop %v745
    %748 = vrot.lane.b32.xlu0 %v746, 64
    %v749 = vpop.permute.xlu0 %748
    %v751 = vmul.f32 %v734, %v749
    %753 = vrot.lane.b32.xlu0 %v726, 32
    %v754 = vpop.permute.xlu0 %753
    %757 = vrot.lane.b32.xlu0 %v751, 64
    %v758 = vpop.permute.xlu0 %757
    %v760 = vsel %vm624, %v754, %v758
    %v762 = vsel %vm489, %v760, 0
    %764 = vmatprep.subr.mxu0 %v474
    %765 = vmatpush1.msra.mxu0 %v473
    %766 = vmatprep.subr.mxu0 %v476
    %767 = vmatpush1.msra.mxu0 %v475
    %768 = vmatprep.subr.mxu0 %v478
    %769 = vmatpush1.msra.mxu0 %v477
    %770 = vmatprep.subr.mxu0 %v480
    %771 = vmatpush1.msra.mxu0 %v479
    %772 = vmatprep.subr.mxu0 %v482
    %773 = vmatpush1.msra.mxu0 %v481
    %774 = vmatprep.subr.mxu0 %v484
    %775 = vmatpush1.msra.mxu0 %v483
    %776 = vmatprep.subr.mxu0 %v486
    %777 = vmatpush1.msra.mxu0 %v485
    %778 = vmatprep.subr.mxu0 %v488
    %779 = vmatpush1.msra.mxu0 %v487
    %780 = vmatprep.subr.mxu0 0.0
    %781 = vmatpush1.msra.mxu0 0.0
    %782 = vmatprep.subr.mxu0 0.0
    %783 = vmatpush1.msra.mxu0 0.0
    %784 = vmatprep.subr.mxu0 0.0
    %785 = vmatpush1.msra.mxu0 0.0
    %786 = vmatprep.subr.mxu0 0.0
    %787 = vmatpush1.msra.mxu0 0.0
    %788 = vmatprep.subr.mxu0 0.0
    %789 = vmatpush1.msra.mxu0 0.0
    %790 = vmatprep.subr.mxu0 0.0
    %791 = vmatpush1.msra.mxu0 0.0
    %792 = vmatprep.subr.mxu0 0.0
    %793 = vmatpush1.msra.mxu0 0.0
    %794 = vmatprep.subr.mxu0 0.0
    %795 = vmatpush1.msra.mxu0 0.0
    %796 = vmatprep.subr.mxu0 0.0
    %797 = vmatpush1.msra.mxu0 0.0
    %798 = vmatprep.subr.mxu0 0.0
    %799 = vmatpush1.msra.mxu0 0.0
    %800 = vmatprep.subr.mxu0 0.0
    %801 = vmatpush1.msra.mxu0 0.0
    %802 = vmatprep.subr.mxu0 0.0
    %803 = vmatpush1.msra.mxu0 0.0
    %804 = vmatprep.subr.mxu0 0.0
    %805 = vmatpush1.msra.mxu0 0.0
    %806 = vmatprep.subr.mxu0 0.0
    %807 = vmatpush1.msra.mxu0 0.0
    %808 = vmatprep.subr.mxu0 0.0
    %809 = vmatpush1.msra.mxu0 0.0
    %810 = vmatprep.subr.mxu0 0.0
    %811 = vmatpush1.msra.mxu0 0.0
    %812 = vmatprep.subr.mxu0 0.0
    %813 = vmatpush1.msra.mxu0 0.0
    %814 = vmatprep.subr.mxu0 0.0
    %815 = vmatpush1.msra.mxu0 0.0
    %816 = vmatprep.subr.mxu0 0.0
    %817 = vmatpush1.msra.mxu0 0.0
    %818 = vmatprep.subr.mxu0 0.0
    %819 = vmatpush1.msra.mxu0 0.0
    %820 = vmatprep.subr.mxu0 0.0
    %821 = vmatpush1.msra.mxu0 0.0
    %822 = vmatprep.subr.mxu0 0.0
    %823 = vmatpush1.msra.mxu0 0.0
    %824 = vmatprep.subr.mxu0 0.0
    %825 = vmatpush1.msra.mxu0 0.0
    %826 = vmatprep.subr.mxu0 0.0
    %827 = vmatpush1.msra.mxu0 0.0
    %828 = vmatprep.mubr.f32.mxu0 0.0
    %829 = vmatmul.mubr.f32.gmra.mrb[0].mxu0 %v762
    %v830 = vpop.f32.mrb[0].mxu0
    %v831 = vadd.f32 0.0, %v830
    %v832 = vpop.f32.mrb[0].mxu0
    %v833 = vadd.f32 0.0, %v832
    %834 = vdwg.mxu0
    %v835 = vadd.f32 %v318, %v831
    %v836 = vadd.f32 %v463, %v833
    %v837 = vxor.u32 %v835, 2147483648
    %v838 = vmul.f32 %v837, 1.442695
    %v839 = vpow.pop %v838
    %v840 = vadd.f32 %v839, 1.0
    %v841 = vrcp.pop %v840
    %v842 = vmul.f32 1.0, %v841
    %v843 = vtanh.pop %v835
    %v844 = vsel %vm209, %v843, %v842
    %v845 = vmul.f32 %v844, %v720
    %847 = vrot.lane.b32.xlu0 %v844, 64
    %v848 = vpop.permute.xlu0 %847
    %v850 = vmul.f32 %v844, %v848
    %852 = vrot.lane.b32.xlu0 %v850, 32
    %v853 = vpop.permute.xlu0 %852
    %v855 = vadd.f32 %v845, %v853
    %v856 = vtanh.pop %v855
    %858 = vrot.lane.b32.xlu0 %v856, 64
    %v859 = vpop.permute.xlu0 %858
    %v861 = vmul.f32 %v844, %v859
    %v862 = vxor.u32 %v836, 2147483648
    %v863 = vmul.f32 %v862, 1.442695
    %v864 = vpow.pop %v863
    %v865 = vadd.f32 %v864, 1.0
    %v866 = vrcp.pop %v865
    %v867 = vmul.f32 1.0, %v866
    %v868 = vtanh.pop %v836
    %v869 = vsel %vm209, %v868, %v867
    %v870 = vmul.f32 %v869, %v745
    %872 = vrot.lane.b32.xlu0 %v869, 64
    %v873 = vpop.permute.xlu0 %872
    %v875 = vmul.f32 %v869, %v873
    %877 = vrot.lane.b32.xlu0 %v875, 32
    %v878 = vpop.permute.xlu0 %877
    %v880 = vadd.f32 %v870, %v878
    %v881 = vtanh.pop %v880
    %883 = vrot.lane.b32.xlu0 %v881, 64
    %v884 = vpop.permute.xlu0 %883
    %v886 = vmul.f32 %v869, %v884
    %888 = vrot.lane.b32.xlu0 %v861, 32
    %v889 = vpop.permute.xlu0 %888
    %892 = vrot.lane.b32.xlu0 %v886, 64
    %v893 = vpop.permute.xlu0 %892
    %v895 = vsel %vm624, %v889, %v893
    %v897 = vsel %vm489, %v895, 0
    %899 = vmatprep.subr.mxu0 %v474
    %900 = vmatpush1.msra.mxu0 %v473
    %901 = vmatprep.subr.mxu0 %v476
    %902 = vmatpush1.msra.mxu0 %v475
    %903 = vmatprep.subr.mxu0 %v478
    %904 = vmatpush1.msra.mxu0 %v477
    %905 = vmatprep.subr.mxu0 %v480
    %906 = vmatpush1.msra.mxu0 %v479
    %907 = vmatprep.subr.mxu0 %v482
    %908 = vmatpush1.msra.mxu0 %v481
    %909 = vmatprep.subr.mxu0 %v484
    %910 = vmatpush1.msra.mxu0 %v483
    %911 = vmatprep.subr.mxu0 %v486
    %912 = vmatpush1.msra.mxu0 %v485
    %913 = vmatprep.subr.mxu0 %v488
    %914 = vmatpush1.msra.mxu0 %v487
    %915 = vmatprep.subr.mxu0 0.0
    %916 = vmatpush1.msra.mxu0 0.0
    %917 = vmatprep.subr.mxu0 0.0
    %918 = vmatpush1.msra.mxu0 0.0
    %919 = vmatprep.subr.mxu0 0.0
    %920 = vmatpush1.msra.mxu0 0.0
    %921 = vmatprep.subr.mxu0 0.0
    %922 = vmatpush1.msra.mxu0 0.0
    %923 = vmatprep.subr.mxu0 0.0
    %924 = vmatpush1.msra.mxu0 0.0
    %925 = vmatprep.subr.mxu0 0.0
    %926 = vmatpush1.msra.mxu0 0.0
    %927 = vmatprep.subr.mxu0 0.0
    %928 = vmatpush1.msra.mxu0 0.0
    %929 = vmatprep.subr.mxu0 0.0
    %930 = vmatpush1.msra.mxu0 0.0
    %931 = vmatprep.subr.mxu0 0.0
    %932 = vmatpush1.msra.mxu0 0.0
    %933 = vmatprep.subr.mxu0 0.0
    %934 = vmatpush1.msra.mxu0 0.0
    %935 = vmatprep.subr.mxu0 0.0
    %936 = vmatpush1.msra.mxu0 0.0
    %937 = vmatprep.subr.mxu0 0.0
    %938 = vmatpush1.msra.mxu0 0.0
    %939 = vmatprep.subr.mxu0 0.0
    %940 = vmatpush1.msra.mxu0 0.0
    %941 = vmatprep.subr.mxu0 0.0
    %942 = vmatpush1.msra.mxu0 0.0
    %943 = vmatprep.subr.mxu0 0.0
    %944 = vmatpush1.msra.mxu0 0.0
    %945 = vmatprep.subr.mxu0 0.0
    %946 = vmatpush1.msra.mxu0 0.0
    %947 = vmatprep.subr.mxu0 0.0
    %948 = vmatpush1.msra.mxu0 0.0
    %949 = vmatprep.subr.mxu0 0.0
    %950 = vmatpush1.msra.mxu0 0.0
    %951 = vmatprep.subr.mxu0 0.0
    %952 = vmatpush1.msra.mxu0 0.0
    %953 = vmatprep.subr.mxu0 0.0
    %954 = vmatpush1.msra.mxu0 0.0
    %955 = vmatprep.subr.mxu0 0.0
    %956 = vmatpush1.msra.mxu0 0.0
    %957 = vmatprep.subr.mxu0 0.0
    %958 = vmatpush1.msra.mxu0 0.0
    %959 = vmatprep.subr.mxu0 0.0
    %960 = vmatpush1.msra.mxu0 0.0
    %961 = vmatprep.subr.mxu0 0.0
    %962 = vmatpush1.msra.mxu0 0.0
    %963 = vmatprep.mubr.f32.mxu0 0.0
    %964 = vmatmul.mubr.f32.gmra.mrb[0].mxu0 %v897
    %v965 = vpop.f32.mrb[0].mxu0
    %v966 = vadd.f32 0.0, %v965
    %v967 = vpop.f32.mrb[0].mxu0
    %v968 = vadd.f32 0.0, %v967
    %969 = vdwg.mxu0
    %v970 = vadd.f32 %v320, %v966
    %v971 = vadd.f32 %v455, %v968
    %v972 = vxor.u32 %v970, 2147483648
    %v973 = vmul.f32 %v972, 1.442695
    %v974 = vpow.pop %v973
    %v975 = vadd.f32 %v974, 1.0
    %v976 = vrcp.pop %v975
    %v977 = vmul.f32 1.0, %v976
    %v978 = vtanh.pop %v970
    %v979 = vsel %vm209, %v978, %v977
    %v980 = vmul.f32 %v979, %v855
    %982 = vrot.lane.b32.xlu0 %v979, 64
    %v983 = vpop.permute.xlu0 %982
    %v985 = vmul.f32 %v979, %v983
    %987 = vrot.lane.b32.xlu0 %v985, 32
    %v988 = vpop.permute.xlu0 %987
    %v990 = vadd.f32 %v980, %v988
    %v991 = vtanh.pop %v990
    %993 = vrot.lane.b32.xlu0 %v991, 64
    %v994 = vpop.permute.xlu0 %993
    %v996 = vmul.f32 %v979, %v994
    %v997 = vxor.u32 %v971, 2147483648
    %v998 = vmul.f32 %v997, 1.442695
    %v999 = vpow.pop %v998
    %v1000 = vadd.f32 %v999, 1.0
    %v1001 = vrcp.pop %v1000
    %v1002 = vmul.f32 1.0, %v1001
    %v1003 = vtanh.pop %v971
    %v1004 = vsel %vm209, %v1003, %v1002
    %v1005 = vmul.f32 %v1004, %v880
    %1007 = vrot.lane.b32.xlu0 %v1004, 64
    %v1008 = vpop.permute.xlu0 %1007
    %v1010 = vmul.f32 %v1004, %v1008
    %1012 = vrot.lane.b32.xlu0 %v1010, 32
    %v1013 = vpop.permute.xlu0 %1012
    %v1015 = vadd.f32 %v1005, %v1013
    %v1016 = vtanh.pop %v1015
    %1018 = vrot.lane.b32.xlu0 %v1016, 64
    %v1019 = vpop.permute.xlu0 %1018
    %v1021 = vmul.f32 %v1004, %v1019
    %1023 = vrot.lane.b32.xlu0 %v996, 32
    %v1024 = vpop.permute.xlu0 %1023
    %1027 = vrot.lane.b32.xlu0 %v1021, 64
    %v1028 = vpop.permute.xlu0 %1027
    %v1030 = vsel %vm624, %v1024, %v1028
    %v1032 = vsel %vm489, %v1030, 0
    %1034 = vmatprep.subr.mxu0 %v474
    %1035 = vmatpush1.msra.mxu0 %v473
    %1036 = vmatprep.subr.mxu0 %v476
    %1037 = vmatpush1.msra.mxu0 %v475
    %1038 = vmatprep.subr.mxu0 %v478
    %1039 = vmatpush1.msra.mxu0 %v477
    %1040 = vmatprep.subr.mxu0 %v480
    %1041 = vmatpush1.msra.mxu0 %v479
    %1042 = vmatprep.subr.mxu0 %v482
    %1043 = vmatpush1.msra.mxu0 %v481
    %1044 = vmatprep.subr.mxu0 %v484
    %1045 = vmatpush1.msra.mxu0 %v483
    %1046 = vmatprep.subr.mxu0 %v486
    %1047 = vmatpush1.msra.mxu0 %v485
    %1048 = vmatprep.subr.mxu0 %v488
    %1049 = vmatpush1.msra.mxu0 %v487
    %1050 = vmatprep.subr.mxu0 0.0
    %1051 = vmatpush1.msra.mxu0 0.0
    %1052 = vmatprep.subr.mxu0 0.0
    %1053 = vmatpush1.msra.mxu0 0.0
    %1054 = vmatprep.subr.mxu0 0.0
    %1055 = vmatpush1.msra.mxu0 0.0
    %1056 = vmatprep.subr.mxu0 0.0
    %1057 = vmatpush1.msra.mxu0 0.0
    %1058 = vmatprep.subr.mxu0 0.0
    %1059 = vmatpush1.msra.mxu0 0.0
    %1060 = vmatprep.subr.mxu0 0.0
    %1061 = vmatpush1.msra.mxu0 0.0
    %1062 = vmatprep.subr.mxu0 0.0
    %1063 = vmatpush1.msra.mxu0 0.0
    %1064 = vmatprep.subr.mxu0 0.0
    %1065 = vmatpush1.msra.mxu0 0.0
    %1066 = vmatprep.subr.mxu0 0.0
    %1067 = vmatpush1.msra.mxu0 0.0
    %1068 = vmatprep.subr.mxu0 0.0
    %1069 = vmatpush1.msra.mxu0 0.0
    %1070 = vmatprep.subr.mxu0 0.0
    %1071 = vmatpush1.msra.mxu0 0.0
    %1072 = vmatprep.subr.mxu0 0.0
    %1073 = vmatpush1.msra.mxu0 0.0
    %1074 = vmatprep.subr.mxu0 0.0
    %1075 = vmatpush1.msra.mxu0 0.0
    %1076 = vmatprep.subr.mxu0 0.0
    %1077 = vmatpush1.msra.mxu0 0.0
    %1078 = vmatprep.subr.mxu0 0.0
    %1079 = vmatpush1.msra.mxu0 0.0
    %1080 = vmatprep.subr.mxu0 0.0
    %1081 = vmatpush1.msra.mxu0 0.0
    %1082 = vmatprep.subr.mxu0 0.0
    %1083 = vmatpush1.msra.mxu0 0.0
    %1084 = vmatprep.subr.mxu0 0.0
    %1085 = vmatpush1.msra.mxu0 0.0
    %1086 = vmatprep.subr.mxu0 0.0
    %1087 = vmatpush1.msra.mxu0 0.0
    %1088 = vmatprep.subr.mxu0 0.0
    %1089 = vmatpush1.msra.mxu0 0.0
    %1090 = vmatprep.subr.mxu0 0.0
    %1091 = vmatpush1.msra.mxu0 0.0
    %1092 = vmatprep.subr.mxu0 0.0
    %1093 = vmatpush1.msra.mxu0 0.0
    %1094 = vmatprep.subr.mxu0 0.0
    %1095 = vmatpush1.msra.mxu0 0.0
    %1096 = vmatprep.subr.mxu0 0.0
    %1097 = vmatpush1.msra.mxu0 0.0
    %1098 = vmatprep.mubr.f32.mxu0 0.0
    %1099 = vmatmul.mubr.f32.gmra.mrb[0].mxu0 %v1032
    %v1100 = vpop.f32.mrb[0].mxu0
    %v1101 = vadd.f32 0.0, %v1100
    %v1102 = vpop.f32.mrb[0].mxu0
    %v1103 = vadd.f32 0.0, %v1102
    %1104 = vdwg.mxu0
    %v1105 = vadd.f32 %v328, %v1101
    %v1106 = vadd.f32 %v447, %v1103
    %v1107 = vxor.u32 %v1105, 2147483648
    %v1108 = vmul.f32 %v1107, 1.442695
    %v1109 = vpow.pop %v1108
    %v1110 = vadd.f32 %v1109, 1.0
    %v1111 = vrcp.pop %v1110
    %v1112 = vmul.f32 1.0, %v1111
    %v1113 = vtanh.pop %v1105
    %v1114 = vsel %vm209, %v1113, %v1112
    %v1115 = vmul.f32 %v1114, %v990
    %1117 = vrot.lane.b32.xlu0 %v1114, 64
    %v1118 = vpop.permute.xlu0 %1117
    %v1120 = vmul.f32 %v1114, %v1118
    %1122 = vrot.lane.b32.xlu0 %v1120, 32
    %v1123 = vpop.permute.xlu0 %1122
    %v1125 = vadd.f32 %v1115, %v1123
    %v1126 = vtanh.pop %v1125
    %1128 = vrot.lane.b32.xlu0 %v1126, 64
    %v1129 = vpop.permute.xlu0 %1128
    %v1131 = vmul.f32 %v1114, %v1129
    %v1132 = vxor.u32 %v1106, 2147483648
    %v1133 = vmul.f32 %v1132, 1.442695
    %v1134 = vpow.pop %v1133
    %v1135 = vadd.f32 %v1134, 1.0
    %v1136 = vrcp.pop %v1135
    %v1137 = vmul.f32 1.0, %v1136
    %v1138 = vtanh.pop %v1106
    %v1139 = vsel %vm209, %v1138, %v1137
    %v1140 = vmul.f32 %v1139, %v1015
    %1142 = vrot.lane.b32.xlu0 %v1139, 64
    %v1143 = vpop.permute.xlu0 %1142
    %v1145 = vmul.f32 %v1139, %v1143
    %1147 = vrot.lane.b32.xlu0 %v1145, 32
    %v1148 = vpop.permute.xlu0 %1147
    %v1150 = vadd.f32 %v1140, %v1148
    %v1151 = vtanh.pop %v1150
    %1153 = vrot.lane.b32.xlu0 %v1151, 64
    %v1154 = vpop.permute.xlu0 %1153
    %v1156 = vmul.f32 %v1139, %v1154
    %1158 = vrot.lane.b32.xlu0 %v1131, 32
    %v1159 = vpop.permute.xlu0 %1158
    %1162 = vrot.lane.b32.xlu0 %v1156, 64
    %v1163 = vpop.permute.xlu0 %1162
    %v1165 = vsel %vm624, %v1159, %v1163
    %v1167 = vsel %vm489, %v1165, 0
    %1169 = vmatprep.subr.mxu0 %v474
    %1170 = vmatpush1.msra.mxu0 %v473
    %1171 = vmatprep.subr.mxu0 %v476
    %1172 = vmatpush1.msra.mxu0 %v475
    %1173 = vmatprep.subr.mxu0 %v478
    %1174 = vmatpush1.msra.mxu0 %v477
    %1175 = vmatprep.subr.mxu0 %v480
    %1176 = vmatpush1.msra.mxu0 %v479
    %1177 = vmatprep.subr.mxu0 %v482
    %1178 = vmatpush1.msra.mxu0 %v481
    %1179 = vmatprep.subr.mxu0 %v484
    %1180 = vmatpush1.msra.mxu0 %v483
    %1181 = vmatprep.subr.mxu0 %v486
    %1182 = vmatpush1.msra.mxu0 %v485
    %1183 = vmatprep.subr.mxu0 %v488
    %1184 = vmatpush1.msra.mxu0 %v487
    %1185 = vmatprep.subr.mxu0 0.0
    %1186 = vmatpush1.msra.mxu0 0.0
    %1187 = vmatprep.subr.mxu0 0.0
    %1188 = vmatpush1.msra.mxu0 0.0
    %1189 = vmatprep.subr.mxu0 0.0
    %1190 = vmatpush1.msra.mxu0 0.0
    %1191 = vmatprep.subr.mxu0 0.0
    %1192 = vmatpush1.msra.mxu0 0.0
    %1193 = vmatprep.subr.mxu0 0.0
    %1194 = vmatpush1.msra.mxu0 0.0
    %1195 = vmatprep.subr.mxu0 0.0
    %1196 = vmatpush1.msra.mxu0 0.0
    %1197 = vmatprep.subr.mxu0 0.0
    %1198 = vmatpush1.msra.mxu0 0.0
    %1199 = vmatprep.subr.mxu0 0.0
    %1200 = vmatpush1.msra.mxu0 0.0
    %1201 = vmatprep.subr.mxu0 0.0
    %1202 = vmatpush1.msra.mxu0 0.0
    %1203 = vmatprep.subr.mxu0 0.0
    %1204 = vmatpush1.msra.mxu0 0.0
    %1205 = vmatprep.subr.mxu0 0.0
    %1206 = vmatpush1.msra.mxu0 0.0
    %1207 = vmatprep.subr.mxu0 0.0
    %1208 = vmatpush1.msra.mxu0 0.0
    %1209 = vmatprep.subr.mxu0 0.0
    %1210 = vmatpush1.msra.mxu0 0.0
    %1211 = vmatprep.subr.mxu0 0.0
    %1212 = vmatpush1.msra.mxu0 0.0
    %1213 = vmatprep.subr.mxu0 0.0
    %1214 = vmatpush1.msra.mxu0 0.0
    %1215 = vmatprep.subr.mxu0 0.0
    %1216 = vmatpush1.msra.mxu0 0.0
    %1217 = vmatprep.subr.mxu0 0.0
    %1218 = vmatpush1.msra.mxu0 0.0
    %1219 = vmatprep.subr.mxu0 0.0
    %1220 = vmatpush1.msra.mxu0 0.0
    %1221 = vmatprep.subr.mxu0 0.0
    %1222 = vmatpush1.msra.mxu0 0.0
    %1223 = vmatprep.subr.mxu0 0.0
    %1224 = vmatpush1.msra.mxu0 0.0
    %1225 = vmatprep.subr.mxu0 0.0
    %1226 = vmatpush1.msra.mxu0 0.0
    %1227 = vmatprep.subr.mxu0 0.0
    %1228 = vmatpush1.msra.mxu0 0.0
    %1229 = vmatprep.subr.mxu0 0.0
    %1230 = vmatpush1.msra.mxu0 0.0
    %1231 = vmatprep.subr.mxu0 0.0
    %1232 = vmatpush1.msra.mxu0 0.0
    %1233 = vmatprep.mubr.f32.mxu0 0.0
    %1234 = vmatmul.mubr.f32.gmra.mrb[0].mxu0 %v1167
    %v1235 = vpop.f32.mrb[0].mxu0
    %v1236 = vadd.f32 0.0, %v1235
    %v1237 = vpop.f32.mrb[0].mxu0
    %v1238 = vadd.f32 0.0, %v1237
    %1239 = vdwg.mxu0
    %v1240 = vadd.f32 %v336, %v1236
    %v1241 = vadd.f32 %v445, %v1238
    %v1242 = vxor.u32 %v1240, 2147483648
    %v1243 = vmul.f32 %v1242, 1.442695
    %v1244 = vpow.pop %v1243
    %v1245 = vadd.f32 %v1244, 1.0
    %v1246 = vrcp.pop %v1245
    %v1247 = vmul.f32 1.0, %v1246
    %v1248 = vtanh.pop %v1240
    %v1249 = vsel %vm209, %v1248, %v1247
    %v1250 = vmul.f32 %v1249, %v1125
    %1252 = vrot.lane.b32.xlu0 %v1249, 64
    %v1253 = vpop.permute.xlu0 %1252
    %v1255 = vmul.f32 %v1249, %v1253
    %1257 = vrot.lane.b32.xlu0 %v1255, 32
    %v1258 = vpop.permute.xlu0 %1257
    %v1260 = vadd.f32 %v1250, %v1258
    %v1261 = vtanh.pop %v1260
    %1263 = vrot.lane.b32.xlu0 %v1261, 64
    %v1264 = vpop.permute.xlu0 %1263
    %v1266 = vmul.f32 %v1249, %v1264
    %v1267 = vxor.u32 %v1241, 2147483648
    %v1268 = vmul.f32 %v1267, 1.442695
    %v1269 = vpow.pop %v1268
    %v1270 = vadd.f32 %v1269, 1.0
    %v1271 = vrcp.pop %v1270
    %v1272 = vmul.f32 1.0, %v1271
    %v1273 = vtanh.pop %v1241
    %v1274 = vsel %vm209, %v1273, %v1272
    %v1275 = vmul.f32 %v1274, %v1150
    %1277 = vrot.lane.b32.xlu0 %v1274, 64
    %v1278 = vpop.permute.xlu0 %1277
    %v1280 = vmul.f32 %v1274, %v1278
    %1282 = vrot.lane.b32.xlu0 %v1280, 32
    %v1283 = vpop.permute.xlu0 %1282
    %v1285 = vadd.f32 %v1275, %v1283
    %v1286 = vtanh.pop %v1285
    %1288 = vrot.lane.b32.xlu0 %v1286, 64
    %v1289 = vpop.permute.xlu0 %1288
    %v1291 = vmul.f32 %v1274, %v1289
    %1293 = vrot.lane.b32.xlu0 %v1266, 32
    %v1294 = vpop.permute.xlu0 %1293
    %1297 = vrot.lane.b32.xlu0 %v1291, 64
    %v1298 = vpop.permute.xlu0 %1297
    %v1300 = vsel %vm624, %v1294, %v1298
    %v1302 = vsel %vm489, %v1300, 0
    %1304 = vmatprep.subr.mxu0 %v474
    %1305 = vmatpush1.msra.mxu0 %v473
    %1306 = vmatprep.subr.mxu0 %v476
    %1307 = vmatpush1.msra.mxu0 %v475
    %1308 = vmatprep.subr.mxu0 %v478
    %1309 = vmatpush1.msra.mxu0 %v477
    %1310 = vmatprep.subr.mxu0 %v480
    %1311 = vmatpush1.msra.mxu0 %v479
    %1312 = vmatprep.subr.mxu0 %v482
    %1313 = vmatpush1.msra.mxu0 %v481
    %1314 = vmatprep.subr.mxu0 %v484
    %1315 = vmatpush1.msra.mxu0 %v483
    %1316 = vmatprep.subr.mxu0 %v486
    %1317 = vmatpush1.msra.mxu0 %v485
    %1318 = vmatprep.subr.mxu0 %v488
    %1319 = vmatpush1.msra.mxu0 %v487
    %1320 = vmatprep.subr.mxu0 0.0
    %1321 = vmatpush1.msra.mxu0 0.0
    %1322 = vmatprep.subr.mxu0 0.0
    %1323 = vmatpush1.msra.mxu0 0.0
    %1324 = vmatprep.subr.mxu0 0.0
    %1325 = vmatpush1.msra.mxu0 0.0
    %1326 = vmatprep.subr.mxu0 0.0
    %1327 = vmatpush1.msra.mxu0 0.0
    %1328 = vmatprep.subr.mxu0 0.0
    %1329 = vmatpush1.msra.mxu0 0.0
    %1330 = vmatprep.subr.mxu0 0.0
    %1331 = vmatpush1.msra.mxu0 0.0
    %1332 = vmatprep.subr.mxu0 0.0
    %1333 = vmatpush1.msra.mxu0 0.0
    %1334 = vmatprep.subr.mxu0 0.0
    %1335 = vmatpush1.msra.mxu0 0.0
    %1336 = vmatprep.subr.mxu0 0.0
    %1337 = vmatpush1.msra.mxu0 0.0
    %1338 = vmatprep.subr.mxu0 0.0
    %1339 = vmatpush1.msra.mxu0 0.0
    %1340 = vmatprep.subr.mxu0 0.0
    %1341 = vmatpush1.msra.mxu0 0.0
    %1342 = vmatprep.subr.mxu0 0.0
    %1343 = vmatpush1.msra.mxu0 0.0
    %1344 = vmatprep.subr.mxu0 0.0
    %1345 = vmatpush1.msra.mxu0 0.0
    %1346 = vmatprep.subr.mxu0 0.0
    %1347 = vmatpush1.msra.mxu0 0.0
    %1348 = vmatprep.subr.mxu0 0.0
    %1349 = vmatpush1.msra.mxu0 0.0
    %1350 = vmatprep.subr.mxu0 0.0
    %1351 = vmatpush1.msra.mxu0 0.0
    %1352 = vmatprep.subr.mxu0 0.0
    %1353 = vmatpush1.msra.mxu0 0.0
    %1354 = vmatprep.subr.mxu0 0.0
    %1355 = vmatpush1.msra.mxu0 0.0
    %1356 = vmatprep.subr.mxu0 0.0
    %1357 = vmatpush1.msra.mxu0 0.0
    %1358 = vmatprep.subr.mxu0 0.0
    %1359 = vmatpush1.msra.mxu0 0.0
    %1360 = vmatprep.subr.mxu0 0.0
    %1361 = vmatpush1.msra.mxu0 0.0
    %1362 = vmatprep.subr.mxu0 0.0
    %1363 = vmatpush1.msra.mxu0 0.0
    %1364 = vmatprep.subr.mxu0 0.0
    %1365 = vmatpush1.msra.mxu0 0.0
    %1366 = vmatprep.subr.mxu0 0.0
    %1367 = vmatpush1.msra.mxu0 0.0
    %1368 = vmatprep.mubr.f32.mxu0 0.0
    %1369 = vmatmul.mubr.f32.gmra.mrb[0].mxu0 %v1302
    %v1370 = vpop.f32.mrb[0].mxu0
    %v1371 = vadd.f32 0.0, %v1370
    %v1372 = vpop.f32.mrb[0].mxu0
    %v1373 = vadd.f32 0.0, %v1372
    %1374 = vdwg.mxu0
    %v1375 = vadd.f32 %v335, %v1371
    %v1376 = vadd.f32 %v446, %v1373
    %v1377 = vxor.u32 %v1375, 2147483648
    %v1378 = vmul.f32 %v1377, 1.442695
    %v1379 = vpow.pop %v1378
    %v1380 = vadd.f32 %v1379, 1.0
    %v1381 = vrcp.pop %v1380
    %v1382 = vmul.f32 1.0, %v1381
    %v1383 = vtanh.pop %v1375
    %v1384 = vsel %vm209, %v1383, %v1382
    %v1385 = vmul.f32 %v1384, %v1260
    %1387 = vrot.lane.b32.xlu0 %v1384, 64
    %v1388 = vpop.permute.xlu0 %1387
    %v1390 = vmul.f32 %v1384, %v1388
    %1392 = vrot.lane.b32.xlu0 %v1390, 32
    %v1393 = vpop.permute.xlu0 %1392
    %v1395 = vadd.f32 %v1385, %v1393
    %v1396 = vtanh.pop %v1395
    %1398 = vrot.lane.b32.xlu0 %v1396, 64
    %v1399 = vpop.permute.xlu0 %1398
    %v1401 = vmul.f32 %v1384, %v1399
    %v1402 = vxor.u32 %v1376, 2147483648
    %v1403 = vmul.f32 %v1402, 1.442695
    %v1404 = vpow.pop %v1403
    %v1405 = vadd.f32 %v1404, 1.0
    %v1406 = vrcp.pop %v1405
    %v1407 = vmul.f32 1.0, %v1406
    %v1408 = vtanh.pop %v1376
    %v1409 = vsel %vm209, %v1408, %v1407
    %v1410 = vmul.f32 %v1409, %v1285
    %1412 = vrot.lane.b32.xlu0 %v1409, 64
    %v1413 = vpop.permute.xlu0 %1412
    %v1415 = vmul.f32 %v1409, %v1413
    %1417 = vrot.lane.b32.xlu0 %v1415, 32
    %v1418 = vpop.permute.xlu0 %1417
    %v1420 = vadd.f32 %v1410, %v1418
    %v1421 = vtanh.pop %v1420
    %1423 = vrot.lane.b32.xlu0 %v1421, 64
    %v1424 = vpop.permute.xlu0 %1423
    %v1426 = vmul.f32 %v1409, %v1424
    %1428 = vrot.lane.b32.xlu0 %v1401, 32
    %v1429 = vpop.permute.xlu0 %1428
    %1432 = vrot.lane.b32.xlu0 %v1426, 64
    %v1433 = vpop.permute.xlu0 %1432
    %v1435 = vsel %vm624, %v1429, %v1433
    %v1437 = vsel %vm489, %v1435, 0
    %1439 = vmatprep.subr.mxu0 %v474
    %1440 = vmatpush1.msra.mxu0 %v473
    %1441 = vmatprep.subr.mxu0 %v476
    %1442 = vmatpush1.msra.mxu0 %v475
    %1443 = vmatprep.subr.mxu0 %v478
    %1444 = vmatpush1.msra.mxu0 %v477
    %1445 = vmatprep.subr.mxu0 %v480
    %1446 = vmatpush1.msra.mxu0 %v479
    %1447 = vmatprep.subr.mxu0 %v482
    %1448 = vmatpush1.msra.mxu0 %v481
    %1449 = vmatprep.subr.mxu0 %v484
    %1450 = vmatpush1.msra.mxu0 %v483
    %1451 = vmatprep.subr.mxu0 %v486
    %1452 = vmatpush1.msra.mxu0 %v485
    %1453 = vmatprep.subr.mxu0 %v488
    %1454 = vmatpush1.msra.mxu0 %v487
    %1455 = vmatprep.subr.mxu0 0.0
    %1456 = vmatpush1.msra.mxu0 0.0
    %1457 = vmatprep.subr.mxu0 0.0
    %1458 = vmatpush1.msra.mxu0 0.0
    %1459 = vmatprep.subr.mxu0 0.0
    %1460 = vmatpush1.msra.mxu0 0.0
    %1461 = vmatprep.subr.mxu0 0.0
    %1462 = vmatpush1.msra.mxu0 0.0
    %1463 = vmatprep.subr.mxu0 0.0
    %1464 = vmatpush1.msra.mxu0 0.0
    %1465 = vmatprep.subr.mxu0 0.0
    %1466 = vmatpush1.msra.mxu0 0.0
    %1467 = vmatprep.subr.mxu0 0.0
    %1468 = vmatpush1.msra.mxu0 0.0
    %1469 = vmatprep.subr.mxu0 0.0
    %1470 = vmatpush1.msra.mxu0 0.0
    %1471 = vmatprep.subr.mxu0 0.0
    %1472 = vmatpush1.msra.mxu0 0.0
    %1473 = vmatprep.subr.mxu0 0.0
    %1474 = vmatpush1.msra.mxu0 0.0
    %1475 = vmatprep.subr.mxu0 0.0
    %1476 = vmatpush1.msra.mxu0 0.0
    %1477 = vmatprep.subr.mxu0 0.0
    %1478 = vmatpush1.msra.mxu0 0.0
    %1479 = vmatprep.subr.mxu0 0.0
    %1480 = vmatpush1.msra.mxu0 0.0
    %1481 = vmatprep.subr.mxu0 0.0
    %1482 = vmatpush1.msra.mxu0 0.0
    %1483 = vmatprep.subr.mxu0 0.0
    %1484 = vmatpush1.msra.mxu0 0.0
    %1485 = vmatprep.subr.mxu0 0.0
    %1486 = vmatpush1.msra.mxu0 0.0
    %1487 = vmatprep.subr.mxu0 0.0
    %1488 = vmatpush1.msra.mxu0 0.0
    %1489 = vmatprep.subr.mxu0 0.0
    %1490 = vmatpush1.msra.mxu0 0.0
    %1491 = vmatprep.subr.mxu0 0.0
    %1492 = vmatpush1.msra.mxu0 0.0
    %1493 = vmatprep.subr.mxu0 0.0
    %1494 = vmatpush1.msra.mxu0 0.0
    %1495 = vmatprep.subr.mxu0 0.0
    %1496 = vmatpush1.msra.mxu0 0.0
    %1497 = vmatprep.subr.mxu0 0.0
    %1498 = vmatpush1.msra.mxu0 0.0
    %1499 = vmatprep.subr.mxu0 0.0
    %1500 = vmatpush1.msra.mxu0 0.0
    %1501 = vmatprep.subr.mxu0 0.0
    %1502 = vmatpush1.msra.mxu0 0.0
    %1503 = vmatprep.mubr.f32.mxu0 0.0
    %1504 = vmatmul.mubr.f32.gmra.mrb[0].mxu0 %v1437
    %v1505 = vpop.f32.mrb[0].mxu0
    %v1506 = vadd.f32 0.0, %v1505
    %v1507 = vpop.f32.mrb[0].mxu0
    %v1508 = vadd.f32 0.0, %v1507
    %1509 = vdwg.mxu0
    %v1510 = vadd.f32 %v337, %v1506
    %v1511 = vadd.f32 %v438, %v1508
    %v1512 = vxor.u32 %v1510, 2147483648
    %v1513 = vmul.f32 %v1512, 1.442695
    %v1514 = vpow.pop %v1513
    %v1515 = vadd.f32 %v1514, 1.0
    %v1516 = vrcp.pop %v1515
    %v1517 = vmul.f32 1.0, %v1516
    %v1518 = vtanh.pop %v1510
    %v1519 = vsel %vm209, %v1518, %v1517
    %v1520 = vmul.f32 %v1519, %v1395
    %1522 = vrot.lane.b32.xlu0 %v1519, 64
    %v1523 = vpop.permute.xlu0 %1522
    %v1525 = vmul.f32 %v1519, %v1523
    %1527 = vrot.lane.b32.xlu0 %v1525, 32
    %v1528 = vpop.permute.xlu0 %1527
    %v1530 = vadd.f32 %v1520, %v1528
    %v1531 = vtanh.pop %v1530
    %1533 = vrot.lane.b32.xlu0 %v1531, 64
    %v1534 = vpop.permute.xlu0 %1533
    %v1536 = vmul.f32 %v1519, %v1534
    %v1537 = vxor.u32 %v1511, 2147483648
    %v1538 = vmul.f32 %v1537, 1.442695
    %v1539 = vpow.pop %v1538
    %v1540 = vadd.f32 %v1539, 1.0
    %v1541 = vrcp.pop %v1540
    %v1542 = vmul.f32 1.0, %v1541
    %v1543 = vtanh.pop %v1511
    %v1544 = vsel %vm209, %v1543, %v1542
    %v1545 = vmul.f32 %v1544, %v1420
    %1547 = vrot.lane.b32.xlu0 %v1544, 64
    %v1548 = vpop.permute.xlu0 %1547
    %v1550 = vmul.f32 %v1544, %v1548
    %1552 = vrot.lane.b32.xlu0 %v1550, 32
    %v1553 = vpop.permute.xlu0 %1552
    %v1555 = vadd.f32 %v1545, %v1553
    %v1556 = vtanh.pop %v1555
    %1558 = vrot.lane.b32.xlu0 %v1556, 64
    %v1559 = vpop.permute.xlu0 %1558
    %v1561 = vmul.f32 %v1544, %v1559
    %v1562 = vld [vmem:[%s10] sm:$0x1]
    %v1563 = vld [vmem:[%s11] sm:$0x1]
    %v1564 = vld [vmem:[%s8] sm:$0xff]
    %v1565 = vld [vmem:[%s8 + $0x8] sm:$0xff]
    %v1566 = vld [vmem:[%s8 + $0x10] sm:$0xff]
    %v1567 = vld [vmem:[%s8 + $0x18] sm:$0xff]
    %v1568 = vld [vmem:[%s8 + $0x20] sm:$0xff]
    %v1569 = vld [vmem:[%s8 + $0x28] sm:$0xff]
    %v1570 = vld [vmem:[%s8 + $0x30] sm:$0xff]
    %v1571 = vld [vmem:[%s8 + $0x38] sm:$0xff]
    %v1572 = vld [vmem:[%s9] sm:$0xff]
    %v1573 = vld [vmem:[%s9 + $0x8] sm:$0xff]
    %v1574 = vld [vmem:[%s9 + $0x10] sm:$0xff]
    %v1575 = vld [vmem:[%s9 + $0x18] sm:$0xff]
    %v1576 = vld [vmem:[%s9 + $0x20] sm:$0xff]
    %v1577 = vld [vmem:[%s9 + $0x28] sm:$0xff]
    %v1578 = vld [vmem:[%s9 + $0x30] sm:$0xff]
    %v1579 = vld [vmem:[%s9 + $0x38] sm:$0xff]
    %v1581 = vcombine.low %v1561, %v1426
    %v1582 = vcombine.low %v1291, %v1156
    %v1584 = vunpack.c.l.s4 1983009808
    %v1585 = vunpack.c.0.s8 %v1584
    %v1586 = vlaneseq
    %v1587 = vshrl.u32 %v1586, 7
    %v1588 = vsub.s32 %v1585, %v1587
    %v1589 = vrot.slane %v1581, %v1588
    %v1591 = vunpack.c.l.s4 1983009808
    %v1592 = vunpack.c.0.s8 %v1591
    %v1593 = vlaneseq
    %v1594 = vshrl.u32 %v1593, 7
    %v1595 = vsub.s32 %v1592, %v1594
    %v1596 = vrot.slane %v1582, %v1595
    %v1597 = vcombine.low %v1589, %v1596
    %v1598 = vcombine.low %v1021, %v886
    %v1599 = vcombine.low %v751, %v615
    %v1601 = vunpack.c.l.s4 1983009808
    %v1602 = vunpack.c.0.s8 %v1601
    %v1603 = vlaneseq
    %v1604 = vshrl.u32 %v1603, 7
    %v1605 = vsub.s32 %v1602, %v1604
    %v1606 = vrot.slane %v1598, %v1605
    %v1608 = vunpack.c.l.s4 1983009808
    %v1609 = vunpack.c.0.s8 %v1608
    %v1610 = vlaneseq
    %v1611 = vshrl.u32 %v1610, 7
    %v1612 = vsub.s32 %v1609, %v1611
    %v1613 = vrot.slane %v1599, %v1612
    %v1614 = vcombine.low %v1606, %v1613
    %1615 = vrot.lane.b32.xlu0 %v1597, 32
    %v1616 = vpop.permute.xlu0 %1615
    %1617 = vrot.lane.b32.xlu0 %v1614, 32
    %v1618 = vpop.permute.xlu0 %1617
    %v1619 = vsel %vm624, %v1616, 0
    %v1621 = vsel %vm624, %v1618, 0
    %1623 = vmatprep.subr.mxu0 0.0
    %1624 = vmatpush1.msra.mxu0 %v1568
    %1625 = vmatprep.subr.mxu0 0.0
    %1626 = vmatpush1.msra.mxu0 %v1569
    %1627 = vmatprep.subr.mxu0 0.0
    %1628 = vmatpush1.msra.mxu0 %v1570
    %1629 = vmatprep.subr.mxu0 0.0
    %1630 = vmatpush1.msra.mxu0 %v1571
    %1631 = vmatprep.subr.mxu0 0.0
    %1632 = vmatpush1.msra.mxu0 0.0
    %1633 = vmatprep.subr.mxu0 0.0
    %1634 = vmatpush1.msra.mxu0 0.0
    %1635 = vmatprep.subr.mxu0 0.0
    %1636 = vmatpush1.msra.mxu0 0.0
    %1637 = vmatprep.subr.mxu0 0.0
    %1638 = vmatpush1.msra.mxu0 0.0
    %1639 = vmatprep.subr.mxu0 0.0
    %1640 = vmatpush1.msra.mxu0 0.0
    %1641 = vmatprep.subr.mxu0 0.0
    %1642 = vmatpush1.msra.mxu0 0.0
    %1643 = vmatprep.subr.mxu0 0.0
    %1644 = vmatpush1.msra.mxu0 0.0
    %1645 = vmatprep.subr.mxu0 0.0
    %1646 = vmatpush1.msra.mxu0 0.0
    %1647 = vmatprep.subr.mxu0 0.0
    %1648 = vmatpush1.msra.mxu0 0.0
    %1649 = vmatprep.subr.mxu0 0.0
    %1650 = vmatpush1.msra.mxu0 0.0
    %1651 = vmatprep.subr.mxu0 0.0
    %1652 = vmatpush1.msra.mxu0 0.0
    %1653 = vmatprep.subr.mxu0 0.0
    %1654 = vmatpush1.msra.mxu0 0.0
    %1655 = vmatprep.subr.mxu0 0.0
    %1656 = vmatpush1.msra.mxu0 0.0
    %1657 = vmatprep.subr.mxu0 0.0
    %1658 = vmatpush1.msra.mxu0 0.0
    %1659 = vmatprep.subr.mxu0 0.0
    %1660 = vmatpush1.msra.mxu0 0.0
    %1661 = vmatprep.subr.mxu0 0.0
    %1662 = vmatpush1.msra.mxu0 0.0
    %1663 = vmatprep.subr.mxu0 0.0
    %1664 = vmatpush1.msra.mxu0 0.0
    %1665 = vmatprep.subr.mxu0 0.0
    %1666 = vmatpush1.msra.mxu0 0.0
    %1667 = vmatprep.subr.mxu0 0.0
    %1668 = vmatpush1.msra.mxu0 0.0
    %1669 = vmatprep.subr.mxu0 0.0
    %1670 = vmatpush1.msra.mxu0 0.0
    %1671 = vmatprep.subr.mxu0 0.0
    %1672 = vmatpush1.msra.mxu0 0.0
    %1673 = vmatprep.subr.mxu0 0.0
    %1674 = vmatpush1.msra.mxu0 0.0
    %1675 = vmatprep.subr.mxu0 0.0
    %1676 = vmatpush1.msra.mxu0 0.0
    %1677 = vmatprep.subr.mxu0 0.0
    %1678 = vmatpush1.msra.mxu0 0.0
    %1679 = vmatprep.subr.mxu0 0.0
    %1680 = vmatpush1.msra.mxu0 0.0
    %1681 = vmatprep.subr.mxu0 0.0
    %1682 = vmatpush1.msra.mxu0 0.0
    %1683 = vmatprep.subr.mxu0 0.0
    %1684 = vmatpush1.msra.mxu0 0.0
    %1685 = vmatprep.subr.mxu0 0.0
    %1686 = vmatpush1.msra.mxu0 0.0
    %1687 = vmatprep.mubr.f32.mxu0 0.0
    %1688 = vmatmul.mubr.f32.gmra.mrb[0].mxu0 %v1619
    %v1689 = vpop.f32.mrb[0].mxu0
    %v1690 = vadd.f32 0.0, %v1689
    %v1691 = vpop.f32.mrb[0].mxu0
    %1692 = vmatprep.mubr.f32.mxu0 0.0
    %1693 = vmatmul.mubr.f32.gmra.mrb[0].mxu0 %v1621
    %v1694 = vpop.f32.mrb[0].mxu0
    %v1695 = vadd.f32 0.0, %v1694
    %v1696 = vpop.f32.mrb[0].mxu0
    %1697 = vdwg.mxu0
    %v1699 = vcombine.low %v590, %v726
    %v1700 = vcombine.low %v861, %v996
    %v1702 = vunpack.c.l.s4 1983009808
    %v1703 = vunpack.c.0.s8 %v1702
    %v1704 = vlaneseq
    %v1705 = vshrl.u32 %v1704, 7
    %v1706 = vsub.s32 %v1703, %v1705
    %v1707 = vrot.slane %v1699, %v1706
    %v1709 = vunpack.c.l.s4 1983009808
    %v1710 = vunpack.c.0.s8 %v1709
    %v1711 = vlaneseq
    %v1712 = vshrl.u32 %v1711, 7
    %v1713 = vsub.s32 %v1710, %v1712
    %v1714 = vrot.slane %v1700, %v1713
    %v1715 = vcombine.low %v1707, %v1714
    %v1716 = vcombine.low %v1131, %v1266
    %v1717 = vcombine.low %v1401, %v1536
    %v1719 = vunpack.c.l.s4 1983009808
    %v1720 = vunpack.c.0.s8 %v1719
    %v1721 = vlaneseq
    %v1722 = vshrl.u32 %v1721, 7
    %v1723 = vsub.s32 %v1720, %v1722
    %v1724 = vrot.slane %v1716, %v1723
    %v1726 = vunpack.c.l.s4 1983009808
    %v1727 = vunpack.c.0.s8 %v1726
    %v1728 = vlaneseq
    %v1729 = vshrl.u32 %v1728, 7
    %v1730 = vsub.s32 %v1727, %v1729
    %v1731 = vrot.slane %v1717, %v1730
    %v1732 = vcombine.low %v1724, %v1731
    %1733 = vrot.lane.b32.xlu0 %v1715, 32
    %v1734 = vpop.permute.xlu0 %1733
    %1735 = vrot.lane.b32.xlu0 %v1732, 32
    %v1736 = vpop.permute.xlu0 %1735
    %v1737 = vsel %vm624, %v1734, 0
    %v1739 = vsel %vm624, %v1736, 0
    %1741 = vmatprep.subr.mxu0 0.0
    %1742 = vmatpush1.msra.mxu0 %v1564
    %1743 = vmatprep.subr.mxu0 0.0
    %1744 = vmatpush1.msra.mxu0 %v1565
    %1745 = vmatprep.subr.mxu0 0.0
    %1746 = vmatpush1.msra.mxu0 %v1566
    %1747 = vmatprep.subr.mxu0 0.0
    %1748 = vmatpush1.msra.mxu0 %v1567
    %1749 = vmatprep.subr.mxu0 0.0
    %1750 = vmatpush1.msra.mxu0 0.0
    %1751 = vmatprep.subr.mxu0 0.0
    %1752 = vmatpush1.msra.mxu0 0.0
    %1753 = vmatprep.subr.mxu0 0.0
    %1754 = vmatpush1.msra.mxu0 0.0
    %1755 = vmatprep.subr.mxu0 0.0
    %1756 = vmatpush1.msra.mxu0 0.0
    %1757 = vmatprep.subr.mxu0 0.0
    %1758 = vmatpush1.msra.mxu0 0.0
    %1759 = vmatprep.subr.mxu0 0.0
    %1760 = vmatpush1.msra.mxu0 0.0
    %1761 = vmatprep.subr.mxu0 0.0
    %1762 = vmatpush1.msra.mxu0 0.0
    %1763 = vmatprep.subr.mxu0 0.0
    %1764 = vmatpush1.msra.mxu0 0.0
    %1765 = vmatprep.subr.mxu0 0.0
    %1766 = vmatpush1.msra.mxu0 0.0
    %1767 = vmatprep.subr.mxu0 0.0
    %1768 = vmatpush1.msra.mxu0 0.0
    %1769 = vmatprep.subr.mxu0 0.0
    %1770 = vmatpush1.msra.mxu0 0.0
    %1771 = vmatprep.subr.mxu0 0.0
    %1772 = vmatpush1.msra.mxu0 0.0
    %1773 = vmatprep.subr.mxu0 0.0
    %1774 = vmatpush1.msra.mxu0 0.0
    %1775 = vmatprep.subr.mxu0 0.0
    %1776 = vmatpush1.msra.mxu0 0.0
    %1777 = vmatprep.subr.mxu0 0.0
    %1778 = vmatpush1.msra.mxu0 0.0
    %1779 = vmatprep.subr.mxu0 0.0
    %1780 = vmatpush1.msra.mxu0 0.0
    %1781 = vmatprep.subr.mxu0 0.0
    %1782 = vmatpush1.msra.mxu0 0.0
    %1783 = vmatprep.subr.mxu0 0.0
    %1784 = vmatpush1.msra.mxu0 0.0
    %1785 = vmatprep.subr.mxu0 0.0
    %1786 = vmatpush1.msra.mxu0 0.0
    %1787 = vmatprep.subr.mxu0 0.0
    %1788 = vmatpush1.msra.mxu0 0.0
    %1789 = vmatprep.subr.mxu0 0.0
    %1790 = vmatpush1.msra.mxu0 0.0
    %1791 = vmatprep.subr.mxu0 0.0
    %1792 = vmatpush1.msra.mxu0 0.0
    %1793 = vmatprep.subr.mxu0 0.0
    %1794 = vmatpush1.msra.mxu0 0.0
    %1795 = vmatprep.subr.mxu0 0.0
    %1796 = vmatpush1.msra.mxu0 0.0
    %1797 = vmatprep.subr.mxu0 0.0
    %1798 = vmatpush1.msra.mxu0 0.0
    %1799 = vmatprep.subr.mxu0 0.0
    %1800 = vmatpush1.msra.mxu0 0.0
    %1801 = vmatprep.subr.mxu0 0.0
    %1802 = vmatpush1.msra.mxu0 0.0
    %1803 = vmatprep.subr.mxu0 0.0
    %1804 = vmatpush1.msra.mxu0 0.0
    %1805 = vmatprep.mubr.f32.mxu0 0.0
    %1806 = vmatmul.mubr.f32.gmra.mrb[0].mxu0 %v1737
    %v1807 = vpop.f32.mrb[0].mxu0
    %v1808 = vadd.f32 %v1690, %v1807
    %v1809 = vpop.f32.mrb[0].mxu0
    %1810 = vmatprep.mubr.f32.mxu0 0.0
    %1811 = vmatmul.mubr.f32.gmra.mrb[0].mxu0 %v1739
    %v1812 = vpop.f32.mrb[0].mxu0
    %v1813 = vadd.f32 %v1695, %v1812
    %v1814 = vpop.f32.mrb[0].mxu0
    %1815 = vdwg.mxu0
    %v1817 = vlaneseq
    %v1818 = vshrl.u32 %v1817, 7
    %v1819 = vsub.s32 0, %v1818
    %v1820 = vrot.slane %v1562, %v1819
    %v1822 = vadd.f32 %v1808, %v1820
    %v1823 = vadd.f32 %v1813, %v1820
    %v1826 = vcombine.high %v1822, %v1822
    %v1828 = vunpack.c.l.s4 1983009808
    %v1829 = vunpack.c.0.s8 %v1828
    %v1830 = vlaneseq
    %v1831 = vshrl.u32 %v1830, 7
    %v1832 = vsub.s32 %v1829, %v1831
    %v1833 = vrot.slane %v1822, %v1832
    %v1835 = vunpack.c.l.s4 1983009808
    %v1836 = vunpack.c.0.s8 %v1835
    %v1837 = vlaneseq
    %v1838 = vshrl.u32 %v1837, 7
    %v1839 = vsub.s32 %v1836, %v1838
    %v1840 = vrot.slane %v1826, %v1839
    %v1841 = vcombine.high %v1833, %v1833
    %v1842 = vcombine.high %v1840, %v1840
    %v1843 = vcombine.high %v1823, %v1823
    %v1845 = vunpack.c.l.s4 1983009808
    %v1846 = vunpack.c.0.s8 %v1845
    %v1847 = vlaneseq
    %v1848 = vshrl.u32 %v1847, 7
    %v1849 = vsub.s32 %v1846, %v1848
    %v1850 = vrot.slane %v1823, %v1849
    %v1852 = vunpack.c.l.s4 1983009808
    %v1853 = vunpack.c.0.s8 %v1852
    %v1854 = vlaneseq
    %v1855 = vshrl.u32 %v1854, 7
    %v1856 = vsub.s32 %v1853, %v1855
    %v1857 = vrot.slane %v1843, %v1856
    %v1858 = vcombine.high %v1850, %v1850
    %v1859 = vcombine.high %v1857, %v1857
    %1868 = vmatprep.subr.mxu0 0.0
    %1869 = vmatpush1.msra.mxu0 %v1576
    %1870 = vmatprep.subr.mxu0 0.0
    %1871 = vmatpush1.msra.mxu0 %v1577
    %1872 = vmatprep.subr.mxu0 0.0
    %1873 = vmatpush1.msra.mxu0 %v1578
    %1874 = vmatprep.subr.mxu0 0.0
    %1875 = vmatpush1.msra.mxu0 %v1579
    %1876 = vmatprep.subr.mxu0 0.0
    %1877 = vmatpush1.msra.mxu0 0.0
    %1878 = vmatprep.subr.mxu0 0.0
    %1879 = vmatpush1.msra.mxu0 0.0
    %1880 = vmatprep.subr.mxu0 0.0
    %1881 = vmatpush1.msra.mxu0 0.0
    %1882 = vmatprep.subr.mxu0 0.0
    %1883 = vmatpush1.msra.mxu0 0.0
    %1884 = vmatprep.subr.mxu0 0.0
    %1885 = vmatpush1.msra.mxu0 0.0
    %1886 = vmatprep.subr.mxu0 0.0
    %1887 = vmatpush1.msra.mxu0 0.0
    %1888 = vmatprep.subr.mxu0 0.0
    %1889 = vmatpush1.msra.mxu0 0.0
    %1890 = vmatprep.subr.mxu0 0.0
    %1891 = vmatpush1.msra.mxu0 0.0
    %1892 = vmatprep.subr.mxu0 0.0
    %1893 = vmatpush1.msra.mxu0 0.0
    %1894 = vmatprep.subr.mxu0 0.0
    %1895 = vmatpush1.msra.mxu0 0.0
    %1896 = vmatprep.subr.mxu0 0.0
    %1897 = vmatpush1.msra.mxu0 0.0
    %1898 = vmatprep.subr.mxu0 0.0
    %1899 = vmatpush1.msra.mxu0 0.0
    %1900 = vmatprep.subr.mxu0 0.0
    %1901 = vmatpush1.msra.mxu0 0.0
    %1902 = vmatprep.subr.mxu0 0.0
    %1903 = vmatpush1.msra.mxu0 0.0
    %1904 = vmatprep.subr.mxu0 0.0
    %1905 = vmatpush1.msra.mxu0 0.0
    %1906 = vmatprep.subr.mxu0 0.0
    %1907 = vmatpush1.msra.mxu0 0.0
    %1908 = vmatprep.subr.mxu0 0.0
    %1909 = vmatpush1.msra.mxu0 0.0
    %1910 = vmatprep.subr.mxu0 0.0
    %1911 = vmatpush1.msra.mxu0 0.0
    %1912 = vmatprep.subr.mxu0 0.0
    %1913 = vmatpush1.msra.mxu0 0.0
    %1914 = vmatprep.subr.mxu0 0.0
    %1915 = vmatpush1.msra.mxu0 0.0
    %1916 = vmatprep.subr.mxu0 0.0
    %1917 = vmatpush1.msra.mxu0 0.0
    %1918 = vmatprep.subr.mxu0 0.0
    %1919 = vmatpush1.msra.mxu0 0.0
    %1920 = vmatprep.subr.mxu0 0.0
    %1921 = vmatpush1.msra.mxu0 0.0
    %1922 = vmatprep.subr.mxu0 0.0
    %1923 = vmatpush1.msra.mxu0 0.0
    %1924 = vmatprep.subr.mxu0 0.0
    %1925 = vmatpush1.msra.mxu0 0.0
    %1926 = vmatprep.subr.mxu0 0.0
    %1927 = vmatpush1.msra.mxu0 0.0
    %1928 = vmatprep.subr.mxu0 0.0
    %1929 = vmatpush1.msra.mxu0 0.0
    %1930 = vmatprep.subr.mxu0 0.0
    %1931 = vmatpush1.msra.mxu0 0.0
    %1932 = vmatprep.mubr.f32.mxu0 0.0
    %1933 = vmatmul.mubr.f32.gmra.mrb[0].mxu0 %v1619
    %v1934 = vpop.f32.mrb[0].mxu0
    %v1935 = vadd.f32 0.0, %v1934
    %v1936 = vpop.f32.mrb[0].mxu0
    %1937 = vmatprep.mubr.f32.mxu0 0.0
    %1938 = vmatmul.mubr.f32.gmra.mrb[0].mxu0 %v1621
    %v1939 = vpop.f32.mrb[0].mxu0
    %v1940 = vadd.f32 0.0, %v1939
    %v1941 = vpop.f32.mrb[0].mxu0
    %1942 = vdwg.mxu0
    %1943 = vmatprep.subr.mxu0 0.0
    %1944 = vmatpush1.msra.mxu0 %v1572
    %1945 = vmatprep.subr.mxu0 0.0
    %1946 = vmatpush1.msra.mxu0 %v1573
    %1947 = vmatprep.subr.mxu0 0.0
    %1948 = vmatpush1.msra.mxu0 %v1574
    %1949 = vmatprep.subr.mxu0 0.0
    %1950 = vmatpush1.msra.mxu0 %v1575
    %1951 = vmatprep.subr.mxu0 0.0
    %1952 = vmatpush1.msra.mxu0 0.0
    %1953 = vmatprep.subr.mxu0 0.0
    %1954 = vmatpush1.msra.mxu0 0.0
    %1955 = vmatprep.subr.mxu0 0.0
    %1956 = vmatpush1.msra.mxu0 0.0
    %1957 = vmatprep.subr.mxu0 0.0
    %1958 = vmatpush1.msra.mxu0 0.0
    %1959 = vmatprep.subr.mxu0 0.0
    %1960 = vmatpush1.msra.mxu0 0.0
    %1961 = vmatprep.subr.mxu0 0.0
    %1962 = vmatpush1.msra.mxu0 0.0
    %1963 = vmatprep.subr.mxu0 0.0
    %1964 = vmatpush1.msra.mxu0 0.0
    %1965 = vmatprep.subr.mxu0 0.0
    %1966 = vmatpush1.msra.mxu0 0.0
    %1967 = vmatprep.subr.mxu0 0.0
    %1968 = vmatpush1.msra.mxu0 0.0
    %1969 = vmatprep.subr.mxu0 0.0
    %1970 = vmatpush1.msra.mxu0 0.0
    %1971 = vmatprep.subr.mxu0 0.0
    %1972 = vmatpush1.msra.mxu0 0.0
    %1973 = vmatprep.subr.mxu0 0.0
    %1974 = vmatpush1.msra.mxu0 0.0
    %1975 = vmatprep.subr.mxu0 0.0
    %1976 = vmatpush1.msra.mxu0 0.0
    %1977 = vmatprep.subr.mxu0 0.0
    %1978 = vmatpush1.msra.mxu0 0.0
    %1979 = vmatprep.subr.mxu0 0.0
    %1980 = vmatpush1.msra.mxu0 0.0
    %1981 = vmatprep.subr.mxu0 0.0
    %1982 = vmatpush1.msra.mxu0 0.0
    %1983 = vmatprep.subr.mxu0 0.0
    %1984 = vmatpush1.msra.mxu0 0.0
    %1985 = vmatprep.subr.mxu0 0.0
    %1986 = vmatpush1.msra.mxu0 0.0
    %1987 = vmatprep.subr.mxu0 0.0
    %1988 = vmatpush1.msra.mxu0 0.0
    %1989 = vmatprep.subr.mxu0 0.0
    %1990 = vmatpush1.msra.mxu0 0.0
    %1991 = vmatprep.subr.mxu0 0.0
    %1992 = vmatpush1.msra.mxu0 0.0
    %1993 = vmatprep.subr.mxu0 0.0
    %1994 = vmatpush1.msra.mxu0 0.0
    %1995 = vmatprep.subr.mxu0 0.0
    %1996 = vmatpush1.msra.mxu0 0.0
    %1997 = vmatprep.subr.mxu0 0.0
    %1998 = vmatpush1.msra.mxu0 0.0
    %1999 = vmatprep.subr.mxu0 0.0
    %2000 = vmatpush1.msra.mxu0 0.0
    %2001 = vmatprep.subr.mxu0 0.0
    %2002 = vmatpush1.msra.mxu0 0.0
    %2003 = vmatprep.subr.mxu0 0.0
    %2004 = vmatpush1.msra.mxu0 0.0
    %2005 = vmatprep.subr.mxu0 0.0
    %2006 = vmatpush1.msra.mxu0 0.0
    %2007 = vmatprep.mubr.f32.mxu0 0.0
    %2008 = vmatmul.mubr.f32.gmra.mrb[0].mxu0 %v1737
    %v2009 = vpop.f32.mrb[0].mxu0
    %v2010 = vadd.f32 %v1935, %v2009
    %v2011 = vpop.f32.mrb[0].mxu0
    %2012 = vmatprep.mubr.f32.mxu0 0.0
    %2013 = vmatmul.mubr.f32.gmra.mrb[0].mxu0 %v1739
    %v2014 = vpop.f32.mrb[0].mxu0
    %v2015 = vadd.f32 %v1940, %v2014
    %v2016 = vpop.f32.mrb[0].mxu0
    %2017 = vdwg.mxu0
    %v2019 = vlaneseq
    %v2020 = vshrl.u32 %v2019, 7
    %v2021 = vsub.s32 0, %v2020
    %v2022 = vrot.slane %v1563, %v2021
    %v2024 = vadd.f32 %v2010, %v2022
    %v2025 = vadd.f32 %v2015, %v2022
    %v2028 = vcombine.high %v2024, %v2024
    %v2030 = vunpack.c.l.s4 1983009808
    %v2031 = vunpack.c.0.s8 %v2030
    %v2032 = vlaneseq
    %v2033 = vshrl.u32 %v2032, 7
    %v2034 = vsub.s32 %v2031, %v2033
    %v2035 = vrot.slane %v2024, %v2034
    %v2037 = vunpack.c.l.s4 1983009808
    %v2038 = vunpack.c.0.s8 %v2037
    %v2039 = vlaneseq
    %v2040 = vshrl.u32 %v2039, 7
    %v2041 = vsub.s32 %v2038, %v2040
    %v2042 = vrot.slane %v2028, %v2041
    %v2043 = vcombine.high %v2035, %v2035
    %v2044 = vcombine.high %v2042, %v2042
    %v2045 = vcombine.high %v2025, %v2025
    %v2047 = vunpack.c.l.s4 1983009808
    %v2048 = vunpack.c.0.s8 %v2047
    %v2049 = vlaneseq
    %v2050 = vshrl.u32 %v2049, 7
    %v2051 = vsub.s32 %v2048, %v2050
    %v2052 = vrot.slane %v2025, %v2051
    %v2054 = vunpack.c.l.s4 1983009808
    %v2055 = vunpack.c.0.s8 %v2054
    %v2056 = vlaneseq
    %v2057 = vshrl.u32 %v2056, 7
    %v2058 = vsub.s32 %v2055, %v2057
    %v2059 = vrot.slane %v2045, %v2058
    %v2060 = vcombine.high %v2052, %v2052
    %v2061 = vcombine.high %v2059, %v2059
    %v2070 = vld [vmem:[%s12] sm:$0xff]
    %v2071 = vld [vmem:[%s12 + $0x8] sm:$0xff]
    %v2072 = vld [vmem:[%s12 + $0x10] sm:$0xff]
    %v2073 = vld [vmem:[%s12 + $0x18] sm:$0xff]
    %v2074 = vld [vmem:[%s12 + $0x20] sm:$0xff]
    %v2075 = vld [vmem:[%s12 + $0x28] sm:$0xff]
    %v2076 = vld [vmem:[%s12 + $0x30] sm:$0xff]
    %v2077 = vld [vmem:[%s12 + $0x38] sm:$0xff]
    %v2078 = vld [vmem:[%s12 + $0x40] sm:$0xff]
    %v2079 = vld [vmem:[%s12 + $0x48] sm:$0xff]
    %v2080 = vld [vmem:[%s12 + $0x50] sm:$0xff]
    %v2081 = vld [vmem:[%s12 + $0x58] sm:$0xff]
    %v2082 = vld [vmem:[%s12 + $0x60] sm:$0xff]
    %v2083 = vld [vmem:[%s12 + $0x68] sm:$0xff]
    %v2084 = vld [vmem:[%s12 + $0x70] sm:$0xff]
    %v2085 = vld [vmem:[%s12 + $0x78] sm:$0xff]
    %2086 = vmatprep.subr.mxu0 %v2071
    %2087 = vmatpush1.msra.mxu0 %v2070
    %2088 = vmatprep.subr.mxu0 %v2073
    %2089 = vmatpush1.msra.mxu0 %v2072
    %2090 = vmatprep.subr.mxu0 %v2075
    %2091 = vmatpush1.msra.mxu0 %v2074
    %2092 = vmatprep.subr.mxu0 %v2077
    %2093 = vmatpush1.msra.mxu0 %v2076
    %2094 = vmatprep.subr.mxu0 %v2079
    %2095 = vmatpush1.msra.mxu0 %v2078
    %2096 = vmatprep.subr.mxu0 %v2081
    %2097 = vmatpush1.msra.mxu0 %v2080
    %2098 = vmatprep.subr.mxu0 %v2083
    %2099 = vmatpush1.msra.mxu0 %v2082
    %2100 = vmatprep.subr.mxu0 %v2085
    %2101 = vmatpush1.msra.mxu0 %v2084
    %2102 = vmatprep.subr.mxu0 0.0
    %2103 = vmatpush1.msra.mxu0 0.0
    %2104 = vmatprep.subr.mxu0 0.0
    %2105 = vmatpush1.msra.mxu0 0.0
    %2106 = vmatprep.subr.mxu0 0.0
    %2107 = vmatpush1.msra.mxu0 0.0
    %2108 = vmatprep.subr.mxu0 0.0
    %2109 = vmatpush1.msra.mxu0 0.0
    %2110 = vmatprep.subr.mxu0 0.0
    %2111 = vmatpush1.msra.mxu0 0.0
    %2112 = vmatprep.subr.mxu0 0.0
    %2113 = vmatpush1.msra.mxu0 0.0
    %2114 = vmatprep.subr.mxu0 0.0
    %2115 = vmatpush1.msra.mxu0 0.0
    %2116 = vmatprep.subr.mxu0 0.0
    %2117 = vmatpush1.msra.mxu0 0.0
    %2118 = vmatprep.subr.mxu0 0.0
    %2119 = vmatpush1.msra.mxu0 0.0
    %2120 = vmatprep.subr.mxu0 0.0
    %2121 = vmatpush1.msra.mxu0 0.0
    %2122 = vmatprep.subr.mxu0 0.0
    %2123 = vmatpush1.msra.mxu0 0.0
    %2124 = vmatprep.subr.mxu0 0.0
    %2125 = vmatpush1.msra.mxu0 0.0
    %2126 = vmatprep.subr.mxu0 0.0
    %2127 = vmatpush1.msra.mxu0 0.0
    %2128 = vmatprep.subr.mxu0 0.0
    %2129 = vmatpush1.msra.mxu0 0.0
    %2130 = vmatprep.subr.mxu0 0.0
    %2131 = vmatpush1.msra.mxu0 0.0
    %2132 = vmatprep.subr.mxu0 0.0
    %2133 = vmatpush1.msra.mxu0 0.0
    %2134 = vmatprep.subr.mxu0 0.0
    %2135 = vmatpush1.msra.mxu0 0.0
    %2136 = vmatprep.subr.mxu0 0.0
    %2137 = vmatpush1.msra.mxu0 0.0
    %2138 = vmatprep.subr.mxu0 0.0
    %2139 = vmatpush1.msra.mxu0 0.0
    %2140 = vmatprep.subr.mxu0 0.0
    %2141 = vmatpush1.msra.mxu0 0.0
    %2142 = vmatprep.subr.mxu0 0.0
    %2143 = vmatpush1.msra.mxu0 0.0
    %2144 = vmatprep.subr.mxu0 0.0
    %2145 = vmatpush1.msra.mxu0 0.0
    %2146 = vmatprep.subr.mxu0 0.0
    %2147 = vmatpush1.msra.mxu0 0.0
    %2148 = vmatprep.subr.mxu0 0.0
    %2149 = vmatpush1.msra.mxu0 0.0
    %2150 = vmatprep.mubr.f32.mxu0 0.0
    %2151 = vmatmul.mubr.f32.gmra.mrb[0].mxu0 %v491
    %v2152 = vpop.f32.mrb[0].mxu0
    %v2153 = vadd.f32 0.0, %v2152
    %v2154 = vpop.f32.mrb[0].mxu0
    %v2155 = vadd.f32 0.0, %v2154
    %2156 = vdwg.mxu0
    %v2157 = vadd.f32 %v1833, %v2153
    %v2158 = vadd.f32 %v2061, %v2155
    %v2159 = vxor.u32 %v2157, 2147483648
    %v2160 = vmul.f32 %v2159, 1.442695
    %v2161 = vpow.pop %v2160
    %v2162 = vadd.f32 %v2161, 1.0
    %v2163 = vrcp.pop %v2162
    %v2164 = vmul.f32 1.0, %v2163
    %v2165 = vtanh.pop %v2157
    %v2166 = vsel %vm209, %v2165, %v2164
    %v2167 = vmul.f32 %v2166, 0.0
    %2169 = vrot.lane.b32.xlu0 %v2166, 64
    %v2170 = vpop.permute.xlu0 %2169
    %v2172 = vmul.f32 %v2166, %v2170
    %2174 = vrot.lane.b32.xlu0 %v2172, 32
    %v2175 = vpop.permute.xlu0 %2174
    %v2177 = vadd.f32 %v2167, %v2175
    %v2178 = vtanh.pop %v2177
    %2180 = vrot.lane.b32.xlu0 %v2178, 64
    %v2181 = vpop.permute.xlu0 %2180
    %v2183 = vmul.f32 %v2166, %v2181
    %v2184 = vxor.u32 %v2158, 2147483648
    %v2185 = vmul.f32 %v2184, 1.442695
    %v2186 = vpow.pop %v2185
    %v2187 = vadd.f32 %v2186, 1.0
    %v2188 = vrcp.pop %v2187
    %v2189 = vmul.f32 1.0, %v2188
    %v2190 = vtanh.pop %v2158
    %v2191 = vsel %vm209, %v2190, %v2189
    %v2192 = vmul.f32 %v2191, 0.0
    %2194 = vrot.lane.b32.xlu0 %v2191, 64
    %v2195 = vpop.permute.xlu0 %2194
    %v2197 = vmul.f32 %v2191, %v2195
    %2199 = vrot.lane.b32.xlu0 %v2197, 32
    %v2200 = vpop.permute.xlu0 %2199
    %v2202 = vadd.f32 %v2192, %v2200
    %v2203 = vtanh.pop %v2202
    %2205 = vrot.lane.b32.xlu0 %v2203, 64
    %v2206 = vpop.permute.xlu0 %2205
    %v2208 = vmul.f32 %v2191, %v2206
    %2210 = vrot.lane.b32.xlu0 %v2183, 32
    %v2211 = vpop.permute.xlu0 %2210
    %2214 = vrot.lane.b32.xlu0 %v2208, 64
    %v2215 = vpop.permute.xlu0 %2214
    %v2217 = vsel %vm624, %v2211, %v2215
    %v2219 = vsel %vm489, %v2217, 0
    %2221 = vmatprep.subr.mxu0 %v2071
    %2222 = vmatpush1.msra.mxu0 %v2070
    %2223 = vmatprep.subr.mxu0 %v2073
    %2224 = vmatpush1.msra.mxu0 %v2072
    %2225 = vmatprep.subr.mxu0 %v2075
    %2226 = vmatpush1.msra.mxu0 %v2074
    %2227 = vmatprep.subr.mxu0 %v2077
    %2228 = vmatpush1.msra.mxu0 %v2076
    %2229 = vmatprep.subr.mxu0 %v2079
    %2230 = vmatpush1.msra.mxu0 %v2078
    %2231 = vmatprep.subr.mxu0 %v2081
    %2232 = vmatpush1.msra.mxu0 %v2080
    %2233 = vmatprep.subr.mxu0 %v2083
    %2234 = vmatpush1.msra.mxu0 %v2082
    %2235 = vmatprep.subr.mxu0 %v2085
    %2236 = vmatpush1.msra.mxu0 %v2084
    %2237 = vmatprep.subr.mxu0 0.0
    %2238 = vmatpush1.msra.mxu0 0.0
    %2239 = vmatprep.subr.mxu0 0.0
    %2240 = vmatpush1.msra.mxu0 0.0
    %2241 = vmatprep.subr.mxu0 0.0
    %2242 = vmatpush1.msra.mxu0 0.0
    %2243 = vmatprep.subr.mxu0 0.0
    %2244 = vmatpush1.msra.mxu0 0.0
    %2245 = vmatprep.subr.mxu0 0.0
    %2246 = vmatpush1.msra.mxu0 0.0
    %2247 = vmatprep.subr.mxu0 0.0
    %2248 = vmatpush1.msra.mxu0 0.0
    %2249 = vmatprep.subr.mxu0 0.0
    %2250 = vmatpush1.msra.mxu0 0.0
    %2251 = vmatprep.subr.mxu0 0.0
    %2252 = vmatpush1.msra.mxu0 0.0
    %2253 = vmatprep.subr.mxu0 0.0
    %2254 = vmatpush1.msra.mxu0 0.0
    %2255 = vmatprep.subr.mxu0 0.0
    %2256 = vmatpush1.msra.mxu0 0.0
    %2257 = vmatprep.subr.mxu0 0.0
    %2258 = vmatpush1.msra.mxu0 0.0
    %2259 = vmatprep.subr.mxu0 0.0
    %2260 = vmatpush1.msra.mxu0 0.0
    %2261 = vmatprep.subr.mxu0 0.0
    %2262 = vmatpush1.msra.mxu0 0.0
    %2263 = vmatprep.subr.mxu0 0.0
    %2264 = vmatpush1.msra.mxu0 0.0
    %2265 = vmatprep.subr.mxu0 0.0
    %2266 = vmatpush1.msra.mxu0 0.0
    %2267 = vmatprep.subr.mxu0 0.0
    %2268 = vmatpush1.msra.mxu0 0.0
    %2269 = vmatprep.subr.mxu0 0.0
    %2270 = vmatpush1.msra.mxu0 0.0
    %2271 = vmatprep.subr.mxu0 0.0
    %2272 = vmatpush1.msra.mxu0 0.0
    %2273 = vmatprep.subr.mxu0 0.0
    %2274 = vmatpush1.msra.mxu0 0.0
    %2275 = vmatprep.subr.mxu0 0.0
    %2276 = vmatpush1.msra.mxu0 0.0
    %2277 = vmatprep.subr.mxu0 0.0
    %2278 = vmatpush1.msra.mxu0 0.0
    %2279 = vmatprep.subr.mxu0 0.0
    %2280 = vmatpush1.msra.mxu0 0.0
    %2281 = vmatprep.subr.mxu0 0.0
    %2282 = vmatpush1.msra.mxu0 0.0
    %2283 = vmatprep.subr.mxu0 0.0
    %2284 = vmatpush1.msra.mxu0 0.0
    %2285 = vmatprep.mubr.f32.mxu0 0.0
    %2286 = vmatmul.mubr.f32.gmra.mrb[0].mxu0 %v2219
    %v2287 = vpop.f32.mrb[0].mxu0
    %v2288 = vadd.f32 0.0, %v2287
    %v2289 = vpop.f32.mrb[0].mxu0
    %v2290 = vadd.f32 0.0, %v2289
    %2291 = vdwg.mxu0
    %v2292 = vadd.f32 %v1841, %v2288
    %v2293 = vadd.f32 %v2059, %v2290
    %v2294 = vxor.u32 %v2292, 2147483648
    %v2295 = vmul.f32 %v2294, 1.442695
    %v2296 = vpow.pop %v2295
    %v2297 = vadd.f32 %v2296, 1.0
    %v2298 = vrcp.pop %v2297
    %v2299 = vmul.f32 1.0, %v2298
    %v2300 = vtanh.pop %v2292
    %v2301 = vsel %vm209, %v2300, %v2299
    %v2302 = vmul.f32 %v2301, %v2177
    %2304 = vrot.lane.b32.xlu0 %v2301, 64
    %v2305 = vpop.permute.xlu0 %2304
    %v2307 = vmul.f32 %v2301, %v2305
    %2309 = vrot.lane.b32.xlu0 %v2307, 32
    %v2310 = vpop.permute.xlu0 %2309
    %v2312 = vadd.f32 %v2302, %v2310
    %v2313 = vtanh.pop %v2312
    %2315 = vrot.lane.b32.xlu0 %v2313, 64
    %v2316 = vpop.permute.xlu0 %2315
    %v2318 = vmul.f32 %v2301, %v2316
    %v2319 = vxor.u32 %v2293, 2147483648
    %v2320 = vmul.f32 %v2319, 1.442695
    %v2321 = vpow.pop %v2320
    %v2322 = vadd.f32 %v2321, 1.0
    %v2323 = vrcp.pop %v2322
    %v2324 = vmul.f32 1.0, %v2323
    %v2325 = vtanh.pop %v2293
    %v2326 = vsel %vm209, %v2325, %v2324
    %v2327 = vmul.f32 %v2326, %v2202
    %2329 = vrot.lane.b32.xlu0 %v2326, 64
    %v2330 = vpop.permute.xlu0 %2329
    %v2332 = vmul.f32 %v2326, %v2330
    %2334 = vrot.lane.b32.xlu0 %v2332, 32
    %v2335 = vpop.permute.xlu0 %2334
    %v2337 = vadd.f32 %v2327, %v2335
    %v2338 = vtanh.pop %v2337
    %2340 = vrot.lane.b32.xlu0 %v2338, 64
    %v2341 = vpop.permute.xlu0 %2340
    %v2343 = vmul.f32 %v2326, %v2341
    %2345 = vrot.lane.b32.xlu0 %v2318, 32
    %v2346 = vpop.permute.xlu0 %2345
    %2349 = vrot.lane.b32.xlu0 %v2343, 64
    %v2350 = vpop.permute.xlu0 %2349
    %v2352 = vsel %vm624, %v2346, %v2350
    %v2354 = vsel %vm489, %v2352, 0
    %2356 = vmatprep.subr.mxu0 %v2071
    %2357 = vmatpush1.msra.mxu0 %v2070
    %2358 = vmatprep.subr.mxu0 %v2073
    %2359 = vmatpush1.msra.mxu0 %v2072
    %2360 = vmatprep.subr.mxu0 %v2075
    %2361 = vmatpush1.msra.mxu0 %v2074
    %2362 = vmatprep.subr.mxu0 %v2077
    %2363 = vmatpush1.msra.mxu0 %v2076
    %2364 = vmatprep.subr.mxu0 %v2079
    %2365 = vmatpush1.msra.mxu0 %v2078
    %2366 = vmatprep.subr.mxu0 %v2081
    %2367 = vmatpush1.msra.mxu0 %v2080
    %2368 = vmatprep.subr.mxu0 %v2083
    %2369 = vmatpush1.msra.mxu0 %v2082
    %2370 = vmatprep.subr.mxu0 %v2085
    %2371 = vmatpush1.msra.mxu0 %v2084
    %2372 = vmatprep.subr.mxu0 0.0
    %2373 = vmatpush1.msra.mxu0 0.0
    %2374 = vmatprep.subr.mxu0 0.0
    %2375 = vmatpush1.msra.mxu0 0.0
    %2376 = vmatprep.subr.mxu0 0.0
    %2377 = vmatpush1.msra.mxu0 0.0
    %2378 = vmatprep.subr.mxu0 0.0
    %2379 = vmatpush1.msra.mxu0 0.0
    %2380 = vmatprep.subr.mxu0 0.0
    %2381 = vmatpush1.msra.mxu0 0.0
    %2382 = vmatprep.subr.mxu0 0.0
    %2383 = vmatpush1.msra.mxu0 0.0
    %2384 = vmatprep.subr.mxu0 0.0
    %2385 = vmatpush1.msra.mxu0 0.0
    %2386 = vmatprep.subr.mxu0 0.0
    %2387 = vmatpush1.msra.mxu0 0.0
    %2388 = vmatprep.subr.mxu0 0.0
    %2389 = vmatpush1.msra.mxu0 0.0
    %2390 = vmatprep.subr.mxu0 0.0
    %2391 = vmatpush1.msra.mxu0 0.0
    %2392 = vmatprep.subr.mxu0 0.0
    %2393 = vmatpush1.msra.mxu0 0.0
    %2394 = vmatprep.subr.mxu0 0.0
    %2395 = vmatpush1.msra.mxu0 0.0
    %2396 = vmatprep.subr.mxu0 0.0
    %2397 = vmatpush1.msra.mxu0 0.0
    %2398 = vmatprep.subr.mxu0 0.0
    %2399 = vmatpush1.msra.mxu0 0.0
    %2400 = vmatprep.subr.mxu0 0.0
    %2401 = vmatpush1.msra.mxu0 0.0
    %2402 = vmatprep.subr.mxu0 0.0
    %2403 = vmatpush1.msra.mxu0 0.0
    %2404 = vmatprep.subr.mxu0 0.0
    %2405 = vmatpush1.msra.mxu0 0.0
    %2406 = vmatprep.subr.mxu0 0.0
    %2407 = vmatpush1.msra.mxu0 0.0
    %2408 = vmatprep.subr.mxu0 0.0
    %2409 = vmatpush1.msra.mxu0 0.0
    %2410 = vmatprep.subr.mxu0 0.0
    %2411 = vmatpush1.msra.mxu0 0.0
    %2412 = vmatprep.subr.mxu0 0.0
    %2413 = vmatpush1.msra.mxu0 0.0
    %2414 = vmatprep.subr.mxu0 0.0
    %2415 = vmatpush1.msra.mxu0 0.0
    %2416 = vmatprep.subr.mxu0 0.0
    %2417 = vmatpush1.msra.mxu0 0.0
    %2418 = vmatprep.subr.mxu0 0.0
    %2419 = vmatpush1.msra.mxu0 0.0
    %2420 = vmatprep.mubr.f32.mxu0 0.0
    %2421 = vmatmul.mubr.f32.gmra.mrb[0].mxu0 %v2354
    %v2422 = vpop.f32.mrb[0].mxu0
    %v2423 = vadd.f32 0.0, %v2422
    %v2424 = vpop.f32.mrb[0].mxu0
    %v2425 = vadd.f32 0.0, %v2424
    %2426 = vdwg.mxu0
    %v2427 = vadd.f32 %v1840, %v2423
    %v2428 = vadd.f32 %v2060, %v2425
    %v2429 = vxor.u32 %v2427, 2147483648
    %v2430 = vmul.f32 %v2429, 1.442695
    %v2431 = vpow.pop %v2430
    %v2432 = vadd.f32 %v2431, 1.0
    %v2433 = vrcp.pop %v2432
    %v2434 = vmul.f32 1.0, %v2433
    %v2435 = vtanh.pop %v2427
    %v2436 = vsel %vm209, %v2435, %v2434
    %v2437 = vmul.f32 %v2436, %v2312
    %2439 = vrot.lane.b32.xlu0 %v2436, 64
    %v2440 = vpop.permute.xlu0 %2439
    %v2442 = vmul.f32 %v2436, %v2440
    %2444 = vrot.lane.b32.xlu0 %v2442, 32
    %v2445 = vpop.permute.xlu0 %2444
    %v2447 = vadd.f32 %v2437, %v2445
    %v2448 = vtanh.pop %v2447
    %2450 = vrot.lane.b32.xlu0 %v2448, 64
    %v2451 = vpop.permute.xlu0 %2450
    %v2453 = vmul.f32 %v2436, %v2451
    %v2454 = vxor.u32 %v2428, 2147483648
    %v2455 = vmul.f32 %v2454, 1.442695
    %v2456 = vpow.pop %v2455
    %v2457 = vadd.f32 %v2456, 1.0
    %v2458 = vrcp.pop %v2457
    %v2459 = vmul.f32 1.0, %v2458
    %v2460 = vtanh.pop %v2428
    %v2461 = vsel %vm209, %v2460, %v2459
    %v2462 = vmul.f32 %v2461, %v2337
    %2464 = vrot.lane.b32.xlu0 %v2461, 64
    %v2465 = vpop.permute.xlu0 %2464
    %v2467 = vmul.f32 %v2461, %v2465
    %2469 = vrot.lane.b32.xlu0 %v2467, 32
    %v2470 = vpop.permute.xlu0 %2469
    %v2472 = vadd.f32 %v2462, %v2470
    %v2473 = vtanh.pop %v2472
    %2475 = vrot.lane.b32.xlu0 %v2473, 64
    %v2476 = vpop.permute.xlu0 %2475
    %v2478 = vmul.f32 %v2461, %v2476
    %2480 = vrot.lane.b32.xlu0 %v2453, 32
    %v2481 = vpop.permute.xlu0 %2480
    %2484 = vrot.lane.b32.xlu0 %v2478, 64
    %v2485 = vpop.permute.xlu0 %2484
    %v2487 = vsel %vm624, %v2481, %v2485
    %v2489 = vsel %vm489, %v2487, 0
    %2491 = vmatprep.subr.mxu0 %v2071
    %2492 = vmatpush1.msra.mxu0 %v2070
    %2493 = vmatprep.subr.mxu0 %v2073
    %2494 = vmatpush1.msra.mxu0 %v2072
    %2495 = vmatprep.subr.mxu0 %v2075
    %2496 = vmatpush1.msra.mxu0 %v2074
    %2497 = vmatprep.subr.mxu0 %v2077
    %2498 = vmatpush1.msra.mxu0 %v2076
    %2499 = vmatprep.subr.mxu0 %v2079
    %2500 = vmatpush1.msra.mxu0 %v2078
    %2501 = vmatprep.subr.mxu0 %v2081
    %2502 = vmatpush1.msra.mxu0 %v2080
    %2503 = vmatprep.subr.mxu0 %v2083
    %2504 = vmatpush1.msra.mxu0 %v2082
    %2505 = vmatprep.subr.mxu0 %v2085
    %2506 = vmatpush1.msra.mxu0 %v2084
    %2507 = vmatprep.subr.mxu0 0.0
    %2508 = vmatpush1.msra.mxu0 0.0
    %2509 = vmatprep.subr.mxu0 0.0
    %2510 = vmatpush1.msra.mxu0 0.0
    %2511 = vmatprep.subr.mxu0 0.0
    %2512 = vmatpush1.msra.mxu0 0.0
    %2513 = vmatprep.subr.mxu0 0.0
    %2514 = vmatpush1.msra.mxu0 0.0
    %2515 = vmatprep.subr.mxu0 0.0
    %2516 = vmatpush1.msra.mxu0 0.0
    %2517 = vmatprep.subr.mxu0 0.0
    %2518 = vmatpush1.msra.mxu0 0.0
    %2519 = vmatprep.subr.mxu0 0.0
    %2520 = vmatpush1.msra.mxu0 0.0
    %2521 = vmatprep.subr.mxu0 0.0
    %2522 = vmatpush1.msra.mxu0 0.0
    %2523 = vmatprep.subr.mxu0 0.0
    %2524 = vmatpush1.msra.mxu0 0.0
    %2525 = vmatprep.subr.mxu0 0.0
    %2526 = vmatpush1.msra.mxu0 0.0
    %2527 = vmatprep.subr.mxu0 0.0
    %2528 = vmatpush1.msra.mxu0 0.0
    %2529 = vmatprep.subr.mxu0 0.0
    %2530 = vmatpush1.msra.mxu0 0.0
    %2531 = vmatprep.subr.mxu0 0.0
    %2532 = vmatpush1.msra.mxu0 0.0
    %2533 = vmatprep.subr.mxu0 0.0
    %2534 = vmatpush1.msra.mxu0 0.0
    %2535 = vmatprep.subr.mxu0 0.0
    %2536 = vmatpush1.msra.mxu0 0.0
    %2537 = vmatprep.subr.mxu0 0.0
    %2538 = vmatpush1.msra.mxu0 0.0
    %2539 = vmatprep.subr.mxu0 0.0
    %2540 = vmatpush1.msra.mxu0 0.0
    %2541 = vmatprep.subr.mxu0 0.0
    %2542 = vmatpush1.msra.mxu0 0.0
    %2543 = vmatprep.subr.mxu0 0.0
    %2544 = vmatpush1.msra.mxu0 0.0
    %2545 = vmatprep.subr.mxu0 0.0
    %2546 = vmatpush1.msra.mxu0 0.0
    %2547 = vmatprep.subr.mxu0 0.0
    %2548 = vmatpush1.msra.mxu0 0.0
    %2549 = vmatprep.subr.mxu0 0.0
    %2550 = vmatpush1.msra.mxu0 0.0
    %2551 = vmatprep.subr.mxu0 0.0
    %2552 = vmatpush1.msra.mxu0 0.0
    %2553 = vmatprep.subr.mxu0 0.0
    %2554 = vmatpush1.msra.mxu0 0.0
    %2555 = vmatprep.mubr.f32.mxu0 0.0
    %2556 = vmatmul.mubr.f32.gmra.mrb[0].mxu0 %v2489
    %v2557 = vpop.f32.mrb[0].mxu0
    %v2558 = vadd.f32 0.0, %v2557
    %v2559 = vpop.f32.mrb[0].mxu0
    %v2560 = vadd.f32 0.0, %v2559
    %2561 = vdwg.mxu0
    %v2562 = vadd.f32 %v1842, %v2558
    %v2563 = vadd.f32 %v2052, %v2560
    %v2564 = vxor.u32 %v2562, 2147483648
    %v2565 = vmul.f32 %v2564, 1.442695
    %v2566 = vpow.pop %v2565
    %v2567 = vadd.f32 %v2566, 1.0
    %v2568 = vrcp.pop %v2567
    %v2569 = vmul.f32 1.0, %v2568
    %v2570 = vtanh.pop %v2562
    %v2571 = vsel %vm209, %v2570, %v2569
    %v2572 = vmul.f32 %v2571, %v2447
    %2574 = vrot.lane.b32.xlu0 %v2571, 64
    %v2575 = vpop.permute.xlu0 %2574
    %v2577 = vmul.f32 %v2571, %v2575
    %2579 = vrot.lane.b32.xlu0 %v2577, 32
    %v2580 = vpop.permute.xlu0 %2579
    %v2582 = vadd.f32 %v2572, %v2580
    %v2583 = vtanh.pop %v2582
    %2585 = vrot.lane.b32.xlu0 %v2583, 64
    %v2586 = vpop.permute.xlu0 %2585
    %v2588 = vmul.f32 %v2571, %v2586
    %v2589 = vxor.u32 %v2563, 2147483648
    %v2590 = vmul.f32 %v2589, 1.442695
    %v2591 = vpow.pop %v2590
    %v2592 = vadd.f32 %v2591, 1.0
    %v2593 = vrcp.pop %v2592
    %v2594 = vmul.f32 1.0, %v2593
    %v2595 = vtanh.pop %v2563
    %v2596 = vsel %vm209, %v2595, %v2594
    %v2597 = vmul.f32 %v2596, %v2472
    %2599 = vrot.lane.b32.xlu0 %v2596, 64
    %v2600 = vpop.permute.xlu0 %2599
    %v2602 = vmul.f32 %v2596, %v2600
    %2604 = vrot.lane.b32.xlu0 %v2602, 32
    %v2605 = vpop.permute.xlu0 %2604
    %v2607 = vadd.f32 %v2597, %v2605
    %v2608 = vtanh.pop %v2607
    %2610 = vrot.lane.b32.xlu0 %v2608, 64
    %v2611 = vpop.permute.xlu0 %2610
    %v2613 = vmul.f32 %v2596, %v2611
    %2615 = vrot.lane.b32.xlu0 %v2588, 32
    %v2616 = vpop.permute.xlu0 %2615
    %2619 = vrot.lane.b32.xlu0 %v2613, 64
    %v2620 = vpop.permute.xlu0 %2619
    %v2622 = vsel %vm624, %v2616, %v2620
    %v2624 = vsel %vm489, %v2622, 0
    %2626 = vmatprep.subr.mxu0 %v2071
    %2627 = vmatpush1.msra.mxu0 %v2070
    %2628 = vmatprep.subr.mxu0 %v2073
    %2629 = vmatpush1.msra.mxu0 %v2072
    %2630 = vmatprep.subr.mxu0 %v2075
    %2631 = vmatpush1.msra.mxu0 %v2074
    %2632 = vmatprep.subr.mxu0 %v2077
    %2633 = vmatpush1.msra.mxu0 %v2076
    %2634 = vmatprep.subr.mxu0 %v2079
    %2635 = vmatpush1.msra.mxu0 %v2078
    %2636 = vmatprep.subr.mxu0 %v2081
    %2637 = vmatpush1.msra.mxu0 %v2080
    %2638 = vmatprep.subr.mxu0 %v2083
    %2639 = vmatpush1.msra.mxu0 %v2082
    %2640 = vmatprep.subr.mxu0 %v2085
    %2641 = vmatpush1.msra.mxu0 %v2084
    %2642 = vmatprep.subr.mxu0 0.0
    %2643 = vmatpush1.msra.mxu0 0.0
    %2644 = vmatprep.subr.mxu0 0.0
    %2645 = vmatpush1.msra.mxu0 0.0
    %2646 = vmatprep.subr.mxu0 0.0
    %2647 = vmatpush1.msra.mxu0 0.0
    %2648 = vmatprep.subr.mxu0 0.0
    %2649 = vmatpush1.msra.mxu0 0.0
    %2650 = vmatprep.subr.mxu0 0.0
    %2651 = vmatpush1.msra.mxu0 0.0
    %2652 = vmatprep.subr.mxu0 0.0
    %2653 = vmatpush1.msra.mxu0 0.0
    %2654 = vmatprep.subr.mxu0 0.0
    %2655 = vmatpush1.msra.mxu0 0.0
    %2656 = vmatprep.subr.mxu0 0.0
    %2657 = vmatpush1.msra.mxu0 0.0
    %2658 = vmatprep.subr.mxu0 0.0
    %2659 = vmatpush1.msra.mxu0 0.0
    %2660 = vmatprep.subr.mxu0 0.0
    %2661 = vmatpush1.msra.mxu0 0.0
    %2662 = vmatprep.subr.mxu0 0.0
    %2663 = vmatpush1.msra.mxu0 0.0
    %2664 = vmatprep.subr.mxu0 0.0
    %2665 = vmatpush1.msra.mxu0 0.0
    %2666 = vmatprep.subr.mxu0 0.0
    %2667 = vmatpush1.msra.mxu0 0.0
    %2668 = vmatprep.subr.mxu0 0.0
    %2669 = vmatpush1.msra.mxu0 0.0
    %2670 = vmatprep.subr.mxu0 0.0
    %2671 = vmatpush1.msra.mxu0 0.0
    %2672 = vmatprep.subr.mxu0 0.0
    %2673 = vmatpush1.msra.mxu0 0.0
    %2674 = vmatprep.subr.mxu0 0.0
    %2675 = vmatpush1.msra.mxu0 0.0
    %2676 = vmatprep.subr.mxu0 0.0
    %2677 = vmatpush1.msra.mxu0 0.0
    %2678 = vmatprep.subr.mxu0 0.0
    %2679 = vmatpush1.msra.mxu0 0.0
    %2680 = vmatprep.subr.mxu0 0.0
    %2681 = vmatpush1.msra.mxu0 0.0
    %2682 = vmatprep.subr.mxu0 0.0
    %2683 = vmatpush1.msra.mxu0 0.0
    %2684 = vmatprep.subr.mxu0 0.0
    %2685 = vmatpush1.msra.mxu0 0.0
    %2686 = vmatprep.subr.mxu0 0.0
    %2687 = vmatpush1.msra.mxu0 0.0
    %2688 = vmatprep.subr.mxu0 0.0
    %2689 = vmatpush1.msra.mxu0 0.0
    %2690 = vmatprep.mubr.f32.mxu0 0.0
    %2691 = vmatmul.mubr.f32.gmra.mrb[0].mxu0 %v2624
    %v2692 = vpop.f32.mrb[0].mxu0
    %v2693 = vadd.f32 0.0, %v2692
    %v2694 = vpop.f32.mrb[0].mxu0
    %v2695 = vadd.f32 0.0, %v2694
    %2696 = vdwg.mxu0
    %v2697 = vadd.f32 %v1850, %v2693
    %v2698 = vadd.f32 %v2044, %v2695
    %v2699 = vxor.u32 %v2697, 2147483648
    %v2700 = vmul.f32 %v2699, 1.442695
    %v2701 = vpow.pop %v2700
    %v2702 = vadd.f32 %v2701, 1.0
    %v2703 = vrcp.pop %v2702
    %v2704 = vmul.f32 1.0, %v2703
    %v2705 = vtanh.pop %v2697
    %v2706 = vsel %vm209, %v2705, %v2704
    %v2707 = vmul.f32 %v2706, %v2582
    %2709 = vrot.lane.b32.xlu0 %v2706, 64
    %v2710 = vpop.permute.xlu0 %2709
    %v2712 = vmul.f32 %v2706, %v2710
    %2714 = vrot.lane.b32.xlu0 %v2712, 32
    %v2715 = vpop.permute.xlu0 %2714
    %v2717 = vadd.f32 %v2707, %v2715
    %v2718 = vtanh.pop %v2717
    %2720 = vrot.lane.b32.xlu0 %v2718, 64
    %v2721 = vpop.permute.xlu0 %2720
    %v2723 = vmul.f32 %v2706, %v2721
    %v2724 = vxor.u32 %v2698, 2147483648
    %v2725 = vmul.f32 %v2724, 1.442695
    %v2726 = vpow.pop %v2725
    %v2727 = vadd.f32 %v2726, 1.0
    %v2728 = vrcp.pop %v2727
    %v2729 = vmul.f32 1.0, %v2728
    %v2730 = vtanh.pop %v2698
    %v2731 = vsel %vm209, %v2730, %v2729
    %v2732 = vmul.f32 %v2731, %v2607
    %2734 = vrot.lane.b32.xlu0 %v2731, 64
    %v2735 = vpop.permute.xlu0 %2734
    %v2737 = vmul.f32 %v2731, %v2735
    %2739 = vrot.lane.b32.xlu0 %v2737, 32
    %v2740 = vpop.permute.xlu0 %2739
    %v2742 = vadd.f32 %v2732, %v2740
    %v2743 = vtanh.pop %v2742
    %2745 = vrot.lane.b32.xlu0 %v2743, 64
    %v2746 = vpop.permute.xlu0 %2745
    %v2748 = vmul.f32 %v2731, %v2746
    %2750 = vrot.lane.b32.xlu0 %v2723, 32
    %v2751 = vpop.permute.xlu0 %2750
    %2754 = vrot.lane.b32.xlu0 %v2748, 64
    %v2755 = vpop.permute.xlu0 %2754
    %v2757 = vsel %vm624, %v2751, %v2755
    %v2759 = vsel %vm489, %v2757, 0
    %2761 = vmatprep.subr.mxu0 %v2071
    %2762 = vmatpush1.msra.mxu0 %v2070
    %2763 = vmatprep.subr.mxu0 %v2073
    %2764 = vmatpush1.msra.mxu0 %v2072
    %2765 = vmatprep.subr.mxu0 %v2075
    %2766 = vmatpush1.msra.mxu0 %v2074
    %2767 = vmatprep.subr.mxu0 %v2077
    %2768 = vmatpush1.msra.mxu0 %v2076
    %2769 = vmatprep.subr.mxu0 %v2079
    %2770 = vmatpush1.msra.mxu0 %v2078
    %2771 = vmatprep.subr.mxu0 %v2081
    %2772 = vmatpush1.msra.mxu0 %v2080
    %2773 = vmatprep.subr.mxu0 %v2083
    %2774 = vmatpush1.msra.mxu0 %v2082
    %2775 = vmatprep.subr.mxu0 %v2085
    %2776 = vmatpush1.msra.mxu0 %v2084
    %2777 = vmatprep.subr.mxu0 0.0
    %2778 = vmatpush1.msra.mxu0 0.0
    %2779 = vmatprep.subr.mxu0 0.0
    %2780 = vmatpush1.msra.mxu0 0.0
    %2781 = vmatprep.subr.mxu0 0.0
    %2782 = vmatpush1.msra.mxu0 0.0
    %2783 = vmatprep.subr.mxu0 0.0
    %2784 = vmatpush1.msra.mxu0 0.0
    %2785 = vmatprep.subr.mxu0 0.0
    %2786 = vmatpush1.msra.mxu0 0.0
    %2787 = vmatprep.subr.mxu0 0.0
    %2788 = vmatpush1.msra.mxu0 0.0
    %2789 = vmatprep.subr.mxu0 0.0
    %2790 = vmatpush1.msra.mxu0 0.0
    %2791 = vmatprep.subr.mxu0 0.0
    %2792 = vmatpush1.msra.mxu0 0.0
    %2793 = vmatprep.subr.mxu0 0.0
    %2794 = vmatpush1.msra.mxu0 0.0
    %2795 = vmatprep.subr.mxu0 0.0
    %2796 = vmatpush1.msra.mxu0 0.0
    %2797 = vmatprep.subr.mxu0 0.0
    %2798 = vmatpush1.msra.mxu0 0.0
    %2799 = vmatprep.subr.mxu0 0.0
    %2800 = vmatpush1.msra.mxu0 0.0
    %2801 = vmatprep.subr.mxu0 0.0
    %2802 = vmatpush1.msra.mxu0 0.0
    %2803 = vmatprep.subr.mxu0 0.0
    %2804 = vmatpush1.msra.mxu0 0.0
    %2805 = vmatprep.subr.mxu0 0.0
    %2806 = vmatpush1.msra.mxu0 0.0
    %2807 = vmatprep.subr.mxu0 0.0
    %2808 = vmatpush1.msra.mxu0 0.0
    %2809 = vmatprep.subr.mxu0 0.0
    %2810 = vmatpush1.msra.mxu0 0.0
    %2811 = vmatprep.subr.mxu0 0.0
    %2812 = vmatpush1.msra.mxu0 0.0
    %2813 = vmatprep.subr.mxu0 0.0
    %2814 = vmatpush1.msra.mxu0 0.0
    %2815 = vmatprep.subr.mxu0 0.0
    %2816 = vmatpush1.msra.mxu0 0.0
    %2817 = vmatprep.subr.mxu0 0.0
    %2818 = vmatpush1.msra.mxu0 0.0
    %2819 = vmatprep.subr.mxu0 0.0
    %2820 = vmatpush1.msra.mxu0 0.0
    %2821 = vmatprep.subr.mxu0 0.0
    %2822 = vmatpush1.msra.mxu0 0.0
    %2823 = vmatprep.subr.mxu0 0.0
    %2824 = vmatpush1.msra.mxu0 0.0
    %2825 = vmatprep.mubr.f32.mxu0 0.0
    %2826 = vmatmul.mubr.f32.gmra.mrb[0].mxu0 %v2759
    %v2827 = vpop.f32.mrb[0].mxu0
    %v2828 = vadd.f32 0.0, %v2827
    %v2829 = vpop.f32.mrb[0].mxu0
    %v2830 = vadd.f32 0.0, %v2829
    %2831 = vdwg.mxu0
    %v2832 = vadd.f32 %v1858, %v2828
    %v2833 = vadd.f32 %v2042, %v2830
    %v2834 = vxor.u32 %v2832, 2147483648
    %v2835 = vmul.f32 %v2834, 1.442695
    %v2836 = vpow.pop %v2835
    %v2837 = vadd.f32 %v2836, 1.0
    %v2838 = vrcp.pop %v2837
    %v2839 = vmul.f32 1.0, %v2838
    %v2840 = vtanh.pop %v2832
    %v2841 = vsel %vm209, %v2840, %v2839
    %v2842 = vmul.f32 %v2841, %v2717
    %2844 = vrot.lane.b32.xlu0 %v2841, 64
    %v2845 = vpop.permute.xlu0 %2844
    %v2847 = vmul.f32 %v2841, %v2845
    %2849 = vrot.lane.b32.xlu0 %v2847, 32
    %v2850 = vpop.permute.xlu0 %2849
    %v2852 = vadd.f32 %v2842, %v2850
    %v2853 = vtanh.pop %v2852
    %2855 = vrot.lane.b32.xlu0 %v2853, 64
    %v2856 = vpop.permute.xlu0 %2855
    %v2858 = vmul.f32 %v2841, %v2856
    %v2859 = vxor.u32 %v2833, 2147483648
    %v2860 = vmul.f32 %v2859, 1.442695
    %v2861 = vpow.pop %v2860
    %v2862 = vadd.f32 %v2861, 1.0
    %v2863 = vrcp.pop %v2862
    %v2864 = vmul.f32 1.0, %v2863
    %v2865 = vtanh.pop %v2833
    %v2866 = vsel %vm209, %v2865, %v2864
    %v2867 = vmul.f32 %v2866, %v2742
    %2869 = vrot.lane.b32.xlu0 %v2866, 64
    %v2870 = vpop.permute.xlu0 %2869
    %v2872 = vmul.f32 %v2866, %v2870
    %2874 = vrot.lane.b32.xlu0 %v2872, 32
    %v2875 = vpop.permute.xlu0 %2874
    %v2877 = vadd.f32 %v2867, %v2875
    %v2878 = vtanh.pop %v2877
    %2880 = vrot.lane.b32.xlu0 %v2878, 64
    %v2881 = vpop.permute.xlu0 %2880
    %v2883 = vmul.f32 %v2866, %v2881
    %2885 = vrot.lane.b32.xlu0 %v2858, 32
    %v2886 = vpop.permute.xlu0 %2885
    %2889 = vrot.lane.b32.xlu0 %v2883, 64
    %v2890 = vpop.permute.xlu0 %2889
    %v2892 = vsel %vm624, %v2886, %v2890
    %v2894 = vsel %vm489, %v2892, 0
    %2896 = vmatprep.subr.mxu0 %v2071
    %2897 = vmatpush1.msra.mxu0 %v2070
    %2898 = vmatprep.subr.mxu0 %v2073
    %2899 = vmatpush1.msra.mxu0 %v2072
    %2900 = vmatprep.subr.mxu0 %v2075
    %2901 = vmatpush1.msra.mxu0 %v2074
    %2902 = vmatprep.subr.mxu0 %v2077
    %2903 = vmatpush1.msra.mxu0 %v2076
    %2904 = vmatprep.subr.mxu0 %v2079
    %2905 = vmatpush1.msra.mxu0 %v2078
    %2906 = vmatprep.subr.mxu0 %v2081
    %2907 = vmatpush1.msra.mxu0 %v2080
    %2908 = vmatprep.subr.mxu0 %v2083
    %2909 = vmatpush1.msra.mxu0 %v2082
    %2910 = vmatprep.subr.mxu0 %v2085
    %2911 = vmatpush1.msra.mxu0 %v2084
    %2912 = vmatprep.subr.mxu0 0.0
    %2913 = vmatpush1.msra.mxu0 0.0
    %2914 = vmatprep.subr.mxu0 0.0
    %2915 = vmatpush1.msra.mxu0 0.0
    %2916 = vmatprep.subr.mxu0 0.0
    %2917 = vmatpush1.msra.mxu0 0.0
    %2918 = vmatprep.subr.mxu0 0.0
    %2919 = vmatpush1.msra.mxu0 0.0
    %2920 = vmatprep.subr.mxu0 0.0
    %2921 = vmatpush1.msra.mxu0 0.0
    %2922 = vmatprep.subr.mxu0 0.0
    %2923 = vmatpush1.msra.mxu0 0.0
    %2924 = vmatprep.subr.mxu0 0.0
    %2925 = vmatpush1.msra.mxu0 0.0
    %2926 = vmatprep.subr.mxu0 0.0
    %2927 = vmatpush1.msra.mxu0 0.0
    %2928 = vmatprep.subr.mxu0 0.0
    %2929 = vmatpush1.msra.mxu0 0.0
    %2930 = vmatprep.subr.mxu0 0.0
    %2931 = vmatpush1.msra.mxu0 0.0
    %2932 = vmatprep.subr.mxu0 0.0
    %2933 = vmatpush1.msra.mxu0 0.0
    %2934 = vmatprep.subr.mxu0 0.0
    %2935 = vmatpush1.msra.mxu0 0.0
    %2936 = vmatprep.subr.mxu0 0.0
    %2937 = vmatpush1.msra.mxu0 0.0
    %2938 = vmatprep.subr.mxu0 0.0
    %2939 = vmatpush1.msra.mxu0 0.0
    %2940 = vmatprep.subr.mxu0 0.0
    %2941 = vmatpush1.msra.mxu0 0.0
    %2942 = vmatprep.subr.mxu0 0.0
    %2943 = vmatpush1.msra.mxu0 0.0
    %2944 = vmatprep.subr.mxu0 0.0
    %2945 = vmatpush1.msra.mxu0 0.0
    %2946 = vmatprep.subr.mxu0 0.0
    %2947 = vmatpush1.msra.mxu0 0.0
    %2948 = vmatprep.subr.mxu0 0.0
    %2949 = vmatpush1.msra.mxu0 0.0
    %2950 = vmatprep.subr.mxu0 0.0
    %2951 = vmatpush1.msra.mxu0 0.0
    %2952 = vmatprep.subr.mxu0 0.0
    %2953 = vmatpush1.msra.mxu0 0.0
    %2954 = vmatprep.subr.mxu0 0.0
    %2955 = vmatpush1.msra.mxu0 0.0
    %2956 = vmatprep.subr.mxu0 0.0
    %2957 = vmatpush1.msra.mxu0 0.0
    %2958 = vmatprep.subr.mxu0 0.0
    %2959 = vmatpush1.msra.mxu0 0.0
    %2960 = vmatprep.mubr.f32.mxu0 0.0
    %2961 = vmatmul.mubr.f32.gmra.mrb[0].mxu0 %v2894
    %v2962 = vpop.f32.mrb[0].mxu0
    %v2963 = vadd.f32 0.0, %v2962
    %v2964 = vpop.f32.mrb[0].mxu0
    %v2965 = vadd.f32 0.0, %v2964
    %2966 = vdwg.mxu0
    %v2967 = vadd.f32 %v1857, %v2963
    %v2968 = vadd.f32 %v2043, %v2965
    %v2969 = vxor.u32 %v2967, 2147483648
    %v2970 = vmul.f32 %v2969, 1.442695
    %v2971 = vpow.pop %v2970
    %v2972 = vadd.f32 %v2971, 1.0
    %v2973 = vrcp.pop %v2972
    %v2974 = vmul.f32 1.0, %v2973
    %v2975 = vtanh.pop %v2967
    %v2976 = vsel %vm209, %v2975, %v2974
    %v2977 = vmul.f32 %v2976, %v2852
    %2979 = vrot.lane.b32.xlu0 %v2976, 64
    %v2980 = vpop.permute.xlu0 %2979
    %v2982 = vmul.f32 %v2976, %v2980
    %2984 = vrot.lane.b32.xlu0 %v2982, 32
    %v2985 = vpop.permute.xlu0 %2984
    %v2987 = vadd.f32 %v2977, %v2985
    %v2988 = vtanh.pop %v2987
    %2990 = vrot.lane.b32.xlu0 %v2988, 64
    %v2991 = vpop.permute.xlu0 %2990
    %v2993 = vmul.f32 %v2976, %v2991
    %v2994 = vxor.u32 %v2968, 2147483648
    %v2995 = vmul.f32 %v2994, 1.442695
    %v2996 = vpow.pop %v2995
    %v2997 = vadd.f32 %v2996, 1.0
    %v2998 = vrcp.pop %v2997
    %v2999 = vmul.f32 1.0, %v2998
    %v3000 = vtanh.pop %v2968
    %v3001 = vsel %vm209, %v3000, %v2999
    %v3002 = vmul.f32 %v3001, %v2877
    %3004 = vrot.lane.b32.xlu0 %v3001, 64
    %v3005 = vpop.permute.xlu0 %3004
    %v3007 = vmul.f32 %v3001, %v3005
    %3009 = vrot.lane.b32.xlu0 %v3007, 32
    %v3010 = vpop.permute.xlu0 %3009
    %v3012 = vadd.f32 %v3002, %v3010
    %v3013 = vtanh.pop %v3012
    %3015 = vrot.lane.b32.xlu0 %v3013, 64
    %v3016 = vpop.permute.xlu0 %3015
    %v3018 = vmul.f32 %v3001, %v3016
    %3020 = vrot.lane.b32.xlu0 %v2993, 32
    %v3021 = vpop.permute.xlu0 %3020
    %3024 = vrot.lane.b32.xlu0 %v3018, 64
    %v3025 = vpop.permute.xlu0 %3024
    %v3027 = vsel %vm624, %v3021, %v3025
    %v3029 = vsel %vm489, %v3027, 0
    %3031 = vmatprep.subr.mxu0 %v2071
    %3032 = vmatpush1.msra.mxu0 %v2070
    %3033 = vmatprep.subr.mxu0 %v2073
    %3034 = vmatpush1.msra.mxu0 %v2072
    %3035 = vmatprep.subr.mxu0 %v2075
    %3036 = vmatpush1.msra.mxu0 %v2074
    %3037 = vmatprep.subr.mxu0 %v2077
    %3038 = vmatpush1.msra.mxu0 %v2076
    %3039 = vmatprep.subr.mxu0 %v2079
    %3040 = vmatpush1.msra.mxu0 %v2078
    %3041 = vmatprep.subr.mxu0 %v2081
    %3042 = vmatpush1.msra.mxu0 %v2080
    %3043 = vmatprep.subr.mxu0 %v2083
    %3044 = vmatpush1.msra.mxu0 %v2082
    %3045 = vmatprep.subr.mxu0 %v2085
    %3046 = vmatpush1.msra.mxu0 %v2084
    %3047 = vmatprep.subr.mxu0 0.0
    %3048 = vmatpush1.msra.mxu0 0.0
    %3049 = vmatprep.subr.mxu0 0.0
    %3050 = vmatpush1.msra.mxu0 0.0
    %3051 = vmatprep.subr.mxu0 0.0
    %3052 = vmatpush1.msra.mxu0 0.0
    %3053 = vmatprep.subr.mxu0 0.0
    %3054 = vmatpush1.msra.mxu0 0.0
    %3055 = vmatprep.subr.mxu0 0.0
    %3056 = vmatpush1.msra.mxu0 0.0
    %3057 = vmatprep.subr.mxu0 0.0
    %3058 = vmatpush1.msra.mxu0 0.0
    %3059 = vmatprep.subr.mxu0 0.0
    %3060 = vmatpush1.msra.mxu0 0.0
    %3061 = vmatprep.subr.mxu0 0.0
    %3062 = vmatpush1.msra.mxu0 0.0
    %3063 = vmatprep.subr.mxu0 0.0
    %3064 = vmatpush1.msra.mxu0 0.0
    %3065 = vmatprep.subr.mxu0 0.0
    %3066 = vmatpush1.msra.mxu0 0.0
    %3067 = vmatprep.subr.mxu0 0.0
    %3068 = vmatpush1.msra.mxu0 0.0
    %3069 = vmatprep.subr.mxu0 0.0
    %3070 = vmatpush1.msra.mxu0 0.0
    %3071 = vmatprep.subr.mxu0 0.0
    %3072 = vmatpush1.msra.mxu0 0.0
    %3073 = vmatprep.subr.mxu0 0.0
    %3074 = vmatpush1.msra.mxu0 0.0
    %3075 = vmatprep.subr.mxu0 0.0
    %3076 = vmatpush1.msra.mxu0 0.0
    %3077 = vmatprep.subr.mxu0 0.0
    %3078 = vmatpush1.msra.mxu0 0.0
    %3079 = vmatprep.subr.mxu0 0.0
    %3080 = vmatpush1.msra.mxu0 0.0
    %3081 = vmatprep.subr.mxu0 0.0
    %3082 = vmatpush1.msra.mxu0 0.0
    %3083 = vmatprep.subr.mxu0 0.0
    %3084 = vmatpush1.msra.mxu0 0.0
    %3085 = vmatprep.subr.mxu0 0.0
    %3086 = vmatpush1.msra.mxu0 0.0
    %3087 = vmatprep.subr.mxu0 0.0
    %3088 = vmatpush1.msra.mxu0 0.0
    %3089 = vmatprep.subr.mxu0 0.0
    %3090 = vmatpush1.msra.mxu0 0.0
    %3091 = vmatprep.subr.mxu0 0.0
    %3092 = vmatpush1.msra.mxu0 0.0
    %3093 = vmatprep.subr.mxu0 0.0
    %3094 = vmatpush1.msra.mxu0 0.0
    %3095 = vmatprep.mubr.f32.mxu0 0.0
    %3096 = vmatmul.mubr.f32.gmra.mrb[0].mxu0 %v3029
    %v3097 = vpop.f32.mrb[0].mxu0
    %v3098 = vadd.f32 0.0, %v3097
    %v3099 = vpop.f32.mrb[0].mxu0
    %v3100 = vadd.f32 0.0, %v3099
    %3101 = vdwg.mxu0
    %v3102 = vadd.f32 %v1859, %v3098
    %v3103 = vadd.f32 %v2035, %v3100
    %v3104 = vxor.u32 %v3102, 2147483648
    %v3105 = vmul.f32 %v3104, 1.442695
    %v3106 = vpow.pop %v3105
    %v3107 = vadd.f32 %v3106, 1.0
    %v3108 = vrcp.pop %v3107
    %v3109 = vmul.f32 1.0, %v3108
    %v3110 = vtanh.pop %v3102
    %v3111 = vsel %vm209, %v3110, %v3109
    %v3112 = vmul.f32 %v3111, %v2987
    %3114 = vrot.lane.b32.xlu0 %v3111, 64
    %v3115 = vpop.permute.xlu0 %3114
    %v3117 = vmul.f32 %v3111, %v3115
    %3119 = vrot.lane.b32.xlu0 %v3117, 32
    %v3120 = vpop.permute.xlu0 %3119
    %v3122 = vadd.f32 %v3112, %v3120
    %v3123 = vtanh.pop %v3122
    %3125 = vrot.lane.b32.xlu0 %v3123, 64
    %v3126 = vpop.permute.xlu0 %3125
    %v3128 = vmul.f32 %v3111, %v3126
    %v3129 = vxor.u32 %v3103, 2147483648
    %v3130 = vmul.f32 %v3129, 1.442695
    %v3131 = vpow.pop %v3130
    %v3132 = vadd.f32 %v3131, 1.0
    %v3133 = vrcp.pop %v3132
    %v3134 = vmul.f32 1.0, %v3133
    %v3135 = vtanh.pop %v3103
    %v3136 = vsel %vm209, %v3135, %v3134
    %v3137 = vmul.f32 %v3136, %v3012
    %3139 = vrot.lane.b32.xlu0 %v3136, 64
    %v3140 = vpop.permute.xlu0 %3139
    %v3142 = vmul.f32 %v3136, %v3140
    %3144 = vrot.lane.b32.xlu0 %v3142, 32
    %v3145 = vpop.permute.xlu0 %3144
    %v3147 = vadd.f32 %v3137, %v3145
    %v3148 = vtanh.pop %v3147
    %3150 = vrot.lane.b32.xlu0 %v3148, 64
    %v3151 = vpop.permute.xlu0 %3150
    %v3153 = vmul.f32 %v3136, %v3151
    %3155 = vrot.lane.b32.xlu0 %v3128, 32
    %v3156 = vpop.permute.xlu0 %3155
    %3159 = vrot.lane.b32.xlu0 %v3153, 64
    %v3160 = vpop.permute.xlu0 %3159
    %v3162 = vsel %vm624, %v3156, %v3160
    %v3163 = vld [vmem:[%s13] sm:$0xff]
    %v3164 = vld [vmem:[%s13 + $0x8] sm:$0xff]
    %v3165 = vld [vmem:[%s13 + $0x10] sm:$0xff]
    %v3166 = vld [vmem:[%s13 + $0x18] sm:$0xff]
    %v3167 = vld [vmem:[%s13 + $0x20] sm:$0xff]
    %v3168 = vld [vmem:[%s13 + $0x28] sm:$0xff]
    %v3169 = vld [vmem:[%s13 + $0x30] sm:$0xff]
    %v3170 = vld [vmem:[%s13 + $0x38] sm:$0xff]
    %v3171 = vld [vmem:[%s14] sm:$0x1]
    %v3173 = vlaneseq
    %v3174 = vshrl.u32 %v3173, 7
    %v3175 = vsub.s32 0, %v3174
    %v3176 = vrot.slane %v3171, %v3175
    %v3179 = vsel %vm489, %v3162, 0
    %3181 = vmatprep.subr.mxu0 0.0
    %3182 = vmatpush1.msra.mxu0 %v3163
    %3183 = vmatprep.subr.mxu0 0.0
    %3184 = vmatpush1.msra.mxu0 %v3164
    %3185 = vmatprep.subr.mxu0 0.0
    %3186 = vmatpush1.msra.mxu0 %v3165
    %3187 = vmatprep.subr.mxu0 0.0
    %3188 = vmatpush1.msra.mxu0 %v3166
    %3189 = vmatprep.subr.mxu0 0.0
    %3190 = vmatpush1.msra.mxu0 %v3167
    %3191 = vmatprep.subr.mxu0 0.0
    %3192 = vmatpush1.msra.mxu0 %v3168
    %3193 = vmatprep.subr.mxu0 0.0
    %3194 = vmatpush1.msra.mxu0 %v3169
    %3195 = vmatprep.subr.mxu0 0.0
    %3196 = vmatpush1.msra.mxu0 %v3170
    %3197 = vmatprep.subr.mxu0 0.0
    %3198 = vmatpush1.msra.mxu0 0.0
    %3199 = vmatprep.subr.mxu0 0.0
    %3200 = vmatpush1.msra.mxu0 0.0
    %3201 = vmatprep.subr.mxu0 0.0
    %3202 = vmatpush1.msra.mxu0 0.0
    %3203 = vmatprep.subr.mxu0 0.0
    %3204 = vmatpush1.msra.mxu0 0.0
    %3205 = vmatprep.subr.mxu0 0.0
    %3206 = vmatpush1.msra.mxu0 0.0
    %3207 = vmatprep.subr.mxu0 0.0
    %3208 = vmatpush1.msra.mxu0 0.0
    %3209 = vmatprep.subr.mxu0 0.0
    %3210 = vmatpush1.msra.mxu0 0.0
    %3211 = vmatprep.subr.mxu0 0.0
    %3212 = vmatpush1.msra.mxu0 0.0
    %3213 = vmatprep.subr.mxu0 0.0
    %3214 = vmatpush1.msra.mxu0 0.0
    %3215 = vmatprep.subr.mxu0 0.0
    %3216 = vmatpush1.msra.mxu0 0.0
    %3217 = vmatprep.subr.mxu0 0.0
    %3218 = vmatpush1.msra.mxu0 0.0
    %3219 = vmatprep.subr.mxu0 0.0
    %3220 = vmatpush1.msra.mxu0 0.0
    %3221 = vmatprep.subr.mxu0 0.0
    %3222 = vmatpush1.msra.mxu0 0.0
    %3223 = vmatprep.subr.mxu0 0.0
    %3224 = vmatpush1.msra.mxu0 0.0
    %3225 = vmatprep.subr.mxu0 0.0
    %3226 = vmatpush1.msra.mxu0 0.0
    %3227 = vmatprep.subr.mxu0 0.0
    %3228 = vmatpush1.msra.mxu0 0.0
    %3229 = vmatprep.subr.mxu0 0.0
    %3230 = vmatpush1.msra.mxu0 0.0
    %3231 = vmatprep.subr.mxu0 0.0
    %3232 = vmatpush1.msra.mxu0 0.0
    %3233 = vmatprep.subr.mxu0 0.0
    %3234 = vmatpush1.msra.mxu0 0.0
    %3235 = vmatprep.subr.mxu0 0.0
    %3236 = vmatpush1.msra.mxu0 0.0
    %3237 = vmatprep.subr.mxu0 0.0
    %3238 = vmatpush1.msra.mxu0 0.0
    %3239 = vmatprep.subr.mxu0 0.0
    %3240 = vmatpush1.msra.mxu0 0.0
    %3241 = vmatprep.subr.mxu0 0.0
    %3242 = vmatpush1.msra.mxu0 0.0
    %3243 = vmatprep.subr.mxu0 0.0
    %3244 = vmatpush1.msra.mxu0 0.0
    %3245 = vmatprep.mubr.f32.mxu0 0.0
    %3246 = vmatmul.mubr.f32.gmra.mrb[0].mxu0 %v3179
    %v3247 = vpop.f32.mrb[0].mxu0
    %v3248 = vadd.f32 %v3176, %v3247
    %v3249 = vpop.f32.mrb[0].mxu0
    %3250 = vdwg.mxu0
    %v3251 = vmax.f32 %v3248, 0.0
    %v3252 = vld [vmem:[%s15] sm:$0xff]
    %v3253 = vld [vmem:[%s15 + $0x8] sm:$0xff]
    %v3254 = vld [vmem:[%s15 + $0x10] sm:$0xff]
    %v3255 = vld [vmem:[%s15 + $0x18] sm:$0xff]
    %v3256 = vld [vmem:[%s16] sm:$0x1]
    %v3258 = vlaneseq
    %v3259 = vshrl.u32 %v3258, 7
    %v3260 = vsub.s32 0, %v3259
    %v3261 = vrot.slane %v3256, %v3260
    %v3264 = vsel %vm624, %v3251, 0
    %3266 = vmatprep.subr.mxu0 0.0
    %3267 = vmatpush1.msra.mxu0 %v3252
    %3268 = vmatprep.subr.mxu0 0.0
    %3269 = vmatpush1.msra.mxu0 %v3253
    %3270 = vmatprep.subr.mxu0 0.0
    %3271 = vmatpush1.msra.mxu0 %v3254
    %3272 = vmatprep.subr.mxu0 0.0
    %3273 = vmatpush1.msra.mxu0 %v3255
    %3274 = vmatprep.subr.mxu0 0.0
    %3275 = vmatpush1.msra.mxu0 0.0
    %3276 = vmatprep.subr.mxu0 0.0
    %3277 = vmatpush1.msra.mxu0 0.0
    %3278 = vmatprep.subr.mxu0 0.0
    %3279 = vmatpush1.msra.mxu0 0.0
    %3280 = vmatprep.subr.mxu0 0.0
    %3281 = vmatpush1.msra.mxu0 0.0
    %3282 = vmatprep.subr.mxu0 0.0
    %3283 = vmatpush1.msra.mxu0 0.0
    %3284 = vmatprep.subr.mxu0 0.0
    %3285 = vmatpush1.msra.mxu0 0.0
    %3286 = vmatprep.subr.mxu0 0.0
    %3287 = vmatpush1.msra.mxu0 0.0
    %3288 = vmatprep.subr.mxu0 0.0
    %3289 = vmatpush1.msra.mxu0 0.0
    %3290 = vmatprep.subr.mxu0 0.0
    %3291 = vmatpush1.msra.mxu0 0.0
    %3292 = vmatprep.subr.mxu0 0.0
    %3293 = vmatpush1.msra.mxu0 0.0
    %3294 = vmatprep.subr.mxu0 0.0
    %3295 = vmatpush1.msra.mxu0 0.0
    %3296 = vmatprep.subr.mxu0 0.0
    %3297 = vmatpush1.msra.mxu0 0.0
    %3298 = vmatprep.subr.mxu0 0.0
    %3299 = vmatpush1.msra.mxu0 0.0
    %3300 = vmatprep.subr.mxu0 0.0
    %3301 = vmatpush1.msra.mxu0 0.0
    %3302 = vmatprep.subr.mxu0 0.0
    %3303 = vmatpush1.msra.mxu0 0.0
    %3304 = vmatprep.subr.mxu0 0.0
    %3305 = vmatpush1.msra.mxu0 0.0
    %3306 = vmatprep.subr.mxu0 0.0
    %3307 = vmatpush1.msra.mxu0 0.0
    %3308 = vmatprep.subr.mxu0 0.0
    %3309 = vmatpush1.msra.mxu0 0.0
    %3310 = vmatprep.subr.mxu0 0.0
    %3311 = vmatpush1.msra.mxu0 0.0
    %3312 = vmatprep.subr.mxu0 0.0
    %3313 = vmatpush1.msra.mxu0 0.0
    %3314 = vmatprep.subr.mxu0 0.0
    %3315 = vmatpush1.msra.mxu0 0.0
    %3316 = vmatprep.subr.mxu0 0.0
    %3317 = vmatpush1.msra.mxu0 0.0
    %3318 = vmatprep.subr.mxu0 0.0
    %3319 = vmatpush1.msra.mxu0 0.0
    %3320 = vmatprep.subr.mxu0 0.0
    %3321 = vmatpush1.msra.mxu0 0.0
    %3322 = vmatprep.subr.mxu0 0.0
    %3323 = vmatpush1.msra.mxu0 0.0
    %3324 = vmatprep.subr.mxu0 0.0
    %3325 = vmatpush1.msra.mxu0 0.0
    %3326 = vmatprep.subr.mxu0 0.0
    %3327 = vmatpush1.msra.mxu0 0.0
    %3328 = vmatprep.subr.mxu0 0.0
    %3329 = vmatpush1.msra.mxu0 0.0
    %3330 = vmatprep.mubr.f32.mxu0 0.0
    %3331 = vmatmul.mubr.f32.gmra.mrb[0].mxu0 %v3264
    %v3332 = vpop.f32.mrb[0].mxu0
    %v3333 = vadd.f32 %v3261, %v3332
    %v3334 = vpop.f32.mrb[0].mxu0
    %3335 = vdwg.mxu0
    %vm3336 = vcmask 33792
    %3337 = vst.msk [vmem:[#allocation7] sm:$0x3] %vm3336, %v3333
    // Predicated region
    $region78: #{tpu_custom_call.1} parent=1 // pred_check
      _
    $region79: #{tpu_custom_call.1} parent=1 // pred_check_branch
      %3339 = sbr.rel (0) target = $region81
    $region80: #{tpu_custom_call.1} parent=1 // pred_region
      %s3341 = ssub.s32 32, 32
      %3342 = vsyncadd [#allocation4], %s3341
      %s3344 = sshll.u32 [#allocation7], 4
      %s3345 = int_to_ptr.vmem [resolvable:$true] %s3344
      %3347 = dma.vmem_to_hbm [thread:$0]  %s3345, 32, %s17, [#allocation4]
    $region81: #{tpu_custom_call.1} parent=1 // pred_fallthru
      _
    // Predicated region
    $region82: #{tpu_custom_call.1} parent=1 // pred_check
      _
    $region83: #{tpu_custom_call.1} parent=1 // pred_check_branch
      %3349 = sbr.rel (0) target = $region85
    $region84: #{tpu_custom_call.1} parent=1 // pred_region
      %3350 = dma.done [#allocation4], 32
    $region85: #{tpu_custom_call.1} parent=1 // pred_fallthru
      _
    %3351 = vsyncpa [#allocation3], 1
    %3352 = vsyncpa [#allocation6], 1
    %3353 = vsyncpa [#allocation4], 1

</llo_original>
